<compile_context>
chip_gen: v6e
topology: v6e:2x2x1
jax: 0.10.0
libtpu: 0.0.40
codegen_flags: <defaults>
</compile_context>

<pallas_src>
import functools

import jax
import jax.numpy as jnp
from jax.experimental import pallas as pl
from jax.experimental.pallas import tpu as pltpu

IN_FEATURES = 28 * 28   # 784
K_PAD = 896             # 784 padded up to 7 * 128
H1 = 1024
H2 = 256
LANE = 128


def mlp_kernel(x_ref, w1_ref, b1_ref, w2_ref, b2_ref, w3_ref, b3_ref, o_ref):
    # fc1 + tanh : bf16 MXU matmul, f32 accumulation, f32 bias add / tanh.
    h1 = jnp.tanh(
        jnp.dot(x_ref[...], w1_ref[...], preferred_element_type=jnp.float32)
        + b1_ref[...]
    )
    # fc2 + tanh : cast only the dot operand back to bf16 for the MXU.
    h2 = jnp.tanh(
        jnp.dot(h1.astype(jnp.bfloat16), w2_ref[...],
                preferred_element_type=jnp.float32)
        + b2_ref[...]
    )
    # fc3 + tanh : classifier, lane-padded to 128.
    out = jnp.tanh(
        jnp.dot(h2.astype(jnp.bfloat16), w3_ref[...],
                preferred_element_type=jnp.float32)
        + b3_ref[...]
    )
    o_ref[...] = out.astype(o_ref.dtype)


def init_params(key, num_classes):
    """f32 master params mimicking PyTorch nn.Linear default init.

    Weights are stored transposed vs. PyTorch, i.e. (in, out); biases (1, out).
    """
    dims = [(IN_FEATURES, H1), (H1, H2), (H2, num_classes)]
    params = []
    for fan_in, fan_out in dims:
        kw, kb, key = jax.random.split(key, 3)
        bound = 1.0 / jnp.sqrt(float(fan_in))
        w = jax.random.uniform(kw, (fan_in, fan_out), jnp.float32, -bound, bound)
        b = jax.random.uniform(kb, (1, fan_out), jnp.float32, -bound, bound)
        params += [w, b]
    return tuple(params)


def prepare_params(params_f32):
    """Pad to MXU / lane-friendly shapes and cast weights to bf16 (biases f32)."""
    w1, b1, w2, b2, w3, b3 = params_f32
    num_classes = w3.shape[1]
    c_pad = pl.cdiv(num_classes, LANE) * LANE        # e.g. 10 -> 128
    w1p = jnp.pad(w1, ((0, K_PAD - w1.shape[0]), (0, 0))).astype(jnp.bfloat16)
    w2p = w2.astype(jnp.bfloat16)
    w3p = jnp.pad(w3, ((0, 0), (0, c_pad - num_classes))).astype(jnp.bfloat16)
    b3p = jnp.pad(b3, ((0, 0), (0, c_pad - num_classes)))
    return (w1p, b1, w2p, b2, w3p, b3p)


@functools.partial(jax.jit, static_argnums=(2,))
def model_3_3_forward(x, kernel_params, num_classes):
    """x: (B, 1, 28, 28) float32 (NCHW). Returns (B, num_classes) float32."""
    w1, b1, w2, b2, w3, b3 = kernel_params
    c_pad = w3.shape[1]

    B = x.shape[0]
    x_flat = x.reshape(B, -1)                                     # nn.Flatten()
    x_flat = jnp.pad(x_flat, ((0, 0), (0, K_PAD - x_flat.shape[1])))

    # Batch tile: 256 rows feeds the 2x256^2 MXU nicely (v6e/v7x); small
    # batches round up to a sublane multiple and run a single grid step.
    if B >= 256:
        tm = 256
    else:
        tm = max(8, ((B + 7) // 8) * 8)
    n_tiles = pl.cdiv(B, tm)
    b_pad = n_tiles * tm
    if b_pad != B:
        x_flat = jnp.pad(x_flat, ((0, b_pad - B), (0, 0)))
    x_bf16 = x_flat.astype(jnp.bfloat16)

    cost = pl.CostEstimate(
        flops=2 * b_pad * (K_PAD * H1 + H1 * H2 + H2 * c_pad),
        transcendentals=b_pad * (H1 + H2 + c_pad),
        bytes_accessed=(x_bf16.size * 2
                        + (w1.size + w2.size + w3.size) * 2
                        + (b1.size + b2.size + b3.size) * 4
                        + b_pad * c_pad * 4),
    )

    def resident(shape):
        # Same block every grid step -> stays VMEM-resident, HBM->VMEM once.
        return pl.BlockSpec(shape, lambda i: (0, 0))

    out = pl.pallas_call(
        mlp_kernel,
        out_shape=jax.ShapeDtypeStruct((b_pad, c_pad), jnp.float32),
        grid_spec=pltpu.PrefetchScalarGridSpec(
            num_scalar_prefetch=0,
            grid=(n_tiles,),
            in_specs=[
                pl.BlockSpec((tm, K_PAD), lambda i: (i, 0)),   # x tile
                resident((K_PAD, H1)),                         # w1
                resident((1, H1)),                             # b1
                resident((H1, H2)),                            # w2
                resident((1, H2)),                             # b2
                resident((H2, c_pad)),                         # w3 (lane-padded)
                resident((1, c_pad)),                          # b3 (lane-padded)
            ],
            out_specs=pl.BlockSpec((tm, c_pad), lambda i: (i, 0)),
        ),
        compiler_params=pltpu.CompilerParams(
            dimension_semantics=("parallel",),
            vmem_limit_bytes=32 << 20,
        ),
        cost_estimate=cost,
    )(x_bf16, w1, b1, w2, b2, w3, b3)

    return out[:B, :num_classes]


if __name__ == "__main__":
    num_classes = 10
    batch = 8

    key = jax.random.PRNGKey(0)
    kx, kp = jax.random.split(key)

    x = jax.random.normal(kx, (batch, 1, 28, 28), dtype=jnp.float32)
    params_f32 = init_params(kp, num_classes)
    kernel_params = prepare_params(params_f32)

    out = model_3_3_forward(x, kernel_params, num_classes)
    out = jax.block_until_ready(out)

    # Reference in plain f32 JAX (kernel uses bf16 weights -> loosened tolerance).
    w1, b1, w2, b2, w3, b3 = params_f32
    ref = x.reshape(batch, -1)
    ref = jnp.tanh(ref @ w1 + b1)
    ref = jnp.tanh(ref @ w2 + b2)
    ref = jnp.tanh(ref @ w3 + b3)

    assert out.shape == (batch, num_classes)
    assert bool(jnp.allclose(out, ref, atol=5e-2, rtol=0.0)), (
        float(jnp.max(jnp.abs(out - ref)))
    )

    print("KERNEL_OK")
</pallas_src>

<mosaic_0001>
module attributes {stable_mosaic.version = 11 : i64} {
  func.func @mlp_kernel(%arg0: i32, %arg1: memref<8x896xbf16, #tpu.memory_space<vmem>>, %arg2: memref<896x1024xbf16, #tpu.memory_space<vmem>>, %arg3: memref<1x1024xf32, #tpu.memory_space<vmem>>, %arg4: memref<1024x256xbf16, #tpu.memory_space<vmem>>, %arg5: memref<1x256xf32, #tpu.memory_space<vmem>>, %arg6: memref<256x128xbf16, #tpu.memory_space<vmem>>, %arg7: memref<1x128xf32, #tpu.memory_space<vmem>>, %arg8: memref<8x128xf32, #tpu.memory_space<vmem>>) attributes {dimension_semantics = [#tpu.dimension_semantics<parallel>], iteration_bounds = array<i64: 1>, scalar_prefetch = 0 : i64, scratch_operands = 0 : i64, tpu.core_type = #tpu.core_type<tc>, window_params = [{transform_indices = @transform_0, window_bounds = array<i64: 8, 896>}, {pipeline_mode = #tpu.pipeline_mode<synchronous>, transform_indices = @transform_1, window_bounds = array<i64: 896, 1024>}, {pipeline_mode = #tpu.pipeline_mode<synchronous>, transform_indices = @transform_2, window_bounds = array<i64: 1, 1024>}, {pipeline_mode = #tpu.pipeline_mode<synchronous>, transform_indices = @transform_3, window_bounds = array<i64: 1024, 256>}, {pipeline_mode = #tpu.pipeline_mode<synchronous>, transform_indices = @transform_4, window_bounds = array<i64: 1, 256>}, {pipeline_mode = #tpu.pipeline_mode<synchronous>, transform_indices = @transform_5, window_bounds = array<i64: 256, 128>}, {pipeline_mode = #tpu.pipeline_mode<synchronous>, transform_indices = @transform_6, window_bounds = array<i64: 1, 128>}, {transform_indices = @transform_7, window_bounds = array<i64: 8, 128>}]} {
    %c0 = arith.constant 0 : index
    %c0_0 = arith.constant 0 : index
    %0 = vector.load %arg1[%c0, %c0_0] : memref<8x896xbf16, #tpu.memory_space<vmem>>, vector<8x896xbf16>
    %c0_1 = arith.constant 0 : index
    %c0_2 = arith.constant 0 : index
    %1 = vector.load %arg2[%c0_1, %c0_2] : memref<896x1024xbf16, #tpu.memory_space<vmem>>, vector<896x1024xbf16>
    %cst = arith.constant dense<0.000000e+00> : vector<8x1024xf32>
    %2 = tpu.matmul %0, %1, %cst {dimension_numbers = #tpu.dot_dimension_numbers<[1], [0], [0], [1], [0, 0, 1, 1], [], []>} : vector<8x896xbf16>, vector<896x1024xbf16>, vector<8x1024xf32> -> vector<8x1024xf32>
    %c0_3 = arith.constant 0 : index
    %c0_4 = arith.constant 0 : index
    %3 = vector.load %arg3[%c0_3, %c0_4] : memref<1x1024xf32, #tpu.memory_space<vmem>>, vector<1x1024xf32>
    %4 = vector.broadcast %3 : vector<1x1024xf32> to vector<8x1024xf32>
    %5 = arith.addf %2, %4 : vector<8x1024xf32>
    %6 = math.tanh %5 : vector<8x1024xf32>
    %7 = arith.truncf %6 : vector<8x1024xf32> to vector<8x1024xbf16>
    %c0_5 = arith.constant 0 : index
    %c0_6 = arith.constant 0 : index
    %8 = vector.load %arg4[%c0_5, %c0_6] : memref<1024x256xbf16, #tpu.memory_space<vmem>>, vector<1024x256xbf16>
    %cst_7 = arith.constant dense<0.000000e+00> : vector<8x256xf32>
    %9 = tpu.matmul %7, %8, %cst_7 {dimension_numbers = #tpu.dot_dimension_numbers<[1], [0], [0], [1], [0, 0, 1, 1], [], []>} : vector<8x1024xbf16>, vector<1024x256xbf16>, vector<8x256xf32> -> vector<8x256xf32>
    %c0_8 = arith.constant 0 : index
    %c0_9 = arith.constant 0 : index
    %10 = vector.load %arg5[%c0_8, %c0_9] : memref<1x256xf32, #tpu.memory_space<vmem>>, vector<1x256xf32>
    %11 = vector.broadcast %10 : vector<1x256xf32> to vector<8x256xf32>
    %12 = arith.addf %9, %11 : vector<8x256xf32>
    %13 = math.tanh %12 : vector<8x256xf32>
    %14 = arith.truncf %13 : vector<8x256xf32> to vector<8x256xbf16>
    %c0_10 = arith.constant 0 : index
    %c0_11 = arith.constant 0 : index
    %15 = vector.load %arg6[%c0_10, %c0_11] : memref<256x128xbf16, #tpu.memory_space<vmem>>, vector<256x128xbf16>
    %cst_12 = arith.constant dense<0.000000e+00> : vector<8x128xf32>
    %16 = tpu.matmul %14, %15, %cst_12 {dimension_numbers = #tpu.dot_dimension_numbers<[1], [0], [0], [1], [0, 0, 1, 1], [], []>} : vector<8x256xbf16>, vector<256x128xbf16>, vector<8x128xf32> -> vector<8x128xf32>
    %c0_13 = arith.constant 0 : index
    %c0_14 = arith.constant 0 : index
    %17 = vector.load %arg7[%c0_13, %c0_14] : memref<1x128xf32, #tpu.memory_space<vmem>>, vector<1x128xf32>
    %18 = vector.broadcast %17 : vector<1x128xf32> to vector<8x128xf32>
    %19 = arith.addf %16, %18 : vector<8x128xf32>
    %20 = math.tanh %19 : vector<8x128xf32>
    %c0_15 = arith.constant 0 : index
    %c0_16 = arith.constant 0 : index
    %21 = vector.load %arg8[%c0_15, %c0_16] : memref<8x128xf32, #tpu.memory_space<vmem>>, vector<8x128xf32>
    tpu.vector_store %arg8[%c0_15, %c0_16], %20 {strides = array<i32>} : memref<8x128xf32, #tpu.memory_space<vmem>>, vector<8x128xf32>,
    return
  }
  func.func @transform_0(%arg0: i32) -> (i32, i32) {
    %c0_i32 = arith.constant 0 : i32
    %c0_i32_0 = arith.constant 0 : i32
    return %arg0, %c0_i32 : i32, i32
  }
  func.func @transform_1(%arg0: i32) -> (i32, i32) {
    %c0_i32 = arith.constant 0 : i32
    %c0_i32_0 = arith.constant 0 : i32
    %c0_i32_1 = arith.constant 0 : i32
    return %c0_i32, %c0_i32_0 : i32, i32
  }
  func.func @transform_2(%arg0: i32) -> (i32, i32) {
    %c0_i32 = arith.constant 0 : i32
    %c0_i32_0 = arith.constant 0 : i32
    %c0_i32_1 = arith.constant 0 : i32
    return %c0_i32, %c0_i32_0 : i32, i32
  }
  func.func @transform_3(%arg0: i32) -> (i32, i32) {
    %c0_i32 = arith.constant 0 : i32
    %c0_i32_0 = arith.constant 0 : i32
    %c0_i32_1 = arith.constant 0 : i32
    return %c0_i32, %c0_i32_0 : i32, i32
  }
  func.func @transform_4(%arg0: i32) -> (i32, i32) {
    %c0_i32 = arith.constant 0 : i32
    %c0_i32_0 = arith.constant 0 : i32
    %c0_i32_1 = arith.constant 0 : i32
    return %c0_i32, %c0_i32_0 : i32, i32
  }
  func.func @transform_5(%arg0: i32) -> (i32, i32) {
    %c0_i32 = arith.constant 0 : i32
    %c0_i32_0 = arith.constant 0 : i32
    %c0_i32_1 = arith.constant 0 : i32
    return %c0_i32, %c0_i32_0 : i32, i32
  }
  func.func @transform_6(%arg0: i32) -> (i32, i32) {
    %c0_i32 = arith.constant 0 : i32
    %c0_i32_0 = arith.constant 0 : i32
    %c0_i32_1 = arith.constant 0 : i32
    return %c0_i32, %c0_i32_0 : i32, i32
  }
  func.func @transform_7(%arg0: i32) -> (i32, i32) {
    %c0_i32 = arith.constant 0 : i32
    %c0_i32_0 = arith.constant 0 : i32
    return %arg0, %c0_i32 : i32, i32
  }
}

</mosaic_0001>

<llo_original>
// kernel: model_3_3_forward.1
$region0: #{model_3_3_forward.1}
  #allocation0 [shape = 'u32[]', space=smem, size = 0x4, offset = 0x4, fixed_abs, tag = 'smem constant byte address 0x4 - core index']
  #allocation1 [shape = 'u32[144,128]{1,0:T(1,128)}', space=vmem, size = 0x12000, scoped, tag = 'internal scratch']
  %s0 = inlined_call_operand.vmem [shape: bf16[8,896], index: 0, kind: input, shape index: {}]
  %s1 = inlined_call_operand.hbm [shape: bf16[896,1024], index: 1, kind: input, shape index: {}]
  %s2 = inlined_call_operand.hbm [shape: f32[1,1024], index: 2, kind: input, shape index: {}]
  %s3 = inlined_call_operand.hbm [shape: bf16[1024,256], index: 3, kind: input, shape index: {}]
  %s4 = inlined_call_operand.hbm [shape: f32[1,256], index: 4, kind: input, shape index: {}]
  %s5 = inlined_call_operand.hbm [shape: bf16[256,128], index: 5, kind: input, shape index: {}]
  %s6 = inlined_call_operand.hbm [shape: f32[1,128], index: 6, kind: input, shape index: {}]
  %s7 = inlined_call_operand.hbm [shape: f32[8,128], index: 7, kind: output, shape index: {}]
  %s8 = sld [smem:[#allocation0]]
  $region62: #{model_3_3_forward.1} parent=0
    _
  %s10 = ssub.s32 1, %s8
  %s11 = scalar_select 0, %s10, %s8
  $region1: #{model_3_3_forward.1} parent=0
    #allocation2 [shape = 'u8[1835008]{0}', space=vmem, size = 0x1c0000, scoped, tag = 'input window, operand 1, single buffered']
    #allocation3 [shape = 's32[1]{0}', space=sflag, size = 0x4, scoped, tag = 'scoped memory for model_3_3_forward.1']
    #allocation4 [shape = 's32[1]{0}', space=sflag, size = 0x4, scoped, tag = 'scoped memory for model_3_3_forward.1']
    #allocation5 [shape = 'u8[4096]{0}', space=vmem, size = 0x1000, scoped, tag = 'input window, operand 2, single buffered']
    #allocation6 [shape = 's32[1]{0}', space=sflag, size = 0x4, scoped, tag = 'scoped memory for model_3_3_forward.1']
    #allocation7 [shape = 'u8[524288]{0}', space=vmem, size = 0x80000, scoped, tag = 'input window, operand 3, single buffered']
    #allocation8 [shape = 'u8[1024]{0}', space=vmem, size = 0x400, scoped, tag = 'input window, operand 4, single buffered']
    #allocation9 [shape = 's32[1]{0}', space=sflag, size = 0x4, scoped, tag = 'scoped memory for model_3_3_forward.1']
    #allocation10 [shape = 'u8[65536]{0}', space=vmem, size = 0x10000, scoped, tag = 'input window, operand 5, single buffered']
    #allocation11 [shape = 'u8[512]{0}', space=vmem, size = 0x400, scoped, tag = 'input window, operand 6, single buffered']
    #allocation12 [shape = 's32[1]{0}', space=sflag, size = 0x4, scoped, tag = 'scoped memory for model_3_3_forward.1']
    #allocation13 [shape = 'u8[4096]{0}', space=vmem, size = 0x1000, scoped, tag = 'output window, operand 0, single buffered']
    %12 = vsyncpa [#allocation3], 0
    %13 = vsyncpa [#allocation6], 0
    %14 = vsyncpa [#allocation9], 0
    %15 = vsyncpa [#allocation12], 0
    %16 = vsyncpa [#allocation4], 0
    // Predicated region
    $region2: #{model_3_3_forward.1} parent=1 // pred_check
      _
    $region3: #{model_3_3_forward.1} parent=1 // pred_check_branch
      %18 = sbr.rel (0) target = $region5
    $region4: #{model_3_3_forward.1} parent=1 // pred_region
      _
    $region5: #{model_3_3_forward.1} parent=1 // pred_fallthru
      _
    // Predicated region
    $region6: #{model_3_3_forward.1} parent=1 // pred_check
      _
    $region7: #{model_3_3_forward.1} parent=1 // pred_check_branch
      %20 = sbr.rel (0) target = $region9
    $region8: #{model_3_3_forward.1} parent=1 // pred_region
      %s22 = ssub.s32 57344, 57344
      %23 = vsyncadd [#allocation3], %s22
      %s24 = sshll.u32 [#allocation2], 4
      %s25 = int_to_ptr.vmem [resolvable:$true] %s24
      %30 = dma.hbm_to_vmem [thread:$0]  %s1, 57344, %s25, [#allocation3], 512, 512, 32
    $region9: #{model_3_3_forward.1} parent=1 // pred_fallthru
      _
    // Predicated region
    $region10: #{model_3_3_forward.1} parent=1 // pred_check
      _
    $region11: #{model_3_3_forward.1} parent=1 // pred_check_branch
      %32 = sbr.rel (0) target = $region13
    $region12: #{model_3_3_forward.1} parent=1 // pred_region
      %s34 = ssub.s32 128, 128
      %35 = vsyncadd [#allocation6], %s34
      %s37 = sshll.u32 [#allocation5], 4
      %s38 = int_to_ptr.vmem [resolvable:$true] %s37
      %40 = dma.hbm_to_vmem [thread:$0]  %s2, 128, %s38, [#allocation6]
    $region13: #{model_3_3_forward.1} parent=1 // pred_fallthru
      _
    // Predicated region
    $region14: #{model_3_3_forward.1} parent=1 // pred_check
      _
    $region15: #{model_3_3_forward.1} parent=1 // pred_check_branch
      %42 = sbr.rel (0) target = $region17
    $region16: #{model_3_3_forward.1} parent=1 // pred_region
      %s44 = ssub.s32 16384, 16384
      %45 = vsyncadd [#allocation6], %s44
      %s46 = sshll.u32 [#allocation7], 4
      %s47 = int_to_ptr.vmem [resolvable:$true] %s46
      %52 = dma.hbm_to_vmem [thread:$0]  %s3, 16384, %s47, [#allocation6], 128, 128, 8
    $region17: #{model_3_3_forward.1} parent=1 // pred_fallthru
      _
    // Predicated region
    $region18: #{model_3_3_forward.1} parent=1 // pred_check
      _
    $region19: #{model_3_3_forward.1} parent=1 // pred_check_branch
      %54 = sbr.rel (0) target = $region21
    $region20: #{model_3_3_forward.1} parent=1 // pred_region
      %s56 = ssub.s32 32, 32
      %57 = vsyncadd [#allocation9], %s56
      %s59 = sshll.u32 [#allocation8], 4
      %s60 = int_to_ptr.vmem [resolvable:$true] %s59
      %62 = dma.hbm_to_vmem [thread:$0]  %s4, 32, %s60, [#allocation9]
    $region21: #{model_3_3_forward.1} parent=1 // pred_fallthru
      _
    // Predicated region
    $region22: #{model_3_3_forward.1} parent=1 // pred_check
      _
    $region23: #{model_3_3_forward.1} parent=1 // pred_check_branch
      %64 = sbr.rel (0) target = $region25
    $region24: #{model_3_3_forward.1} parent=1 // pred_region
      %s66 = ssub.s32 2048, 2048
      %67 = vsyncadd [#allocation9], %s66
      %s68 = sshll.u32 [#allocation10], 4
      %s69 = int_to_ptr.vmem [resolvable:$true] %s68
      %74 = dma.hbm_to_vmem [thread:$0]  %s5, 2048, %s69, [#allocation9], 64, 64, 4
    $region25: #{model_3_3_forward.1} parent=1 // pred_fallthru
      _
    // Predicated region
    $region26: #{model_3_3_forward.1} parent=1 // pred_check
      _
    $region27: #{model_3_3_forward.1} parent=1 // pred_check_branch
      %76 = sbr.rel (0) target = $region29
    $region28: #{model_3_3_forward.1} parent=1 // pred_region
      %s78 = ssub.s32 16, 16
      %79 = vsyncadd [#allocation12], %s78
      %s81 = sshll.u32 [#allocation11], 4
      %s82 = int_to_ptr.vmem [resolvable:$true] %s81
      %84 = dma.hbm_to_vmem [thread:$0]  %s6, 16, %s82, [#allocation12]
    $region29: #{model_3_3_forward.1} parent=1 // pred_fallthru
      _
    // Predicated region
    $region30: #{model_3_3_forward.1} parent=1 // pred_check
      _
    $region31: #{model_3_3_forward.1} parent=1 // pred_check_branch
      %86 = sbr.rel (0) target = $region33
    $region32: #{model_3_3_forward.1} parent=1 // pred_region
      %87 = dma.done [#allocation3], 57344
    $region33: #{model_3_3_forward.1} parent=1 // pred_fallthru
      _
    // Predicated region
    $region34: #{model_3_3_forward.1} parent=1 // pred_check
      _
    $region35: #{model_3_3_forward.1} parent=1 // pred_check_branch
      %89 = sbr.rel (0) target = $region37
    $region36: #{model_3_3_forward.1} parent=1 // pred_region
      %90 = dma.done [#allocation6], 128
    $region37: #{model_3_3_forward.1} parent=1 // pred_fallthru
      _
    // Predicated region
    $region38: #{model_3_3_forward.1} parent=1 // pred_check
      _
    $region39: #{model_3_3_forward.1} parent=1 // pred_check_branch
      %92 = sbr.rel (0) target = $region41
    $region40: #{model_3_3_forward.1} parent=1 // pred_region
      %93 = dma.done [#allocation6], 16384
    $region41: #{model_3_3_forward.1} parent=1 // pred_fallthru
      _
    // Predicated region
    $region42: #{model_3_3_forward.1} parent=1 // pred_check
      _
    $region43: #{model_3_3_forward.1} parent=1 // pred_check_branch
      %95 = sbr.rel (0) target = $region45
    $region44: #{model_3_3_forward.1} parent=1 // pred_region
      %96 = dma.done [#allocation9], 32
    $region45: #{model_3_3_forward.1} parent=1 // pred_fallthru
      _
    // Predicated region
    $region46: #{model_3_3_forward.1} parent=1 // pred_check
      _
    $region47: #{model_3_3_forward.1} parent=1 // pred_check_branch
      %98 = sbr.rel (0) target = $region49
    $region48: #{model_3_3_forward.1} parent=1 // pred_region
      %99 = dma.done [#allocation9], 2048
    $region49: #{model_3_3_forward.1} parent=1 // pred_fallthru
      _
    // Predicated region
    $region50: #{model_3_3_forward.1} parent=1 // pred_check
      _
    $region51: #{model_3_3_forward.1} parent=1 // pred_check_branch
      %101 = sbr.rel (0) target = $region53
    $region52: #{model_3_3_forward.1} parent=1 // pred_region
      %102 = dma.done [#allocation12], 16
    $region53: #{model_3_3_forward.1} parent=1 // pred_fallthru
      _
    %v104 = vld [vmem:[%s0] sm:$0xff]
    %v105 = vld [vmem:[%s0 + $0x8] sm:$0xff]
    %v106 = vld [vmem:[%s0 + $0x10] sm:$0xff]
    %v107 = vld [vmem:[%s0 + $0x18] sm:$0xf]
    %v108 = vld [vmem:[#allocation2] sm:$0xff]
    %v109 = vld [vmem:[#allocation2 + $0x8] sm:$0xff]
    %v110 = vld [vmem:[#allocation2 + $0x10] sm:$0xff]
    %v111 = vld [vmem:[#allocation2 + $0x18] sm:$0xff]
    %v112 = vld [vmem:[#allocation2 + $0x20] sm:$0xff]
    %v113 = vld [vmem:[#allocation2 + $0x28] sm:$0xff]
    %v114 = vld [vmem:[#allocation2 + $0x30] sm:$0xff]
    %v115 = vld [vmem:[#allocation2 + $0x38] sm:$0xff]
    %v116 = vld [vmem:[#allocation2 + $0x40] sm:$0xff]
    %v117 = vld [vmem:[#allocation2 + $0x48] sm:$0xff]
    %v118 = vld [vmem:[#allocation2 + $0x50] sm:$0xff]
    %v119 = vld [vmem:[#allocation2 + $0x58] sm:$0xff]
    %v120 = vld [vmem:[#allocation2 + $0x60] sm:$0xff]
    %v121 = vld [vmem:[#allocation2 + $0x68] sm:$0xff]
    %v122 = vld [vmem:[#allocation2 + $0x70] sm:$0xff]
    %v123 = vld [vmem:[#allocation2 + $0x78] sm:$0xff]
    %v124 = vld [vmem:[#allocation2 + $0x80] sm:$0xff]
    %v125 = vld [vmem:[#allocation2 + $0x88] sm:$0xff]
    %v126 = vld [vmem:[#allocation2 + $0x90] sm:$0xff]
    %v127 = vld [vmem:[#allocation2 + $0x98] sm:$0xff]
    %v128 = vld [vmem:[#allocation2 + $0xa0] sm:$0xff]
    %v129 = vld [vmem:[#allocation2 + $0xa8] sm:$0xff]
    %v130 = vld [vmem:[#allocation2 + $0xb0] sm:$0xff]
    %v131 = vld [vmem:[#allocation2 + $0xb8] sm:$0xff]
    %v132 = vld [vmem:[#allocation2 + $0xc0] sm:$0xff]
    %v133 = vld [vmem:[#allocation2 + $0xc8] sm:$0xff]
    %v134 = vld [vmem:[#allocation2 + $0xd0] sm:$0xff]
    %v135 = vld [vmem:[#allocation2 + $0xd8] sm:$0xff]
    %v136 = vld [vmem:[#allocation2 + $0xe0] sm:$0xff]
    %v137 = vld [vmem:[#allocation2 + $0xe8] sm:$0xff]
    %v138 = vld [vmem:[#allocation2 + $0xf0] sm:$0xff]
    %v139 = vld [vmem:[#allocation2 + $0xf8] sm:$0xff]
    %v140 = vld [vmem:[#allocation2 + $0x100] sm:$0xff]
    %v141 = vld [vmem:[#allocation2 + $0x108] sm:$0xff]
    %v142 = vld [vmem:[#allocation2 + $0x110] sm:$0xff]
    %v143 = vld [vmem:[#allocation2 + $0x118] sm:$0xff]
    %v144 = vld [vmem:[#allocation2 + $0x120] sm:$0xff]
    %v145 = vld [vmem:[#allocation2 + $0x128] sm:$0xff]
    %v146 = vld [vmem:[#allocation2 + $0x130] sm:$0xff]
    %v147 = vld [vmem:[#allocation2 + $0x138] sm:$0xff]
    %v148 = vld [vmem:[#allocation2 + $0x140] sm:$0xff]
    %v149 = vld [vmem:[#allocation2 + $0x148] sm:$0xff]
    %v150 = vld [vmem:[#allocation2 + $0x150] sm:$0xff]
    %v151 = vld [vmem:[#allocation2 + $0x158] sm:$0xff]
    %v152 = vld [vmem:[#allocation2 + $0x160] sm:$0xff]
    %v153 = vld [vmem:[#allocation2 + $0x168] sm:$0xff]
    %v154 = vld [vmem:[#allocation2 + $0x170] sm:$0xff]
    %v155 = vld [vmem:[#allocation2 + $0x178] sm:$0xff]
    %v156 = vld [vmem:[#allocation2 + $0x180] sm:$0xff]
    %v157 = vld [vmem:[#allocation2 + $0x188] sm:$0xff]
    %v158 = vld [vmem:[#allocation2 + $0x190] sm:$0xff]
    %v159 = vld [vmem:[#allocation2 + $0x198] sm:$0xff]
    %v160 = vld [vmem:[#allocation2 + $0x1a0] sm:$0xff]
    %v161 = vld [vmem:[#allocation2 + $0x1a8] sm:$0xff]
    %v162 = vld [vmem:[#allocation2 + $0x1b0] sm:$0xff]
    %v163 = vld [vmem:[#allocation2 + $0x1b8] sm:$0xff]
    %v164 = vld [vmem:[#allocation2 + $0x1c0] sm:$0xff]
    %v165 = vld [vmem:[#allocation2 + $0x1c8] sm:$0xff]
    %v166 = vld [vmem:[#allocation2 + $0x1d0] sm:$0xff]
    %v167 = vld [vmem:[#allocation2 + $0x1d8] sm:$0xff]
    %v168 = vld [vmem:[#allocation2 + $0x1e0] sm:$0xff]
    %v169 = vld [vmem:[#allocation2 + $0x1e8] sm:$0xff]
    %v170 = vld [vmem:[#allocation2 + $0x1f0] sm:$0xff]
    %v171 = vld [vmem:[#allocation2 + $0x1f8] sm:$0xff]
    %v172 = vld [vmem:[#allocation2 + $0x200] sm:$0xff]
    %v173 = vld [vmem:[#allocation2 + $0x208] sm:$0xff]
    %v174 = vld [vmem:[#allocation2 + $0x210] sm:$0xff]
    %v175 = vld [vmem:[#allocation2 + $0x218] sm:$0xff]
    %v176 = vld [vmem:[#allocation2 + $0x220] sm:$0xff]
    %v177 = vld [vmem:[#allocation2 + $0x228] sm:$0xff]
    %v178 = vld [vmem:[#allocation2 + $0x230] sm:$0xff]
    %v179 = vld [vmem:[#allocation2 + $0x238] sm:$0xff]
    %v180 = vld [vmem:[#allocation2 + $0x240] sm:$0xff]
    %v181 = vld [vmem:[#allocation2 + $0x248] sm:$0xff]
    %v182 = vld [vmem:[#allocation2 + $0x250] sm:$0xff]
    %v183 = vld [vmem:[#allocation2 + $0x258] sm:$0xff]
    %v184 = vld [vmem:[#allocation2 + $0x260] sm:$0xff]
    %v185 = vld [vmem:[#allocation2 + $0x268] sm:$0xff]
    %v186 = vld [vmem:[#allocation2 + $0x270] sm:$0xff]
    %v187 = vld [vmem:[#allocation2 + $0x278] sm:$0xff]
    %v188 = vld [vmem:[#allocation2 + $0x280] sm:$0xff]
    %v189 = vld [vmem:[#allocation2 + $0x288] sm:$0xff]
    %v190 = vld [vmem:[#allocation2 + $0x290] sm:$0xff]
    %v191 = vld [vmem:[#allocation2 + $0x298] sm:$0xff]
    %v192 = vld [vmem:[#allocation2 + $0x2a0] sm:$0xff]
    %v193 = vld [vmem:[#allocation2 + $0x2a8] sm:$0xff]
    %v194 = vld [vmem:[#allocation2 + $0x2b0] sm:$0xff]
    %v195 = vld [vmem:[#allocation2 + $0x2b8] sm:$0xff]
    %v196 = vld [vmem:[#allocation2 + $0x2c0] sm:$0xff]
    %v197 = vld [vmem:[#allocation2 + $0x2c8] sm:$0xff]
    %v198 = vld [vmem:[#allocation2 + $0x2d0] sm:$0xff]
    %v199 = vld [vmem:[#allocation2 + $0x2d8] sm:$0xff]
    %v200 = vld [vmem:[#allocation2 + $0x2e0] sm:$0xff]
    %v201 = vld [vmem:[#allocation2 + $0x2e8] sm:$0xff]
    %v202 = vld [vmem:[#allocation2 + $0x2f0] sm:$0xff]
    %v203 = vld [vmem:[#allocation2 + $0x2f8] sm:$0xff]
    %v204 = vld [vmem:[#allocation2 + $0x300] sm:$0xff]
    %v205 = vld [vmem:[#allocation2 + $0x308] sm:$0xff]
    %v206 = vld [vmem:[#allocation2 + $0x310] sm:$0xff]
    %v207 = vld [vmem:[#allocation2 + $0x318] sm:$0xff]
    %v208 = vld [vmem:[#allocation2 + $0x320] sm:$0xff]
    %v209 = vld [vmem:[#allocation2 + $0x328] sm:$0xff]
    %v210 = vld [vmem:[#allocation2 + $0x330] sm:$0xff]
    %v211 = vld [vmem:[#allocation2 + $0x338] sm:$0xff]
    %v212 = vld [vmem:[#allocation2 + $0x340] sm:$0xff]
    %v213 = vld [vmem:[#allocation2 + $0x348] sm:$0xff]
    %v214 = vld [vmem:[#allocation2 + $0x350] sm:$0xff]
    %v215 = vld [vmem:[#allocation2 + $0x358] sm:$0xff]
    %v216 = vld [vmem:[#allocation2 + $0x360] sm:$0xff]
    %v217 = vld [vmem:[#allocation2 + $0x368] sm:$0xff]
    %v218 = vld [vmem:[#allocation2 + $0x370] sm:$0xff]
    %v219 = vld [vmem:[#allocation2 + $0x378] sm:$0xff]
    %v220 = vld [vmem:[#allocation2 + $0x380] sm:$0xff]
    %v221 = vld [vmem:[#allocation2 + $0x388] sm:$0xff]
    %v222 = vld [vmem:[#allocation2 + $0x390] sm:$0xff]
    %v223 = vld [vmem:[#allocation2 + $0x398] sm:$0xff]
    %v224 = vld [vmem:[#allocation2 + $0x3a0] sm:$0xff]
    %v225 = vld [vmem:[#allocation2 + $0x3a8] sm:$0xff]
    %v226 = vld [vmem:[#allocation2 + $0x3b0] sm:$0xff]
    %v227 = vld [vmem:[#allocation2 + $0x3b8] sm:$0xff]
    %v228 = vld [vmem:[#allocation2 + $0x3c0] sm:$0xff]
    %v229 = vld [vmem:[#allocation2 + $0x3c8] sm:$0xff]
    %v230 = vld [vmem:[#allocation2 + $0x3d0] sm:$0xff]
    %v231 = vld [vmem:[#allocation2 + $0x3d8] sm:$0xff]
    %v232 = vld [vmem:[#allocation2 + $0x3e0] sm:$0xff]
    %v233 = vld [vmem:[#allocation2 + $0x3e8] sm:$0xff]
    %v234 = vld [vmem:[#allocation2 + $0x3f0] sm:$0xff]
    %v235 = vld [vmem:[#allocation2 + $0x3f8] sm:$0xff]
    %v236 = vld [vmem:[#allocation2 + $0x400] sm:$0xff]
    %v237 = vld [vmem:[#allocation2 + $0x408] sm:$0xff]
    %v238 = vld [vmem:[#allocation2 + $0x410] sm:$0xff]
    %v239 = vld [vmem:[#allocation2 + $0x418] sm:$0xff]
    %v240 = vld [vmem:[#allocation2 + $0x420] sm:$0xff]
    %v241 = vld [vmem:[#allocation2 + $0x428] sm:$0xff]
    %v242 = vld [vmem:[#allocation2 + $0x430] sm:$0xff]
    %v243 = vld [vmem:[#allocation2 + $0x438] sm:$0xff]
    %v244 = vld [vmem:[#allocation2 + $0x440] sm:$0xff]
    %v245 = vld [vmem:[#allocation2 + $0x448] sm:$0xff]
    %v246 = vld [vmem:[#allocation2 + $0x450] sm:$0xff]
    %v247 = vld [vmem:[#allocation2 + $0x458] sm:$0xff]
    %v248 = vld [vmem:[#allocation2 + $0x460] sm:$0xff]
    %v249 = vld [vmem:[#allocation2 + $0x468] sm:$0xff]
    %v250 = vld [vmem:[#allocation2 + $0x470] sm:$0xff]
    %v251 = vld [vmem:[#allocation2 + $0x478] sm:$0xff]
    %v252 = vld [vmem:[#allocation2 + $0x480] sm:$0xff]
    %v253 = vld [vmem:[#allocation2 + $0x488] sm:$0xff]
    %v254 = vld [vmem:[#allocation2 + $0x490] sm:$0xff]
    %v255 = vld [vmem:[#allocation2 + $0x498] sm:$0xff]
    %v256 = vld [vmem:[#allocation2 + $0x4a0] sm:$0xff]
    %v257 = vld [vmem:[#allocation2 + $0x4a8] sm:$0xff]
    %v258 = vld [vmem:[#allocation2 + $0x4b0] sm:$0xff]
    %v259 = vld [vmem:[#allocation2 + $0x4b8] sm:$0xff]
    %v260 = vld [vmem:[#allocation2 + $0x4c0] sm:$0xff]
    %v261 = vld [vmem:[#allocation2 + $0x4c8] sm:$0xff]
    %v262 = vld [vmem:[#allocation2 + $0x4d0] sm:$0xff]
    %v263 = vld [vmem:[#allocation2 + $0x4d8] sm:$0xff]
    %v264 = vld [vmem:[#allocation2 + $0x4e0] sm:$0xff]
    %v265 = vld [vmem:[#allocation2 + $0x4e8] sm:$0xff]
    %v266 = vld [vmem:[#allocation2 + $0x4f0] sm:$0xff]
    %v267 = vld [vmem:[#allocation2 + $0x4f8] sm:$0xff]
    %v268 = vld [vmem:[#allocation2 + $0x500] sm:$0xff]
    %v269 = vld [vmem:[#allocation2 + $0x508] sm:$0xff]
    %v270 = vld [vmem:[#allocation2 + $0x510] sm:$0xff]
    %v271 = vld [vmem:[#allocation2 + $0x518] sm:$0xff]
    %v272 = vld [vmem:[#allocation2 + $0x520] sm:$0xff]
    %v273 = vld [vmem:[#allocation2 + $0x528] sm:$0xff]
    %v274 = vld [vmem:[#allocation2 + $0x530] sm:$0xff]
    %v275 = vld [vmem:[#allocation2 + $0x538] sm:$0xff]
    %v276 = vld [vmem:[#allocation2 + $0x540] sm:$0xff]
    %v277 = vld [vmem:[#allocation2 + $0x548] sm:$0xff]
    %v278 = vld [vmem:[#allocation2 + $0x550] sm:$0xff]
    %v279 = vld [vmem:[#allocation2 + $0x558] sm:$0xff]
    %v280 = vld [vmem:[#allocation2 + $0x560] sm:$0xff]
    %v281 = vld [vmem:[#allocation2 + $0x568] sm:$0xff]
    %v282 = vld [vmem:[#allocation2 + $0x570] sm:$0xff]
    %v283 = vld [vmem:[#allocation2 + $0x578] sm:$0xff]
    %v284 = vld [vmem:[#allocation2 + $0x580] sm:$0xff]
    %v285 = vld [vmem:[#allocation2 + $0x588] sm:$0xff]
    %v286 = vld [vmem:[#allocation2 + $0x590] sm:$0xff]
    %v287 = vld [vmem:[#allocation2 + $0x598] sm:$0xff]
    %v288 = vld [vmem:[#allocation2 + $0x5a0] sm:$0xff]
    %v289 = vld [vmem:[#allocation2 + $0x5a8] sm:$0xff]
    %v290 = vld [vmem:[#allocation2 + $0x5b0] sm:$0xff]
    %v291 = vld [vmem:[#allocation2 + $0x5b8] sm:$0xff]
    %v292 = vld [vmem:[#allocation2 + $0x5c0] sm:$0xff]
    %v293 = vld [vmem:[#allocation2 + $0x5c8] sm:$0xff]
    %v294 = vld [vmem:[#allocation2 + $0x5d0] sm:$0xff]
    %v295 = vld [vmem:[#allocation2 + $0x5d8] sm:$0xff]
    %v296 = vld [vmem:[#allocation2 + $0x5e0] sm:$0xff]
    %v297 = vld [vmem:[#allocation2 + $0x5e8] sm:$0xff]
    %v298 = vld [vmem:[#allocation2 + $0x5f0] sm:$0xff]
    %v299 = vld [vmem:[#allocation2 + $0x5f8] sm:$0xff]
    %v300 = vld [vmem:[#allocation2 + $0x600] sm:$0xff]
    %v301 = vld [vmem:[#allocation2 + $0x608] sm:$0xff]
    %v302 = vld [vmem:[#allocation2 + $0x610] sm:$0xff]
    %v303 = vld [vmem:[#allocation2 + $0x618] sm:$0xff]
    %v304 = vld [vmem:[#allocation2 + $0x620] sm:$0xff]
    %v305 = vld [vmem:[#allocation2 + $0x628] sm:$0xff]
    %v306 = vld [vmem:[#allocation2 + $0x630] sm:$0xff]
    %v307 = vld [vmem:[#allocation2 + $0x638] sm:$0xff]
    %v308 = vld [vmem:[#allocation2 + $0x640] sm:$0xff]
    %v309 = vld [vmem:[#allocation2 + $0x648] sm:$0xff]
    %v310 = vld [vmem:[#allocation2 + $0x650] sm:$0xff]
    %v311 = vld [vmem:[#allocation2 + $0x658] sm:$0xff]
    %v312 = vld [vmem:[#allocation2 + $0x660] sm:$0xff]
    %v313 = vld [vmem:[#allocation2 + $0x668] sm:$0xff]
    %v314 = vld [vmem:[#allocation2 + $0x670] sm:$0xff]
    %v315 = vld [vmem:[#allocation2 + $0x678] sm:$0xff]
    %v316 = vld [vmem:[#allocation2 + $0x680] sm:$0xff]
    %v317 = vld [vmem:[#allocation2 + $0x688] sm:$0xff]
    %v318 = vld [vmem:[#allocation2 + $0x690] sm:$0xff]
    %v319 = vld [vmem:[#allocation2 + $0x698] sm:$0xff]
    %v320 = vld [vmem:[#allocation2 + $0x6a0] sm:$0xff]
    %v321 = vld [vmem:[#allocation2 + $0x6a8] sm:$0xff]
    %v322 = vld [vmem:[#allocation2 + $0x6b0] sm:$0xff]
    %v323 = vld [vmem:[#allocation2 + $0x6b8] sm:$0xff]
    %v324 = vld [vmem:[#allocation2 + $0x6c0] sm:$0xff]
    %v325 = vld [vmem:[#allocation2 + $0x6c8] sm:$0xff]
    %v326 = vld [vmem:[#allocation2 + $0x6d0] sm:$0xff]
    %v327 = vld [vmem:[#allocation2 + $0x6d8] sm:$0xff]
    %v328 = vld [vmem:[#allocation2 + $0x6e0] sm:$0xff]
    %v329 = vld [vmem:[#allocation2 + $0x6e8] sm:$0xff]
    %v330 = vld [vmem:[#allocation2 + $0x6f0] sm:$0xff]
    %v331 = vld [vmem:[#allocation2 + $0x6f8] sm:$0xff]
    %v332 = vld [vmem:[#allocation2 + $0x700] sm:$0xff]
    %v333 = vld [vmem:[#allocation2 + $0x708] sm:$0xff]
    %v334 = vld [vmem:[#allocation2 + $0x710] sm:$0xff]
    %v335 = vld [vmem:[#allocation2 + $0x718] sm:$0xff]
    %v336 = vld [vmem:[#allocation2 + $0x720] sm:$0xff]
    %v337 = vld [vmem:[#allocation2 + $0x728] sm:$0xff]
    %v338 = vld [vmem:[#allocation2 + $0x730] sm:$0xff]
    %v339 = vld [vmem:[#allocation2 + $0x738] sm:$0xff]
    %v340 = vld [vmem:[#allocation2 + $0x740] sm:$0xff]
    %v341 = vld [vmem:[#allocation2 + $0x748] sm:$0xff]
    %v342 = vld [vmem:[#allocation2 + $0x750] sm:$0xff]
    %v343 = vld [vmem:[#allocation2 + $0x758] sm:$0xff]
    %v344 = vld [vmem:[#allocation2 + $0x760] sm:$0xff]
    %v345 = vld [vmem:[#allocation2 + $0x768] sm:$0xff]
    %v346 = vld [vmem:[#allocation2 + $0x770] sm:$0xff]
    %v347 = vld [vmem:[#allocation2 + $0x778] sm:$0xff]
    %v348 = vld [vmem:[#allocation2 + $0x780] sm:$0xff]
    %v349 = vld [vmem:[#allocation2 + $0x788] sm:$0xff]
    %v350 = vld [vmem:[#allocation2 + $0x790] sm:$0xff]
    %v351 = vld [vmem:[#allocation2 + $0x798] sm:$0xff]
    %v352 = vld [vmem:[#allocation2 + $0x7a0] sm:$0xff]
    %v353 = vld [vmem:[#allocation2 + $0x7a8] sm:$0xff]
    %v354 = vld [vmem:[#allocation2 + $0x7b0] sm:$0xff]
    %v355 = vld [vmem:[#allocation2 + $0x7b8] sm:$0xff]
    %v356 = vld [vmem:[#allocation2 + $0x7c0] sm:$0xff]
    %v357 = vld [vmem:[#allocation2 + $0x7c8] sm:$0xff]
    %v358 = vld [vmem:[#allocation2 + $0x7d0] sm:$0xff]
    %v359 = vld [vmem:[#allocation2 + $0x7d8] sm:$0xff]
    %v360 = vld [vmem:[#allocation2 + $0x7e0] sm:$0xff]
    %v361 = vld [vmem:[#allocation2 + $0x7e8] sm:$0xff]
    %v362 = vld [vmem:[#allocation2 + $0x7f0] sm:$0xff]
    %v363 = vld [vmem:[#allocation2 + $0x7f8] sm:$0xff]
    %v364 = vld [vmem:[#allocation2 + $0x800] sm:$0xff]
    %v365 = vld [vmem:[#allocation2 + $0x808] sm:$0xff]
    %v366 = vld [vmem:[#allocation2 + $0x810] sm:$0xff]
    %v367 = vld [vmem:[#allocation2 + $0x818] sm:$0xff]
    %v368 = vld [vmem:[#allocation2 + $0x820] sm:$0xff]
    %v369 = vld [vmem:[#allocation2 + $0x828] sm:$0xff]
    %v370 = vld [vmem:[#allocation2 + $0x830] sm:$0xff]
    %v371 = vld [vmem:[#allocation2 + $0x838] sm:$0xff]
    %v372 = vld [vmem:[#allocation2 + $0x840] sm:$0xff]
    %v373 = vld [vmem:[#allocation2 + $0x848] sm:$0xff]
    %v374 = vld [vmem:[#allocation2 + $0x850] sm:$0xff]
    %v375 = vld [vmem:[#allocation2 + $0x858] sm:$0xff]
    %v376 = vld [vmem:[#allocation2 + $0x860] sm:$0xff]
    %v377 = vld [vmem:[#allocation2 + $0x868] sm:$0xff]
    %v378 = vld [vmem:[#allocation2 + $0x870] sm:$0xff]
    %v379 = vld [vmem:[#allocation2 + $0x878] sm:$0xff]
    %v380 = vld [vmem:[#allocation2 + $0x880] sm:$0xff]
    %v381 = vld [vmem:[#allocation2 + $0x888] sm:$0xff]
    %v382 = vld [vmem:[#allocation2 + $0x890] sm:$0xff]
    %v383 = vld [vmem:[#allocation2 + $0x898] sm:$0xff]
    %v384 = vld [vmem:[#allocation2 + $0x8a0] sm:$0xff]
    %v385 = vld [vmem:[#allocation2 + $0x8a8] sm:$0xff]
    %v386 = vld [vmem:[#allocation2 + $0x8b0] sm:$0xff]
    %v387 = vld [vmem:[#allocation2 + $0x8b8] sm:$0xff]
    %v388 = vld [vmem:[#allocation2 + $0x8c0] sm:$0xff]
    %v389 = vld [vmem:[#allocation2 + $0x8c8] sm:$0xff]
    %v390 = vld [vmem:[#allocation2 + $0x8d0] sm:$0xff]
    %v391 = vld [vmem:[#allocation2 + $0x8d8] sm:$0xff]
    %v392 = vld [vmem:[#allocation2 + $0x8e0] sm:$0xff]
    %v393 = vld [vmem:[#allocation2 + $0x8e8] sm:$0xff]
    %v394 = vld [vmem:[#allocation2 + $0x8f0] sm:$0xff]
    %v395 = vld [vmem:[#allocation2 + $0x8f8] sm:$0xff]
    %v396 = vld [vmem:[#allocation2 + $0x900] sm:$0xff]
    %v397 = vld [vmem:[#allocation2 + $0x908] sm:$0xff]
    %v398 = vld [vmem:[#allocation2 + $0x910] sm:$0xff]
    %v399 = vld [vmem:[#allocation2 + $0x918] sm:$0xff]
    %v400 = vld [vmem:[#allocation2 + $0x920] sm:$0xff]
    %v401 = vld [vmem:[#allocation2 + $0x928] sm:$0xff]
    %v402 = vld [vmem:[#allocation2 + $0x930] sm:$0xff]
    %v403 = vld [vmem:[#allocation2 + $0x938] sm:$0xff]
    %v404 = vld [vmem:[#allocation2 + $0x940] sm:$0xff]
    %v405 = vld [vmem:[#allocation2 + $0x948] sm:$0xff]
    %v406 = vld [vmem:[#allocation2 + $0x950] sm:$0xff]
    %v407 = vld [vmem:[#allocation2 + $0x958] sm:$0xff]
    %v408 = vld [vmem:[#allocation2 + $0x960] sm:$0xff]
    %v409 = vld [vmem:[#allocation2 + $0x968] sm:$0xff]
    %v410 = vld [vmem:[#allocation2 + $0x970] sm:$0xff]
    %v411 = vld [vmem:[#allocation2 + $0x978] sm:$0xff]
    %v412 = vld [vmem:[#allocation2 + $0x980] sm:$0xff]
    %v413 = vld [vmem:[#allocation2 + $0x988] sm:$0xff]
    %v414 = vld [vmem:[#allocation2 + $0x990] sm:$0xff]
    %v415 = vld [vmem:[#allocation2 + $0x998] sm:$0xff]
    %v416 = vld [vmem:[#allocation2 + $0x9a0] sm:$0xff]
    %v417 = vld [vmem:[#allocation2 + $0x9a8] sm:$0xff]
    %v418 = vld [vmem:[#allocation2 + $0x9b0] sm:$0xff]
    %v419 = vld [vmem:[#allocation2 + $0x9b8] sm:$0xff]
    %v420 = vld [vmem:[#allocation2 + $0x9c0] sm:$0xff]
    %v421 = vld [vmem:[#allocation2 + $0x9c8] sm:$0xff]
    %v422 = vld [vmem:[#allocation2 + $0x9d0] sm:$0xff]
    %v423 = vld [vmem:[#allocation2 + $0x9d8] sm:$0xff]
    %v424 = vld [vmem:[#allocation2 + $0x9e0] sm:$0xff]
    %v425 = vld [vmem:[#allocation2 + $0x9e8] sm:$0xff]
    %v426 = vld [vmem:[#allocation2 + $0x9f0] sm:$0xff]
    %v427 = vld [vmem:[#allocation2 + $0x9f8] sm:$0xff]
    %v428 = vld [vmem:[#allocation2 + $0xa00] sm:$0xff]
    %v429 = vld [vmem:[#allocation2 + $0xa08] sm:$0xff]
    %v430 = vld [vmem:[#allocation2 + $0xa10] sm:$0xff]
    %v431 = vld [vmem:[#allocation2 + $0xa18] sm:$0xff]
    %v432 = vld [vmem:[#allocation2 + $0xa20] sm:$0xff]
    %v433 = vld [vmem:[#allocation2 + $0xa28] sm:$0xff]
    %v434 = vld [vmem:[#allocation2 + $0xa30] sm:$0xff]
    %v435 = vld [vmem:[#allocation2 + $0xa38] sm:$0xff]
    %v436 = vld [vmem:[#allocation2 + $0xa40] sm:$0xff]
    %v437 = vld [vmem:[#allocation2 + $0xa48] sm:$0xff]
    %v438 = vld [vmem:[#allocation2 + $0xa50] sm:$0xff]
    %v439 = vld [vmem:[#allocation2 + $0xa58] sm:$0xff]
    %v440 = vld [vmem:[#allocation2 + $0xa60] sm:$0xff]
    %v441 = vld [vmem:[#allocation2 + $0xa68] sm:$0xff]
    %v442 = vld [vmem:[#allocation2 + $0xa70] sm:$0xff]
    %v443 = vld [vmem:[#allocation2 + $0xa78] sm:$0xff]
    %v444 = vld [vmem:[#allocation2 + $0xa80] sm:$0xff]
    %v445 = vld [vmem:[#allocation2 + $0xa88] sm:$0xff]
    %v446 = vld [vmem:[#allocation2 + $0xa90] sm:$0xff]
    %v447 = vld [vmem:[#allocation2 + $0xa98] sm:$0xff]
    %v448 = vld [vmem:[#allocation2 + $0xaa0] sm:$0xff]
    %v449 = vld [vmem:[#allocation2 + $0xaa8] sm:$0xff]
    %v450 = vld [vmem:[#allocation2 + $0xab0] sm:$0xff]
    %v451 = vld [vmem:[#allocation2 + $0xab8] sm:$0xff]
    %v452 = vld [vmem:[#allocation2 + $0xac0] sm:$0xff]
    %v453 = vld [vmem:[#allocation2 + $0xac8] sm:$0xff]
    %v454 = vld [vmem:[#allocation2 + $0xad0] sm:$0xff]
    %v455 = vld [vmem:[#allocation2 + $0xad8] sm:$0xff]
    %v456 = vld [vmem:[#allocation2 + $0xae0] sm:$0xff]
    %v457 = vld [vmem:[#allocation2 + $0xae8] sm:$0xff]
    %v458 = vld [vmem:[#allocation2 + $0xaf0] sm:$0xff]
    %v459 = vld [vmem:[#allocation2 + $0xaf8] sm:$0xff]
    %v460 = vld [vmem:[#allocation2 + $0xb00] sm:$0xff]
    %v461 = vld [vmem:[#allocation2 + $0xb08] sm:$0xff]
    %v462 = vld [vmem:[#allocation2 + $0xb10] sm:$0xff]
    %v463 = vld [vmem:[#allocation2 + $0xb18] sm:$0xff]
    %v464 = vld [vmem:[#allocation2 + $0xb20] sm:$0xff]
    %v465 = vld [vmem:[#allocation2 + $0xb28] sm:$0xff]
    %v466 = vld [vmem:[#allocation2 + $0xb30] sm:$0xff]
    %v467 = vld [vmem:[#allocation2 + $0xb38] sm:$0xff]
    %v468 = vld [vmem:[#allocation2 + $0xb40] sm:$0xff]
    %v469 = vld [vmem:[#allocation2 + $0xb48] sm:$0xff]
    %v470 = vld [vmem:[#allocation2 + $0xb50] sm:$0xff]
    %v471 = vld [vmem:[#allocation2 + $0xb58] sm:$0xff]
    %v472 = vld [vmem:[#allocation2 + $0xb60] sm:$0xff]
    %v473 = vld [vmem:[#allocation2 + $0xb68] sm:$0xff]
    %v474 = vld [vmem:[#allocation2 + $0xb70] sm:$0xff]
    %v475 = vld [vmem:[#allocation2 + $0xb78] sm:$0xff]
    %v476 = vld [vmem:[#allocation2 + $0xb80] sm:$0xff]
    %v477 = vld [vmem:[#allocation2 + $0xb88] sm:$0xff]
    %v478 = vld [vmem:[#allocation2 + $0xb90] sm:$0xff]
    %v479 = vld [vmem:[#allocation2 + $0xb98] sm:$0xff]
    %v480 = vld [vmem:[#allocation2 + $0xba0] sm:$0xff]
    %v481 = vld [vmem:[#allocation2 + $0xba8] sm:$0xff]
    %v482 = vld [vmem:[#allocation2 + $0xbb0] sm:$0xff]
    %v483 = vld [vmem:[#allocation2 + $0xbb8] sm:$0xff]
    %v484 = vld [vmem:[#allocation2 + $0xbc0] sm:$0xff]
    %v485 = vld [vmem:[#allocation2 + $0xbc8] sm:$0xff]
    %v486 = vld [vmem:[#allocation2 + $0xbd0] sm:$0xff]
    %v487 = vld [vmem:[#allocation2 + $0xbd8] sm:$0xff]
    %v488 = vld [vmem:[#allocation2 + $0xbe0] sm:$0xff]
    %v489 = vld [vmem:[#allocation2 + $0xbe8] sm:$0xff]
    %v490 = vld [vmem:[#allocation2 + $0xbf0] sm:$0xff]
    %v491 = vld [vmem:[#allocation2 + $0xbf8] sm:$0xff]
    %v492 = vld [vmem:[#allocation2 + $0xc00] sm:$0xff]
    %v493 = vld [vmem:[#allocation2 + $0xc08] sm:$0xff]
    %v494 = vld [vmem:[#allocation2 + $0xc10] sm:$0xff]
    %v495 = vld [vmem:[#allocation2 + $0xc18] sm:$0xff]
    %v496 = vld [vmem:[#allocation2 + $0xc20] sm:$0xff]
    %v497 = vld [vmem:[#allocation2 + $0xc28] sm:$0xff]
    %v498 = vld [vmem:[#allocation2 + $0xc30] sm:$0xff]
    %v499 = vld [vmem:[#allocation2 + $0xc38] sm:$0xff]
    %v500 = vld [vmem:[#allocation2 + $0xc40] sm:$0xff]
    %v501 = vld [vmem:[#allocation2 + $0xc48] sm:$0xff]
    %v502 = vld [vmem:[#allocation2 + $0xc50] sm:$0xff]
    %v503 = vld [vmem:[#allocation2 + $0xc58] sm:$0xff]
    %v504 = vld [vmem:[#allocation2 + $0xc60] sm:$0xff]
    %v505 = vld [vmem:[#allocation2 + $0xc68] sm:$0xff]
    %v506 = vld [vmem:[#allocation2 + $0xc70] sm:$0xff]
    %v507 = vld [vmem:[#allocation2 + $0xc78] sm:$0xff]
    %v508 = vld [vmem:[#allocation2 + $0xc80] sm:$0xff]
    %v509 = vld [vmem:[#allocation2 + $0xc88] sm:$0xff]
    %v510 = vld [vmem:[#allocation2 + $0xc90] sm:$0xff]
    %v511 = vld [vmem:[#allocation2 + $0xc98] sm:$0xff]
    %v512 = vld [vmem:[#allocation2 + $0xca0] sm:$0xff]
    %v513 = vld [vmem:[#allocation2 + $0xca8] sm:$0xff]
    %v514 = vld [vmem:[#allocation2 + $0xcb0] sm:$0xff]
    %v515 = vld [vmem:[#allocation2 + $0xcb8] sm:$0xff]
    %v516 = vld [vmem:[#allocation2 + $0xcc0] sm:$0xff]
    %v517 = vld [vmem:[#allocation2 + $0xcc8] sm:$0xff]
    %v518 = vld [vmem:[#allocation2 + $0xcd0] sm:$0xff]
    %v519 = vld [vmem:[#allocation2 + $0xcd8] sm:$0xff]
    %v520 = vld [vmem:[#allocation2 + $0xce0] sm:$0xff]
    %v521 = vld [vmem:[#allocation2 + $0xce8] sm:$0xff]
    %v522 = vld [vmem:[#allocation2 + $0xcf0] sm:$0xff]
    %v523 = vld [vmem:[#allocation2 + $0xcf8] sm:$0xff]
    %v524 = vld [vmem:[#allocation2 + $0xd00] sm:$0xff]
    %v525 = vld [vmem:[#allocation2 + $0xd08] sm:$0xff]
    %v526 = vld [vmem:[#allocation2 + $0xd10] sm:$0xff]
    %v527 = vld [vmem:[#allocation2 + $0xd18] sm:$0xff]
    %v528 = vld [vmem:[#allocation2 + $0xd20] sm:$0xff]
    %v529 = vld [vmem:[#allocation2 + $0xd28] sm:$0xff]
    %v530 = vld [vmem:[#allocation2 + $0xd30] sm:$0xff]
    %v531 = vld [vmem:[#allocation2 + $0xd38] sm:$0xff]
    %v532 = vld [vmem:[#allocation2 + $0xd40] sm:$0xff]
    %v533 = vld [vmem:[#allocation2 + $0xd48] sm:$0xff]
    %v534 = vld [vmem:[#allocation2 + $0xd50] sm:$0xff]
    %v535 = vld [vmem:[#allocation2 + $0xd58] sm:$0xff]
    %v536 = vld [vmem:[#allocation2 + $0xd60] sm:$0xff]
    %v537 = vld [vmem:[#allocation2 + $0xd68] sm:$0xff]
    %v538 = vld [vmem:[#allocation2 + $0xd70] sm:$0xff]
    %v539 = vld [vmem:[#allocation2 + $0xd78] sm:$0xff]
    %v540 = vld [vmem:[#allocation2 + $0xd80] sm:$0xff]
    %v541 = vld [vmem:[#allocation2 + $0xd88] sm:$0xff]
    %v542 = vld [vmem:[#allocation2 + $0xd90] sm:$0xff]
    %v543 = vld [vmem:[#allocation2 + $0xd98] sm:$0xff]
    %v544 = vld [vmem:[#allocation2 + $0xda0] sm:$0xff]
    %v545 = vld [vmem:[#allocation2 + $0xda8] sm:$0xff]
    %v546 = vld [vmem:[#allocation2 + $0xdb0] sm:$0xff]
    %v547 = vld [vmem:[#allocation2 + $0xdb8] sm:$0xff]
    %v548 = vld [vmem:[#allocation2 + $0xdc0] sm:$0xff]
    %v549 = vld [vmem:[#allocation2 + $0xdc8] sm:$0xff]
    %v550 = vld [vmem:[#allocation2 + $0xdd0] sm:$0xff]
    %v551 = vld [vmem:[#allocation2 + $0xdd8] sm:$0xff]
    %v552 = vld [vmem:[#allocation2 + $0xde0] sm:$0xff]
    %v553 = vld [vmem:[#allocation2 + $0xde8] sm:$0xff]
    %v554 = vld [vmem:[#allocation2 + $0xdf0] sm:$0xff]
    %v555 = vld [vmem:[#allocation2 + $0xdf8] sm:$0xff]
    %v556 = vld [vmem:[#allocation5] sm:$0xff]
    %v558 = vlaneseq
    %v559 = vshrl.u32 %v558, 7
    %v560 = vsub.s32 0, %v559
    %v561 = vrot.slane %v556, %v560
    %v562 = vlaneseq
    %v563 = vshrl.u32 %v562, 7
    %v564 = vsub.s32 1, %v563
    %v565 = vrot.slane %v556, %v564
    %v566 = vlaneseq
    %v567 = vshrl.u32 %v566, 7
    %v568 = vsub.s32 2, %v567
    %v569 = vrot.slane %v556, %v568
    %v570 = vlaneseq
    %v571 = vshrl.u32 %v570, 7
    %v572 = vsub.s32 3, %v571
    %v573 = vrot.slane %v556, %v572
    %v574 = vlaneseq
    %v575 = vshrl.u32 %v574, 7
    %v576 = vsub.s32 4, %v575
    %v577 = vrot.slane %v556, %v576
    %v578 = vlaneseq
    %v579 = vshrl.u32 %v578, 7
    %v580 = vsub.s32 5, %v579
    %v581 = vrot.slane %v556, %v580
    %v582 = vlaneseq
    %v583 = vshrl.u32 %v582, 7
    %v584 = vsub.s32 6, %v583
    %v585 = vrot.slane %v556, %v584
    %v586 = vlaneseq
    %v587 = vshrl.u32 %v586, 7
    %v588 = vsub.s32 7, %v587
    %v589 = vrot.slane %v556, %v588
    %v602 = vunpack.c.l.b16 %v104
    %v603 = vunpack.c.h.b16 %v104
    %v604 = vunpack.c.l.b16 %v105
    %v605 = vunpack.c.h.b16 %v105
    %v606 = vunpack.c.l.b16 %v106
    %v607 = vunpack.c.h.b16 %v106
    %v608 = vunpack.c.l.b16 %v107
    %v609 = vpack.c.b16 %v602, %v602
    %v610 = vpack.c.b16 %v603, %v603
    %v611 = vpack.c.b16 %v604, %v604
    %v612 = vpack.c.b16 %v605, %v605
    %v613 = vpack.c.b16 %v606, %v606
    %v614 = vpack.c.b16 %v607, %v607
    %v615 = vpack.c.b16 %v608, %v608
    %v1071 = vunpack.c.l.b16 %v108
    %v1072 = vunpack.c.h.b16 %v108
    %v1073 = vunpack.c.l.b16 %v109
    %v1074 = vunpack.c.h.b16 %v109
    %v1075 = vunpack.c.l.b16 %v110
    %v1076 = vunpack.c.h.b16 %v110
    %v1077 = vunpack.c.l.b16 %v111
    %v1078 = vunpack.c.h.b16 %v111
    %v1079 = vunpack.c.l.b16 %v112
    %v1080 = vunpack.c.h.b16 %v112
    %v1081 = vunpack.c.l.b16 %v113
    %v1082 = vunpack.c.h.b16 %v113
    %v1083 = vunpack.c.l.b16 %v114
    %v1084 = vunpack.c.h.b16 %v114
    %v1085 = vunpack.c.l.b16 %v115
    %v1086 = vunpack.c.h.b16 %v115
    %v1087 = vunpack.c.l.b16 %v116
    %v1088 = vunpack.c.h.b16 %v116
    %v1089 = vunpack.c.l.b16 %v117
    %v1090 = vunpack.c.h.b16 %v117
    %v1091 = vunpack.c.l.b16 %v118
    %v1092 = vunpack.c.h.b16 %v118
    %v1093 = vunpack.c.l.b16 %v119
    %v1094 = vunpack.c.h.b16 %v119
    %v1095 = vunpack.c.l.b16 %v120
    %v1096 = vunpack.c.h.b16 %v120
    %v1097 = vunpack.c.l.b16 %v121
    %v1098 = vunpack.c.h.b16 %v121
    %v1099 = vunpack.c.l.b16 %v122
    %v1100 = vunpack.c.h.b16 %v122
    %v1101 = vunpack.c.l.b16 %v123
    %v1102 = vunpack.c.h.b16 %v123
    %v1103 = vunpack.c.l.b16 %v124
    %v1104 = vunpack.c.h.b16 %v124
    %v1105 = vunpack.c.l.b16 %v125
    %v1106 = vunpack.c.h.b16 %v125
    %v1107 = vunpack.c.l.b16 %v126
    %v1108 = vunpack.c.h.b16 %v126
    %v1109 = vunpack.c.l.b16 %v127
    %v1110 = vunpack.c.h.b16 %v127
    %v1111 = vunpack.c.l.b16 %v128
    %v1112 = vunpack.c.h.b16 %v128
    %v1113 = vunpack.c.l.b16 %v129
    %v1114 = vunpack.c.h.b16 %v129
    %v1115 = vunpack.c.l.b16 %v130
    %v1116 = vunpack.c.h.b16 %v130
    %v1117 = vunpack.c.l.b16 %v131
    %v1118 = vunpack.c.h.b16 %v131
    %v1119 = vunpack.c.l.b16 %v132
    %v1120 = vunpack.c.h.b16 %v132
    %v1121 = vunpack.c.l.b16 %v133
    %v1122 = vunpack.c.h.b16 %v133
    %v1123 = vunpack.c.l.b16 %v134
    %v1124 = vunpack.c.h.b16 %v134
    %v1125 = vunpack.c.l.b16 %v135
    %v1126 = vunpack.c.h.b16 %v135
    %v1127 = vunpack.c.l.b16 %v136
    %v1128 = vunpack.c.h.b16 %v136
    %v1129 = vunpack.c.l.b16 %v137
    %v1130 = vunpack.c.h.b16 %v137
    %v1131 = vunpack.c.l.b16 %v138
    %v1132 = vunpack.c.h.b16 %v138
    %v1133 = vunpack.c.l.b16 %v139
    %v1134 = vunpack.c.h.b16 %v139
    %v1135 = vunpack.c.l.b16 %v140
    %v1136 = vunpack.c.h.b16 %v140
    %v1137 = vunpack.c.l.b16 %v141
    %v1138 = vunpack.c.h.b16 %v141
    %v1139 = vunpack.c.l.b16 %v142
    %v1140 = vunpack.c.h.b16 %v142
    %v1141 = vunpack.c.l.b16 %v143
    %v1142 = vunpack.c.h.b16 %v143
    %v1143 = vunpack.c.l.b16 %v144
    %v1144 = vunpack.c.h.b16 %v144
    %v1145 = vunpack.c.l.b16 %v145
    %v1146 = vunpack.c.h.b16 %v145
    %v1147 = vunpack.c.l.b16 %v146
    %v1148 = vunpack.c.h.b16 %v146
    %v1149 = vunpack.c.l.b16 %v147
    %v1150 = vunpack.c.h.b16 %v147
    %v1151 = vunpack.c.l.b16 %v148
    %v1152 = vunpack.c.h.b16 %v148
    %v1153 = vunpack.c.l.b16 %v149
    %v1154 = vunpack.c.h.b16 %v149
    %v1155 = vunpack.c.l.b16 %v150
    %v1156 = vunpack.c.h.b16 %v150
    %v1157 = vunpack.c.l.b16 %v151
    %v1158 = vunpack.c.h.b16 %v151
    %v1159 = vunpack.c.l.b16 %v152
    %v1160 = vunpack.c.h.b16 %v152
    %v1161 = vunpack.c.l.b16 %v153
    %v1162 = vunpack.c.h.b16 %v153
    %v1163 = vunpack.c.l.b16 %v154
    %v1164 = vunpack.c.h.b16 %v154
    %v1165 = vunpack.c.l.b16 %v155
    %v1166 = vunpack.c.h.b16 %v155
    %v1167 = vunpack.c.l.b16 %v156
    %v1168 = vunpack.c.h.b16 %v156
    %v1169 = vunpack.c.l.b16 %v157
    %v1170 = vunpack.c.h.b16 %v157
    %v1171 = vunpack.c.l.b16 %v158
    %v1172 = vunpack.c.h.b16 %v158
    %v1173 = vunpack.c.l.b16 %v159
    %v1174 = vunpack.c.h.b16 %v159
    %v1175 = vunpack.c.l.b16 %v160
    %v1176 = vunpack.c.h.b16 %v160
    %v1177 = vunpack.c.l.b16 %v161
    %v1178 = vunpack.c.h.b16 %v161
    %v1179 = vunpack.c.l.b16 %v162
    %v1180 = vunpack.c.h.b16 %v162
    %v1181 = vunpack.c.l.b16 %v163
    %v1182 = vunpack.c.h.b16 %v163
    %v1183 = vunpack.c.l.b16 %v164
    %v1184 = vunpack.c.h.b16 %v164
    %v1185 = vunpack.c.l.b16 %v165
    %v1186 = vunpack.c.h.b16 %v165
    %v1187 = vunpack.c.l.b16 %v166
    %v1188 = vunpack.c.h.b16 %v166
    %v1189 = vunpack.c.l.b16 %v167
    %v1190 = vunpack.c.h.b16 %v167
    %v1191 = vunpack.c.l.b16 %v168
    %v1192 = vunpack.c.h.b16 %v168
    %v1193 = vunpack.c.l.b16 %v169
    %v1194 = vunpack.c.h.b16 %v169
    %v1195 = vunpack.c.l.b16 %v170
    %v1196 = vunpack.c.h.b16 %v170
    %v1197 = vunpack.c.l.b16 %v171
    %v1198 = vunpack.c.h.b16 %v171
    %v1199 = vunpack.c.l.b16 %v172
    %v1200 = vunpack.c.h.b16 %v172
    %v1201 = vunpack.c.l.b16 %v173
    %v1202 = vunpack.c.h.b16 %v173
    %v1203 = vunpack.c.l.b16 %v174
    %v1204 = vunpack.c.h.b16 %v174
    %v1205 = vunpack.c.l.b16 %v175
    %v1206 = vunpack.c.h.b16 %v175
    %v1207 = vunpack.c.l.b16 %v176
    %v1208 = vunpack.c.h.b16 %v176
    %v1209 = vunpack.c.l.b16 %v177
    %v1210 = vunpack.c.h.b16 %v177
    %v1211 = vunpack.c.l.b16 %v178
    %v1212 = vunpack.c.h.b16 %v178
    %v1213 = vunpack.c.l.b16 %v179
    %v1214 = vunpack.c.h.b16 %v179
    %v1215 = vunpack.c.l.b16 %v180
    %v1216 = vunpack.c.h.b16 %v180
    %v1217 = vunpack.c.l.b16 %v181
    %v1218 = vunpack.c.h.b16 %v181
    %v1219 = vunpack.c.l.b16 %v182
    %v1220 = vunpack.c.h.b16 %v182
    %v1221 = vunpack.c.l.b16 %v183
    %v1222 = vunpack.c.h.b16 %v183
    %v1223 = vunpack.c.l.b16 %v184
    %v1224 = vunpack.c.h.b16 %v184
    %v1225 = vunpack.c.l.b16 %v185
    %v1226 = vunpack.c.h.b16 %v185
    %v1227 = vunpack.c.l.b16 %v186
    %v1228 = vunpack.c.h.b16 %v186
    %v1229 = vunpack.c.l.b16 %v187
    %v1230 = vunpack.c.h.b16 %v187
    %v1231 = vunpack.c.l.b16 %v188
    %v1232 = vunpack.c.h.b16 %v188
    %v1233 = vunpack.c.l.b16 %v189
    %v1234 = vunpack.c.h.b16 %v189
    %v1235 = vunpack.c.l.b16 %v190
    %v1236 = vunpack.c.h.b16 %v190
    %v1237 = vunpack.c.l.b16 %v191
    %v1238 = vunpack.c.h.b16 %v191
    %v1239 = vunpack.c.l.b16 %v192
    %v1240 = vunpack.c.h.b16 %v192
    %v1241 = vunpack.c.l.b16 %v193
    %v1242 = vunpack.c.h.b16 %v193
    %v1243 = vunpack.c.l.b16 %v194
    %v1244 = vunpack.c.h.b16 %v194
    %v1245 = vunpack.c.l.b16 %v195
    %v1246 = vunpack.c.h.b16 %v195
    %v1247 = vunpack.c.l.b16 %v196
    %v1248 = vunpack.c.h.b16 %v196
    %v1249 = vunpack.c.l.b16 %v197
    %v1250 = vunpack.c.h.b16 %v197
    %v1251 = vunpack.c.l.b16 %v198
    %v1252 = vunpack.c.h.b16 %v198
    %v1253 = vunpack.c.l.b16 %v199
    %v1254 = vunpack.c.h.b16 %v199
    %v1255 = vunpack.c.l.b16 %v200
    %v1256 = vunpack.c.h.b16 %v200
    %v1257 = vunpack.c.l.b16 %v201
    %v1258 = vunpack.c.h.b16 %v201
    %v1259 = vunpack.c.l.b16 %v202
    %v1260 = vunpack.c.h.b16 %v202
    %v1261 = vunpack.c.l.b16 %v203
    %v1262 = vunpack.c.h.b16 %v203
    %v1263 = vunpack.c.l.b16 %v204
    %v1264 = vunpack.c.h.b16 %v204
    %v1265 = vunpack.c.l.b16 %v205
    %v1266 = vunpack.c.h.b16 %v205
    %v1267 = vunpack.c.l.b16 %v206
    %v1268 = vunpack.c.h.b16 %v206
    %v1269 = vunpack.c.l.b16 %v207
    %v1270 = vunpack.c.h.b16 %v207
    %v1271 = vunpack.c.l.b16 %v208
    %v1272 = vunpack.c.h.b16 %v208
    %v1273 = vunpack.c.l.b16 %v209
    %v1274 = vunpack.c.h.b16 %v209
    %v1275 = vunpack.c.l.b16 %v210
    %v1276 = vunpack.c.h.b16 %v210
    %v1277 = vunpack.c.l.b16 %v211
    %v1278 = vunpack.c.h.b16 %v211
    %v1279 = vunpack.c.l.b16 %v212
    %v1280 = vunpack.c.h.b16 %v212
    %v1281 = vunpack.c.l.b16 %v213
    %v1282 = vunpack.c.h.b16 %v213
    %v1283 = vunpack.c.l.b16 %v214
    %v1284 = vunpack.c.h.b16 %v214
    %v1285 = vunpack.c.l.b16 %v215
    %v1286 = vunpack.c.h.b16 %v215
    %v1287 = vunpack.c.l.b16 %v216
    %v1288 = vunpack.c.h.b16 %v216
    %v1289 = vunpack.c.l.b16 %v217
    %v1290 = vunpack.c.h.b16 %v217
    %v1291 = vunpack.c.l.b16 %v218
    %v1292 = vunpack.c.h.b16 %v218
    %v1293 = vunpack.c.l.b16 %v219
    %v1294 = vunpack.c.h.b16 %v219
    %v1295 = vunpack.c.l.b16 %v220
    %v1296 = vunpack.c.h.b16 %v220
    %v1297 = vunpack.c.l.b16 %v221
    %v1298 = vunpack.c.h.b16 %v221
    %v1299 = vunpack.c.l.b16 %v222
    %v1300 = vunpack.c.h.b16 %v222
    %v1301 = vunpack.c.l.b16 %v223
    %v1302 = vunpack.c.h.b16 %v223
    %v1303 = vunpack.c.l.b16 %v224
    %v1304 = vunpack.c.h.b16 %v224
    %v1305 = vunpack.c.l.b16 %v225
    %v1306 = vunpack.c.h.b16 %v225
    %v1307 = vunpack.c.l.b16 %v226
    %v1308 = vunpack.c.h.b16 %v226
    %v1309 = vunpack.c.l.b16 %v227
    %v1310 = vunpack.c.h.b16 %v227
    %v1311 = vunpack.c.l.b16 %v228
    %v1312 = vunpack.c.h.b16 %v228
    %v1313 = vunpack.c.l.b16 %v229
    %v1314 = vunpack.c.h.b16 %v229
    %v1315 = vunpack.c.l.b16 %v230
    %v1316 = vunpack.c.h.b16 %v230
    %v1317 = vunpack.c.l.b16 %v231
    %v1318 = vunpack.c.h.b16 %v231
    %v1319 = vunpack.c.l.b16 %v232
    %v1320 = vunpack.c.h.b16 %v232
    %v1321 = vunpack.c.l.b16 %v233
    %v1322 = vunpack.c.h.b16 %v233
    %v1323 = vunpack.c.l.b16 %v234
    %v1324 = vunpack.c.h.b16 %v234
    %v1325 = vunpack.c.l.b16 %v235
    %v1326 = vunpack.c.h.b16 %v235
    %v1327 = vunpack.c.l.b16 %v236
    %v1328 = vunpack.c.h.b16 %v236
    %v1329 = vunpack.c.l.b16 %v237
    %v1330 = vunpack.c.h.b16 %v237
    %v1331 = vunpack.c.l.b16 %v238
    %v1332 = vunpack.c.h.b16 %v238
    %v1333 = vunpack.c.l.b16 %v239
    %v1334 = vunpack.c.h.b16 %v239
    %v1335 = vunpack.c.l.b16 %v240
    %v1336 = vunpack.c.h.b16 %v240
    %v1337 = vunpack.c.l.b16 %v241
    %v1338 = vunpack.c.h.b16 %v241
    %v1339 = vunpack.c.l.b16 %v242
    %v1340 = vunpack.c.h.b16 %v242
    %v1341 = vunpack.c.l.b16 %v243
    %v1342 = vunpack.c.h.b16 %v243
    %v1343 = vunpack.c.l.b16 %v244
    %v1344 = vunpack.c.h.b16 %v244
    %v1345 = vunpack.c.l.b16 %v245
    %v1346 = vunpack.c.h.b16 %v245
    %v1347 = vunpack.c.l.b16 %v246
    %v1348 = vunpack.c.h.b16 %v246
    %v1349 = vunpack.c.l.b16 %v247
    %v1350 = vunpack.c.h.b16 %v247
    %v1351 = vunpack.c.l.b16 %v248
    %v1352 = vunpack.c.h.b16 %v248
    %v1353 = vunpack.c.l.b16 %v249
    %v1354 = vunpack.c.h.b16 %v249
    %v1355 = vunpack.c.l.b16 %v250
    %v1356 = vunpack.c.h.b16 %v250
    %v1357 = vunpack.c.l.b16 %v251
    %v1358 = vunpack.c.h.b16 %v251
    %v1359 = vunpack.c.l.b16 %v252
    %v1360 = vunpack.c.h.b16 %v252
    %v1361 = vunpack.c.l.b16 %v253
    %v1362 = vunpack.c.h.b16 %v253
    %v1363 = vunpack.c.l.b16 %v254
    %v1364 = vunpack.c.h.b16 %v254
    %v1365 = vunpack.c.l.b16 %v255
    %v1366 = vunpack.c.h.b16 %v255
    %v1367 = vunpack.c.l.b16 %v256
    %v1368 = vunpack.c.h.b16 %v256
    %v1369 = vunpack.c.l.b16 %v257
    %v1370 = vunpack.c.h.b16 %v257
    %v1371 = vunpack.c.l.b16 %v258
    %v1372 = vunpack.c.h.b16 %v258
    %v1373 = vunpack.c.l.b16 %v259
    %v1374 = vunpack.c.h.b16 %v259
    %v1375 = vunpack.c.l.b16 %v260
    %v1376 = vunpack.c.h.b16 %v260
    %v1377 = vunpack.c.l.b16 %v261
    %v1378 = vunpack.c.h.b16 %v261
    %v1379 = vunpack.c.l.b16 %v262
    %v1380 = vunpack.c.h.b16 %v262
    %v1381 = vunpack.c.l.b16 %v263
    %v1382 = vunpack.c.h.b16 %v263
    %v1383 = vunpack.c.l.b16 %v264
    %v1384 = vunpack.c.h.b16 %v264
    %v1385 = vunpack.c.l.b16 %v265
    %v1386 = vunpack.c.h.b16 %v265
    %v1387 = vunpack.c.l.b16 %v266
    %v1388 = vunpack.c.h.b16 %v266
    %v1389 = vunpack.c.l.b16 %v267
    %v1390 = vunpack.c.h.b16 %v267
    %v1391 = vunpack.c.l.b16 %v268
    %v1392 = vunpack.c.h.b16 %v268
    %v1393 = vunpack.c.l.b16 %v269
    %v1394 = vunpack.c.h.b16 %v269
    %v1395 = vunpack.c.l.b16 %v270
    %v1396 = vunpack.c.h.b16 %v270
    %v1397 = vunpack.c.l.b16 %v271
    %v1398 = vunpack.c.h.b16 %v271
    %v1399 = vunpack.c.l.b16 %v272
    %v1400 = vunpack.c.h.b16 %v272
    %v1401 = vunpack.c.l.b16 %v273
    %v1402 = vunpack.c.h.b16 %v273
    %v1403 = vunpack.c.l.b16 %v274
    %v1404 = vunpack.c.h.b16 %v274
    %v1405 = vunpack.c.l.b16 %v275
    %v1406 = vunpack.c.h.b16 %v275
    %v1407 = vunpack.c.l.b16 %v276
    %v1408 = vunpack.c.h.b16 %v276
    %v1409 = vunpack.c.l.b16 %v277
    %v1410 = vunpack.c.h.b16 %v277
    %v1411 = vunpack.c.l.b16 %v278
    %v1412 = vunpack.c.h.b16 %v278
    %v1413 = vunpack.c.l.b16 %v279
    %v1414 = vunpack.c.h.b16 %v279
    %v1415 = vunpack.c.l.b16 %v280
    %v1416 = vunpack.c.h.b16 %v280
    %v1417 = vunpack.c.l.b16 %v281
    %v1418 = vunpack.c.h.b16 %v281
    %v1419 = vunpack.c.l.b16 %v282
    %v1420 = vunpack.c.h.b16 %v282
    %v1421 = vunpack.c.l.b16 %v283
    %v1422 = vunpack.c.h.b16 %v283
    %v1423 = vunpack.c.l.b16 %v284
    %v1424 = vunpack.c.h.b16 %v284
    %v1425 = vunpack.c.l.b16 %v285
    %v1426 = vunpack.c.h.b16 %v285
    %v1427 = vunpack.c.l.b16 %v286
    %v1428 = vunpack.c.h.b16 %v286
    %v1429 = vunpack.c.l.b16 %v287
    %v1430 = vunpack.c.h.b16 %v287
    %v1431 = vunpack.c.l.b16 %v288
    %v1432 = vunpack.c.h.b16 %v288
    %v1433 = vunpack.c.l.b16 %v289
    %v1434 = vunpack.c.h.b16 %v289
    %v1435 = vunpack.c.l.b16 %v290
    %v1436 = vunpack.c.h.b16 %v290
    %v1437 = vunpack.c.l.b16 %v291
    %v1438 = vunpack.c.h.b16 %v291
    %v1439 = vunpack.c.l.b16 %v292
    %v1440 = vunpack.c.h.b16 %v292
    %v1441 = vunpack.c.l.b16 %v293
    %v1442 = vunpack.c.h.b16 %v293
    %v1443 = vunpack.c.l.b16 %v294
    %v1444 = vunpack.c.h.b16 %v294
    %v1445 = vunpack.c.l.b16 %v295
    %v1446 = vunpack.c.h.b16 %v295
    %v1447 = vunpack.c.l.b16 %v296
    %v1448 = vunpack.c.h.b16 %v296
    %v1449 = vunpack.c.l.b16 %v297
    %v1450 = vunpack.c.h.b16 %v297
    %v1451 = vunpack.c.l.b16 %v298
    %v1452 = vunpack.c.h.b16 %v298
    %v1453 = vunpack.c.l.b16 %v299
    %v1454 = vunpack.c.h.b16 %v299
    %v1455 = vunpack.c.l.b16 %v300
    %v1456 = vunpack.c.h.b16 %v300
    %v1457 = vunpack.c.l.b16 %v301
    %v1458 = vunpack.c.h.b16 %v301
    %v1459 = vunpack.c.l.b16 %v302
    %v1460 = vunpack.c.h.b16 %v302
    %v1461 = vunpack.c.l.b16 %v303
    %v1462 = vunpack.c.h.b16 %v303
    %v1463 = vunpack.c.l.b16 %v304
    %v1464 = vunpack.c.h.b16 %v304
    %v1465 = vunpack.c.l.b16 %v305
    %v1466 = vunpack.c.h.b16 %v305
    %v1467 = vunpack.c.l.b16 %v306
    %v1468 = vunpack.c.h.b16 %v306
    %v1469 = vunpack.c.l.b16 %v307
    %v1470 = vunpack.c.h.b16 %v307
    %v1471 = vunpack.c.l.b16 %v308
    %v1472 = vunpack.c.h.b16 %v308
    %v1473 = vunpack.c.l.b16 %v309
    %v1474 = vunpack.c.h.b16 %v309
    %v1475 = vunpack.c.l.b16 %v310
    %v1476 = vunpack.c.h.b16 %v310
    %v1477 = vunpack.c.l.b16 %v311
    %v1478 = vunpack.c.h.b16 %v311
    %v1479 = vunpack.c.l.b16 %v312
    %v1480 = vunpack.c.h.b16 %v312
    %v1481 = vunpack.c.l.b16 %v313
    %v1482 = vunpack.c.h.b16 %v313
    %v1483 = vunpack.c.l.b16 %v314
    %v1484 = vunpack.c.h.b16 %v314
    %v1485 = vunpack.c.l.b16 %v315
    %v1486 = vunpack.c.h.b16 %v315
    %v1487 = vunpack.c.l.b16 %v316
    %v1488 = vunpack.c.h.b16 %v316
    %v1489 = vunpack.c.l.b16 %v317
    %v1490 = vunpack.c.h.b16 %v317
    %v1491 = vunpack.c.l.b16 %v318
    %v1492 = vunpack.c.h.b16 %v318
    %v1493 = vunpack.c.l.b16 %v319
    %v1494 = vunpack.c.h.b16 %v319
    %v1495 = vunpack.c.l.b16 %v320
    %v1496 = vunpack.c.h.b16 %v320
    %v1497 = vunpack.c.l.b16 %v321
    %v1498 = vunpack.c.h.b16 %v321
    %v1499 = vunpack.c.l.b16 %v322
    %v1500 = vunpack.c.h.b16 %v322
    %v1501 = vunpack.c.l.b16 %v323
    %v1502 = vunpack.c.h.b16 %v323
    %v1503 = vunpack.c.l.b16 %v324
    %v1504 = vunpack.c.h.b16 %v324
    %v1505 = vunpack.c.l.b16 %v325
    %v1506 = vunpack.c.h.b16 %v325
    %v1507 = vunpack.c.l.b16 %v326
    %v1508 = vunpack.c.h.b16 %v326
    %v1509 = vunpack.c.l.b16 %v327
    %v1510 = vunpack.c.h.b16 %v327
    %v1511 = vunpack.c.l.b16 %v328
    %v1512 = vunpack.c.h.b16 %v328
    %v1513 = vunpack.c.l.b16 %v329
    %v1514 = vunpack.c.h.b16 %v329
    %v1515 = vunpack.c.l.b16 %v330
    %v1516 = vunpack.c.h.b16 %v330
    %v1517 = vunpack.c.l.b16 %v331
    %v1518 = vunpack.c.h.b16 %v331
    %v1519 = vunpack.c.l.b16 %v332
    %v1520 = vunpack.c.h.b16 %v332
    %v1521 = vunpack.c.l.b16 %v333
    %v1522 = vunpack.c.h.b16 %v333
    %v1523 = vunpack.c.l.b16 %v334
    %v1524 = vunpack.c.h.b16 %v334
    %v1525 = vunpack.c.l.b16 %v335
    %v1526 = vunpack.c.h.b16 %v335
    %v1527 = vunpack.c.l.b16 %v336
    %v1528 = vunpack.c.h.b16 %v336
    %v1529 = vunpack.c.l.b16 %v337
    %v1530 = vunpack.c.h.b16 %v337
    %v1531 = vunpack.c.l.b16 %v338
    %v1532 = vunpack.c.h.b16 %v338
    %v1533 = vunpack.c.l.b16 %v339
    %v1534 = vunpack.c.h.b16 %v339
    %v1535 = vunpack.c.l.b16 %v340
    %v1536 = vunpack.c.h.b16 %v340
    %v1537 = vunpack.c.l.b16 %v341
    %v1538 = vunpack.c.h.b16 %v341
    %v1539 = vunpack.c.l.b16 %v342
    %v1540 = vunpack.c.h.b16 %v342
    %v1541 = vunpack.c.l.b16 %v343
    %v1542 = vunpack.c.h.b16 %v343
    %v1543 = vunpack.c.l.b16 %v344
    %v1544 = vunpack.c.h.b16 %v344
    %v1545 = vunpack.c.l.b16 %v345
    %v1546 = vunpack.c.h.b16 %v345
    %v1547 = vunpack.c.l.b16 %v346
    %v1548 = vunpack.c.h.b16 %v346
    %v1549 = vunpack.c.l.b16 %v347
    %v1550 = vunpack.c.h.b16 %v347
    %v1551 = vunpack.c.l.b16 %v348
    %v1552 = vunpack.c.h.b16 %v348
    %v1553 = vunpack.c.l.b16 %v349
    %v1554 = vunpack.c.h.b16 %v349
    %v1555 = vunpack.c.l.b16 %v350
    %v1556 = vunpack.c.h.b16 %v350
    %v1557 = vunpack.c.l.b16 %v351
    %v1558 = vunpack.c.h.b16 %v351
    %v1559 = vunpack.c.l.b16 %v352
    %v1560 = vunpack.c.h.b16 %v352
    %v1561 = vunpack.c.l.b16 %v353
    %v1562 = vunpack.c.h.b16 %v353
    %v1563 = vunpack.c.l.b16 %v354
    %v1564 = vunpack.c.h.b16 %v354
    %v1565 = vunpack.c.l.b16 %v355
    %v1566 = vunpack.c.h.b16 %v355
    %v1567 = vunpack.c.l.b16 %v356
    %v1568 = vunpack.c.h.b16 %v356
    %v1569 = vunpack.c.l.b16 %v357
    %v1570 = vunpack.c.h.b16 %v357
    %v1571 = vunpack.c.l.b16 %v358
    %v1572 = vunpack.c.h.b16 %v358
    %v1573 = vunpack.c.l.b16 %v359
    %v1574 = vunpack.c.h.b16 %v359
    %v1575 = vunpack.c.l.b16 %v360
    %v1576 = vunpack.c.h.b16 %v360
    %v1577 = vunpack.c.l.b16 %v361
    %v1578 = vunpack.c.h.b16 %v361
    %v1579 = vunpack.c.l.b16 %v362
    %v1580 = vunpack.c.h.b16 %v362
    %v1581 = vunpack.c.l.b16 %v363
    %v1582 = vunpack.c.h.b16 %v363
    %v1583 = vunpack.c.l.b16 %v364
    %v1584 = vunpack.c.h.b16 %v364
    %v1585 = vunpack.c.l.b16 %v365
    %v1586 = vunpack.c.h.b16 %v365
    %v1587 = vunpack.c.l.b16 %v366
    %v1588 = vunpack.c.h.b16 %v366
    %v1589 = vunpack.c.l.b16 %v367
    %v1590 = vunpack.c.h.b16 %v367
    %v1591 = vunpack.c.l.b16 %v368
    %v1592 = vunpack.c.h.b16 %v368
    %v1593 = vunpack.c.l.b16 %v369
    %v1594 = vunpack.c.h.b16 %v369
    %v1595 = vunpack.c.l.b16 %v370
    %v1596 = vunpack.c.h.b16 %v370
    %v1597 = vunpack.c.l.b16 %v371
    %v1598 = vunpack.c.h.b16 %v371
    %v1599 = vunpack.c.l.b16 %v372
    %v1600 = vunpack.c.h.b16 %v372
    %v1601 = vunpack.c.l.b16 %v373
    %v1602 = vunpack.c.h.b16 %v373
    %v1603 = vunpack.c.l.b16 %v374
    %v1604 = vunpack.c.h.b16 %v374
    %v1605 = vunpack.c.l.b16 %v375
    %v1606 = vunpack.c.h.b16 %v375
    %v1607 = vunpack.c.l.b16 %v376
    %v1608 = vunpack.c.h.b16 %v376
    %v1609 = vunpack.c.l.b16 %v377
    %v1610 = vunpack.c.h.b16 %v377
    %v1611 = vunpack.c.l.b16 %v378
    %v1612 = vunpack.c.h.b16 %v378
    %v1613 = vunpack.c.l.b16 %v379
    %v1614 = vunpack.c.h.b16 %v379
    %v1615 = vunpack.c.l.b16 %v380
    %v1616 = vunpack.c.h.b16 %v380
    %v1617 = vunpack.c.l.b16 %v381
    %v1618 = vunpack.c.h.b16 %v381
    %v1619 = vunpack.c.l.b16 %v382
    %v1620 = vunpack.c.h.b16 %v382
    %v1621 = vunpack.c.l.b16 %v383
    %v1622 = vunpack.c.h.b16 %v383
    %v1623 = vunpack.c.l.b16 %v384
    %v1624 = vunpack.c.h.b16 %v384
    %v1625 = vunpack.c.l.b16 %v385
    %v1626 = vunpack.c.h.b16 %v385
    %v1627 = vunpack.c.l.b16 %v386
    %v1628 = vunpack.c.h.b16 %v386
    %v1629 = vunpack.c.l.b16 %v387
    %v1630 = vunpack.c.h.b16 %v387
    %v1631 = vunpack.c.l.b16 %v388
    %v1632 = vunpack.c.h.b16 %v388
    %v1633 = vunpack.c.l.b16 %v389
    %v1634 = vunpack.c.h.b16 %v389
    %v1635 = vunpack.c.l.b16 %v390
    %v1636 = vunpack.c.h.b16 %v390
    %v1637 = vunpack.c.l.b16 %v391
    %v1638 = vunpack.c.h.b16 %v391
    %v1639 = vunpack.c.l.b16 %v392
    %v1640 = vunpack.c.h.b16 %v392
    %v1641 = vunpack.c.l.b16 %v393
    %v1642 = vunpack.c.h.b16 %v393
    %v1643 = vunpack.c.l.b16 %v394
    %v1644 = vunpack.c.h.b16 %v394
    %v1645 = vunpack.c.l.b16 %v395
    %v1646 = vunpack.c.h.b16 %v395
    %v1647 = vunpack.c.l.b16 %v396
    %v1648 = vunpack.c.h.b16 %v396
    %v1649 = vunpack.c.l.b16 %v397
    %v1650 = vunpack.c.h.b16 %v397
    %v1651 = vunpack.c.l.b16 %v398
    %v1652 = vunpack.c.h.b16 %v398
    %v1653 = vunpack.c.l.b16 %v399
    %v1654 = vunpack.c.h.b16 %v399
    %v1655 = vunpack.c.l.b16 %v400
    %v1656 = vunpack.c.h.b16 %v400
    %v1657 = vunpack.c.l.b16 %v401
    %v1658 = vunpack.c.h.b16 %v401
    %v1659 = vunpack.c.l.b16 %v402
    %v1660 = vunpack.c.h.b16 %v402
    %v1661 = vunpack.c.l.b16 %v403
    %v1662 = vunpack.c.h.b16 %v403
    %v1663 = vunpack.c.l.b16 %v404
    %v1664 = vunpack.c.h.b16 %v404
    %v1665 = vunpack.c.l.b16 %v405
    %v1666 = vunpack.c.h.b16 %v405
    %v1667 = vunpack.c.l.b16 %v406
    %v1668 = vunpack.c.h.b16 %v406
    %v1669 = vunpack.c.l.b16 %v407
    %v1670 = vunpack.c.h.b16 %v407
    %v1671 = vunpack.c.l.b16 %v408
    %v1672 = vunpack.c.h.b16 %v408
    %v1673 = vunpack.c.l.b16 %v409
    %v1674 = vunpack.c.h.b16 %v409
    %v1675 = vunpack.c.l.b16 %v410
    %v1676 = vunpack.c.h.b16 %v410
    %v1677 = vunpack.c.l.b16 %v411
    %v1678 = vunpack.c.h.b16 %v411
    %v1679 = vunpack.c.l.b16 %v412
    %v1680 = vunpack.c.h.b16 %v412
    %v1681 = vunpack.c.l.b16 %v413
    %v1682 = vunpack.c.h.b16 %v413
    %v1683 = vunpack.c.l.b16 %v414
    %v1684 = vunpack.c.h.b16 %v414
    %v1685 = vunpack.c.l.b16 %v415
    %v1686 = vunpack.c.h.b16 %v415
    %v1687 = vunpack.c.l.b16 %v416
    %v1688 = vunpack.c.h.b16 %v416
    %v1689 = vunpack.c.l.b16 %v417
    %v1690 = vunpack.c.h.b16 %v417
    %v1691 = vunpack.c.l.b16 %v418
    %v1692 = vunpack.c.h.b16 %v418
    %v1693 = vunpack.c.l.b16 %v419
    %v1694 = vunpack.c.h.b16 %v419
    %v1695 = vunpack.c.l.b16 %v420
    %v1696 = vunpack.c.h.b16 %v420
    %v1697 = vunpack.c.l.b16 %v421
    %v1698 = vunpack.c.h.b16 %v421
    %v1699 = vunpack.c.l.b16 %v422
    %v1700 = vunpack.c.h.b16 %v422
    %v1701 = vunpack.c.l.b16 %v423
    %v1702 = vunpack.c.h.b16 %v423
    %v1703 = vunpack.c.l.b16 %v424
    %v1704 = vunpack.c.h.b16 %v424
    %v1705 = vunpack.c.l.b16 %v425
    %v1706 = vunpack.c.h.b16 %v425
    %v1707 = vunpack.c.l.b16 %v426
    %v1708 = vunpack.c.h.b16 %v426
    %v1709 = vunpack.c.l.b16 %v427
    %v1710 = vunpack.c.h.b16 %v427
    %v1711 = vunpack.c.l.b16 %v428
    %v1712 = vunpack.c.h.b16 %v428
    %v1713 = vunpack.c.l.b16 %v429
    %v1714 = vunpack.c.h.b16 %v429
    %v1715 = vunpack.c.l.b16 %v430
    %v1716 = vunpack.c.h.b16 %v430
    %v1717 = vunpack.c.l.b16 %v431
    %v1718 = vunpack.c.h.b16 %v431
    %v1719 = vunpack.c.l.b16 %v432
    %v1720 = vunpack.c.h.b16 %v432
    %v1721 = vunpack.c.l.b16 %v433
    %v1722 = vunpack.c.h.b16 %v433
    %v1723 = vunpack.c.l.b16 %v434
    %v1724 = vunpack.c.h.b16 %v434
    %v1725 = vunpack.c.l.b16 %v435
    %v1726 = vunpack.c.h.b16 %v435
    %v1727 = vunpack.c.l.b16 %v436
    %v1728 = vunpack.c.h.b16 %v436
    %v1729 = vunpack.c.l.b16 %v437
    %v1730 = vunpack.c.h.b16 %v437
    %v1731 = vunpack.c.l.b16 %v438
    %v1732 = vunpack.c.h.b16 %v438
    %v1733 = vunpack.c.l.b16 %v439
    %v1734 = vunpack.c.h.b16 %v439
    %v1735 = vunpack.c.l.b16 %v440
    %v1736 = vunpack.c.h.b16 %v440
    %v1737 = vunpack.c.l.b16 %v441
    %v1738 = vunpack.c.h.b16 %v441
    %v1739 = vunpack.c.l.b16 %v442
    %v1740 = vunpack.c.h.b16 %v442
    %v1741 = vunpack.c.l.b16 %v443
    %v1742 = vunpack.c.h.b16 %v443
    %v1743 = vunpack.c.l.b16 %v444
    %v1744 = vunpack.c.h.b16 %v444
    %v1745 = vunpack.c.l.b16 %v445
    %v1746 = vunpack.c.h.b16 %v445
    %v1747 = vunpack.c.l.b16 %v446
    %v1748 = vunpack.c.h.b16 %v446
    %v1749 = vunpack.c.l.b16 %v447
    %v1750 = vunpack.c.h.b16 %v447
    %v1751 = vunpack.c.l.b16 %v448
    %v1752 = vunpack.c.h.b16 %v448
    %v1753 = vunpack.c.l.b16 %v449
    %v1754 = vunpack.c.h.b16 %v449
    %v1755 = vunpack.c.l.b16 %v450
    %v1756 = vunpack.c.h.b16 %v450
    %v1757 = vunpack.c.l.b16 %v451
    %v1758 = vunpack.c.h.b16 %v451
    %v1759 = vunpack.c.l.b16 %v452
    %v1760 = vunpack.c.h.b16 %v452
    %v1761 = vunpack.c.l.b16 %v453
    %v1762 = vunpack.c.h.b16 %v453
    %v1763 = vunpack.c.l.b16 %v454
    %v1764 = vunpack.c.h.b16 %v454
    %v1765 = vunpack.c.l.b16 %v455
    %v1766 = vunpack.c.h.b16 %v455
    %v1767 = vunpack.c.l.b16 %v456
    %v1768 = vunpack.c.h.b16 %v456
    %v1769 = vunpack.c.l.b16 %v457
    %v1770 = vunpack.c.h.b16 %v457
    %v1771 = vunpack.c.l.b16 %v458
    %v1772 = vunpack.c.h.b16 %v458
    %v1773 = vunpack.c.l.b16 %v459
    %v1774 = vunpack.c.h.b16 %v459
    %v1775 = vunpack.c.l.b16 %v460
    %v1776 = vunpack.c.h.b16 %v460
    %v1777 = vunpack.c.l.b16 %v461
    %v1778 = vunpack.c.h.b16 %v461
    %v1779 = vunpack.c.l.b16 %v462
    %v1780 = vunpack.c.h.b16 %v462
    %v1781 = vunpack.c.l.b16 %v463
    %v1782 = vunpack.c.h.b16 %v463
    %v1783 = vunpack.c.l.b16 %v464
    %v1784 = vunpack.c.h.b16 %v464
    %v1785 = vunpack.c.l.b16 %v465
    %v1786 = vunpack.c.h.b16 %v465
    %v1787 = vunpack.c.l.b16 %v466
    %v1788 = vunpack.c.h.b16 %v466
    %v1789 = vunpack.c.l.b16 %v467
    %v1790 = vunpack.c.h.b16 %v467
    %v1791 = vunpack.c.l.b16 %v468
    %v1792 = vunpack.c.h.b16 %v468
    %v1793 = vunpack.c.l.b16 %v469
    %v1794 = vunpack.c.h.b16 %v469
    %v1795 = vunpack.c.l.b16 %v470
    %v1796 = vunpack.c.h.b16 %v470
    %v1797 = vunpack.c.l.b16 %v471
    %v1798 = vunpack.c.h.b16 %v471
    %v1799 = vunpack.c.l.b16 %v472
    %v1800 = vunpack.c.h.b16 %v472
    %v1801 = vunpack.c.l.b16 %v473
    %v1802 = vunpack.c.h.b16 %v473
    %v1803 = vunpack.c.l.b16 %v474
    %v1804 = vunpack.c.h.b16 %v474
    %v1805 = vunpack.c.l.b16 %v475
    %v1806 = vunpack.c.h.b16 %v475
    %v1807 = vunpack.c.l.b16 %v476
    %v1808 = vunpack.c.h.b16 %v476
    %v1809 = vunpack.c.l.b16 %v477
    %v1810 = vunpack.c.h.b16 %v477
    %v1811 = vunpack.c.l.b16 %v478
    %v1812 = vunpack.c.h.b16 %v478
    %v1813 = vunpack.c.l.b16 %v479
    %v1814 = vunpack.c.h.b16 %v479
    %v1815 = vunpack.c.l.b16 %v480
    %v1816 = vunpack.c.h.b16 %v480
    %v1817 = vunpack.c.l.b16 %v481
    %v1818 = vunpack.c.h.b16 %v481
    %v1819 = vunpack.c.l.b16 %v482
    %v1820 = vunpack.c.h.b16 %v482
    %v1821 = vunpack.c.l.b16 %v483
    %v1822 = vunpack.c.h.b16 %v483
    %v1823 = vunpack.c.l.b16 %v484
    %v1824 = vunpack.c.h.b16 %v484
    %v1825 = vunpack.c.l.b16 %v485
    %v1826 = vunpack.c.h.b16 %v485
    %v1827 = vunpack.c.l.b16 %v486
    %v1828 = vunpack.c.h.b16 %v486
    %v1829 = vunpack.c.l.b16 %v487
    %v1830 = vunpack.c.h.b16 %v487
    %v1831 = vunpack.c.l.b16 %v488
    %v1832 = vunpack.c.h.b16 %v488
    %v1833 = vunpack.c.l.b16 %v489
    %v1834 = vunpack.c.h.b16 %v489
    %v1835 = vunpack.c.l.b16 %v490
    %v1836 = vunpack.c.h.b16 %v490
    %v1837 = vunpack.c.l.b16 %v491
    %v1838 = vunpack.c.h.b16 %v491
    %v1839 = vunpack.c.l.b16 %v492
    %v1840 = vunpack.c.h.b16 %v492
    %v1841 = vunpack.c.l.b16 %v493
    %v1842 = vunpack.c.h.b16 %v493
    %v1843 = vunpack.c.l.b16 %v494
    %v1844 = vunpack.c.h.b16 %v494
    %v1845 = vunpack.c.l.b16 %v495
    %v1846 = vunpack.c.h.b16 %v495
    %v1847 = vunpack.c.l.b16 %v496
    %v1848 = vunpack.c.h.b16 %v496
    %v1849 = vunpack.c.l.b16 %v497
    %v1850 = vunpack.c.h.b16 %v497
    %v1851 = vunpack.c.l.b16 %v498
    %v1852 = vunpack.c.h.b16 %v498
    %v1853 = vunpack.c.l.b16 %v499
    %v1854 = vunpack.c.h.b16 %v499
    %v1855 = vunpack.c.l.b16 %v500
    %v1856 = vunpack.c.h.b16 %v500
    %v1857 = vunpack.c.l.b16 %v501
    %v1858 = vunpack.c.h.b16 %v501
    %v1859 = vunpack.c.l.b16 %v502
    %v1860 = vunpack.c.h.b16 %v502
    %v1861 = vunpack.c.l.b16 %v503
    %v1862 = vunpack.c.h.b16 %v503
    %v1863 = vunpack.c.l.b16 %v504
    %v1864 = vunpack.c.h.b16 %v504
    %v1865 = vunpack.c.l.b16 %v505
    %v1866 = vunpack.c.h.b16 %v505
    %v1867 = vunpack.c.l.b16 %v506
    %v1868 = vunpack.c.h.b16 %v506
    %v1869 = vunpack.c.l.b16 %v507
    %v1870 = vunpack.c.h.b16 %v507
    %v1871 = vunpack.c.l.b16 %v508
    %v1872 = vunpack.c.h.b16 %v508
    %v1873 = vunpack.c.l.b16 %v509
    %v1874 = vunpack.c.h.b16 %v509
    %v1875 = vunpack.c.l.b16 %v510
    %v1876 = vunpack.c.h.b16 %v510
    %v1877 = vunpack.c.l.b16 %v511
    %v1878 = vunpack.c.h.b16 %v511
    %v1879 = vunpack.c.l.b16 %v512
    %v1880 = vunpack.c.h.b16 %v512
    %v1881 = vunpack.c.l.b16 %v513
    %v1882 = vunpack.c.h.b16 %v513
    %v1883 = vunpack.c.l.b16 %v514
    %v1884 = vunpack.c.h.b16 %v514
    %v1885 = vunpack.c.l.b16 %v515
    %v1886 = vunpack.c.h.b16 %v515
    %v1887 = vunpack.c.l.b16 %v516
    %v1888 = vunpack.c.h.b16 %v516
    %v1889 = vunpack.c.l.b16 %v517
    %v1890 = vunpack.c.h.b16 %v517
    %v1891 = vunpack.c.l.b16 %v518
    %v1892 = vunpack.c.h.b16 %v518
    %v1893 = vunpack.c.l.b16 %v519
    %v1894 = vunpack.c.h.b16 %v519
    %v1895 = vunpack.c.l.b16 %v520
    %v1896 = vunpack.c.h.b16 %v520
    %v1897 = vunpack.c.l.b16 %v521
    %v1898 = vunpack.c.h.b16 %v521
    %v1899 = vunpack.c.l.b16 %v522
    %v1900 = vunpack.c.h.b16 %v522
    %v1901 = vunpack.c.l.b16 %v523
    %v1902 = vunpack.c.h.b16 %v523
    %v1903 = vunpack.c.l.b16 %v524
    %v1904 = vunpack.c.h.b16 %v524
    %v1905 = vunpack.c.l.b16 %v525
    %v1906 = vunpack.c.h.b16 %v525
    %v1907 = vunpack.c.l.b16 %v526
    %v1908 = vunpack.c.h.b16 %v526
    %v1909 = vunpack.c.l.b16 %v527
    %v1910 = vunpack.c.h.b16 %v527
    %v1911 = vunpack.c.l.b16 %v528
    %v1912 = vunpack.c.h.b16 %v528
    %v1913 = vunpack.c.l.b16 %v529
    %v1914 = vunpack.c.h.b16 %v529
    %v1915 = vunpack.c.l.b16 %v530
    %v1916 = vunpack.c.h.b16 %v530
    %v1917 = vunpack.c.l.b16 %v531
    %v1918 = vunpack.c.h.b16 %v531
    %v1919 = vunpack.c.l.b16 %v532
    %v1920 = vunpack.c.h.b16 %v532
    %v1921 = vunpack.c.l.b16 %v533
    %v1922 = vunpack.c.h.b16 %v533
    %v1923 = vunpack.c.l.b16 %v534
    %v1924 = vunpack.c.h.b16 %v534
    %v1925 = vunpack.c.l.b16 %v535
    %v1926 = vunpack.c.h.b16 %v535
    %v1927 = vunpack.c.l.b16 %v536
    %v1928 = vunpack.c.h.b16 %v536
    %v1929 = vunpack.c.l.b16 %v537
    %v1930 = vunpack.c.h.b16 %v537
    %v1931 = vunpack.c.l.b16 %v538
    %v1932 = vunpack.c.h.b16 %v538
    %v1933 = vunpack.c.l.b16 %v539
    %v1934 = vunpack.c.h.b16 %v539
    %v1935 = vunpack.c.l.b16 %v540
    %v1936 = vunpack.c.h.b16 %v540
    %v1937 = vunpack.c.l.b16 %v541
    %v1938 = vunpack.c.h.b16 %v541
    %v1939 = vunpack.c.l.b16 %v542
    %v1940 = vunpack.c.h.b16 %v542
    %v1941 = vunpack.c.l.b16 %v543
    %v1942 = vunpack.c.h.b16 %v543
    %v1943 = vunpack.c.l.b16 %v544
    %v1944 = vunpack.c.h.b16 %v544
    %v1945 = vunpack.c.l.b16 %v545
    %v1946 = vunpack.c.h.b16 %v545
    %v1947 = vunpack.c.l.b16 %v546
    %v1948 = vunpack.c.h.b16 %v546
    %v1949 = vunpack.c.l.b16 %v547
    %v1950 = vunpack.c.h.b16 %v547
    %v1951 = vunpack.c.l.b16 %v548
    %v1952 = vunpack.c.h.b16 %v548
    %v1953 = vunpack.c.l.b16 %v549
    %v1954 = vunpack.c.h.b16 %v549
    %v1955 = vunpack.c.l.b16 %v550
    %v1956 = vunpack.c.h.b16 %v550
    %v1957 = vunpack.c.l.b16 %v551
    %v1958 = vunpack.c.h.b16 %v551
    %v1959 = vunpack.c.l.b16 %v552
    %v1960 = vunpack.c.h.b16 %v552
    %v1961 = vunpack.c.l.b16 %v553
    %v1962 = vunpack.c.h.b16 %v553
    %v1963 = vunpack.c.l.b16 %v554
    %v1964 = vunpack.c.h.b16 %v554
    %v1965 = vunpack.c.l.b16 %v555
    %v1966 = vunpack.c.h.b16 %v555
    %v1967 = vpack.c.b16 %v1079, %v1071
    %v1968 = vpack.c.b16 %v1080, %v1072
    %v1969 = vpack.c.b16 %v1081, %v1073
    %v1970 = vpack.c.b16 %v1082, %v1074
    %v1971 = vpack.c.b16 %v1083, %v1075
    %v1972 = vpack.c.b16 %v1084, %v1076
    %v1973 = vpack.c.b16 %v1085, %v1077
    %v1974 = vpack.c.b16 %v1086, %v1078
    %v1975 = vpack.c.b16 %v1095, %v1087
    %v1976 = vpack.c.b16 %v1096, %v1088
    %v1977 = vpack.c.b16 %v1097, %v1089
    %v1978 = vpack.c.b16 %v1098, %v1090
    %v1979 = vpack.c.b16 %v1099, %v1091
    %v1980 = vpack.c.b16 %v1100, %v1092
    %v1981 = vpack.c.b16 %v1101, %v1093
    %v1982 = vpack.c.b16 %v1102, %v1094
    %v1983 = vpack.c.b16 %v1111, %v1103
    %v1984 = vpack.c.b16 %v1112, %v1104
    %v1985 = vpack.c.b16 %v1113, %v1105
    %v1986 = vpack.c.b16 %v1114, %v1106
    %v1987 = vpack.c.b16 %v1115, %v1107
    %v1988 = vpack.c.b16 %v1116, %v1108
    %v1989 = vpack.c.b16 %v1117, %v1109
    %v1990 = vpack.c.b16 %v1118, %v1110
    %v1991 = vpack.c.b16 %v1127, %v1119
    %v1992 = vpack.c.b16 %v1128, %v1120
    %v1993 = vpack.c.b16 %v1129, %v1121
    %v1994 = vpack.c.b16 %v1130, %v1122
    %v1995 = vpack.c.b16 %v1131, %v1123
    %v1996 = vpack.c.b16 %v1132, %v1124
    %v1997 = vpack.c.b16 %v1133, %v1125
    %v1998 = vpack.c.b16 %v1134, %v1126
    %v1999 = vpack.c.b16 %v1143, %v1135
    %v2000 = vpack.c.b16 %v1144, %v1136
    %v2001 = vpack.c.b16 %v1145, %v1137
    %v2002 = vpack.c.b16 %v1146, %v1138
    %v2003 = vpack.c.b16 %v1147, %v1139
    %v2004 = vpack.c.b16 %v1148, %v1140
    %v2005 = vpack.c.b16 %v1149, %v1141
    %v2006 = vpack.c.b16 %v1150, %v1142
    %v2007 = vpack.c.b16 %v1159, %v1151
    %v2008 = vpack.c.b16 %v1160, %v1152
    %v2009 = vpack.c.b16 %v1161, %v1153
    %v2010 = vpack.c.b16 %v1162, %v1154
    %v2011 = vpack.c.b16 %v1163, %v1155
    %v2012 = vpack.c.b16 %v1164, %v1156
    %v2013 = vpack.c.b16 %v1165, %v1157
    %v2014 = vpack.c.b16 %v1166, %v1158
    %v2015 = vpack.c.b16 %v1175, %v1167
    %v2016 = vpack.c.b16 %v1176, %v1168
    %v2017 = vpack.c.b16 %v1177, %v1169
    %v2018 = vpack.c.b16 %v1178, %v1170
    %v2019 = vpack.c.b16 %v1179, %v1171
    %v2020 = vpack.c.b16 %v1180, %v1172
    %v2021 = vpack.c.b16 %v1181, %v1173
    %v2022 = vpack.c.b16 %v1182, %v1174
    %v2023 = vpack.c.b16 %v1191, %v1183
    %v2024 = vpack.c.b16 %v1192, %v1184
    %v2025 = vpack.c.b16 %v1193, %v1185
    %v2026 = vpack.c.b16 %v1194, %v1186
    %v2027 = vpack.c.b16 %v1195, %v1187
    %v2028 = vpack.c.b16 %v1196, %v1188
    %v2029 = vpack.c.b16 %v1197, %v1189
    %v2030 = vpack.c.b16 %v1198, %v1190
    %v2031 = vpack.c.b16 %v1207, %v1199
    %v2032 = vpack.c.b16 %v1208, %v1200
    %v2033 = vpack.c.b16 %v1209, %v1201
    %v2034 = vpack.c.b16 %v1210, %v1202
    %v2035 = vpack.c.b16 %v1211, %v1203
    %v2036 = vpack.c.b16 %v1212, %v1204
    %v2037 = vpack.c.b16 %v1213, %v1205
    %v2038 = vpack.c.b16 %v1214, %v1206
    %v2039 = vpack.c.b16 %v1223, %v1215
    %v2040 = vpack.c.b16 %v1224, %v1216
    %v2041 = vpack.c.b16 %v1225, %v1217
    %v2042 = vpack.c.b16 %v1226, %v1218
    %v2043 = vpack.c.b16 %v1227, %v1219
    %v2044 = vpack.c.b16 %v1228, %v1220
    %v2045 = vpack.c.b16 %v1229, %v1221
    %v2046 = vpack.c.b16 %v1230, %v1222
    %v2047 = vpack.c.b16 %v1239, %v1231
    %v2048 = vpack.c.b16 %v1240, %v1232
    %v2049 = vpack.c.b16 %v1241, %v1233
    %v2050 = vpack.c.b16 %v1242, %v1234
    %v2051 = vpack.c.b16 %v1243, %v1235
    %v2052 = vpack.c.b16 %v1244, %v1236
    %v2053 = vpack.c.b16 %v1245, %v1237
    %v2054 = vpack.c.b16 %v1246, %v1238
    %v2055 = vpack.c.b16 %v1255, %v1247
    %v2056 = vpack.c.b16 %v1256, %v1248
    %v2057 = vpack.c.b16 %v1257, %v1249
    %v2058 = vpack.c.b16 %v1258, %v1250
    %v2059 = vpack.c.b16 %v1259, %v1251
    %v2060 = vpack.c.b16 %v1260, %v1252
    %v2061 = vpack.c.b16 %v1261, %v1253
    %v2062 = vpack.c.b16 %v1262, %v1254
    %v2063 = vpack.c.b16 %v1271, %v1263
    %v2064 = vpack.c.b16 %v1272, %v1264
    %v2065 = vpack.c.b16 %v1273, %v1265
    %v2066 = vpack.c.b16 %v1274, %v1266
    %v2067 = vpack.c.b16 %v1275, %v1267
    %v2068 = vpack.c.b16 %v1276, %v1268
    %v2069 = vpack.c.b16 %v1277, %v1269
    %v2070 = vpack.c.b16 %v1278, %v1270
    %v2071 = vpack.c.b16 %v1287, %v1279
    %v2072 = vpack.c.b16 %v1288, %v1280
    %v2073 = vpack.c.b16 %v1289, %v1281
    %v2074 = vpack.c.b16 %v1290, %v1282
    %v2075 = vpack.c.b16 %v1291, %v1283
    %v2076 = vpack.c.b16 %v1292, %v1284
    %v2077 = vpack.c.b16 %v1293, %v1285
    %v2078 = vpack.c.b16 %v1294, %v1286
    %v2079 = vpack.c.b16 %v1303, %v1295
    %v2080 = vpack.c.b16 %v1304, %v1296
    %v2081 = vpack.c.b16 %v1305, %v1297
    %v2082 = vpack.c.b16 %v1306, %v1298
    %v2083 = vpack.c.b16 %v1307, %v1299
    %v2084 = vpack.c.b16 %v1308, %v1300
    %v2085 = vpack.c.b16 %v1309, %v1301
    %v2086 = vpack.c.b16 %v1310, %v1302
    %v2087 = vpack.c.b16 %v1319, %v1311
    %v2088 = vpack.c.b16 %v1320, %v1312
    %v2089 = vpack.c.b16 %v1321, %v1313
    %v2090 = vpack.c.b16 %v1322, %v1314
    %v2091 = vpack.c.b16 %v1323, %v1315
    %v2092 = vpack.c.b16 %v1324, %v1316
    %v2093 = vpack.c.b16 %v1325, %v1317
    %v2094 = vpack.c.b16 %v1326, %v1318
    %v2095 = vpack.c.b16 %v1335, %v1327
    %v2096 = vpack.c.b16 %v1336, %v1328
    %v2097 = vpack.c.b16 %v1337, %v1329
    %v2098 = vpack.c.b16 %v1338, %v1330
    %v2099 = vpack.c.b16 %v1339, %v1331
    %v2100 = vpack.c.b16 %v1340, %v1332
    %v2101 = vpack.c.b16 %v1341, %v1333
    %v2102 = vpack.c.b16 %v1342, %v1334
    %v2103 = vpack.c.b16 %v1351, %v1343
    %v2104 = vpack.c.b16 %v1352, %v1344
    %v2105 = vpack.c.b16 %v1353, %v1345
    %v2106 = vpack.c.b16 %v1354, %v1346
    %v2107 = vpack.c.b16 %v1355, %v1347
    %v2108 = vpack.c.b16 %v1356, %v1348
    %v2109 = vpack.c.b16 %v1357, %v1349
    %v2110 = vpack.c.b16 %v1358, %v1350
    %v2111 = vpack.c.b16 %v1367, %v1359
    %v2112 = vpack.c.b16 %v1368, %v1360
    %v2113 = vpack.c.b16 %v1369, %v1361
    %v2114 = vpack.c.b16 %v1370, %v1362
    %v2115 = vpack.c.b16 %v1371, %v1363
    %v2116 = vpack.c.b16 %v1372, %v1364
    %v2117 = vpack.c.b16 %v1373, %v1365
    %v2118 = vpack.c.b16 %v1374, %v1366
    %v2119 = vpack.c.b16 %v1383, %v1375
    %v2120 = vpack.c.b16 %v1384, %v1376
    %v2121 = vpack.c.b16 %v1385, %v1377
    %v2122 = vpack.c.b16 %v1386, %v1378
    %v2123 = vpack.c.b16 %v1387, %v1379
    %v2124 = vpack.c.b16 %v1388, %v1380
    %v2125 = vpack.c.b16 %v1389, %v1381
    %v2126 = vpack.c.b16 %v1390, %v1382
    %v2127 = vpack.c.b16 %v1399, %v1391
    %v2128 = vpack.c.b16 %v1400, %v1392
    %v2129 = vpack.c.b16 %v1401, %v1393
    %v2130 = vpack.c.b16 %v1402, %v1394
    %v2131 = vpack.c.b16 %v1403, %v1395
    %v2132 = vpack.c.b16 %v1404, %v1396
    %v2133 = vpack.c.b16 %v1405, %v1397
    %v2134 = vpack.c.b16 %v1406, %v1398
    %v2135 = vpack.c.b16 %v1415, %v1407
    %v2136 = vpack.c.b16 %v1416, %v1408
    %v2137 = vpack.c.b16 %v1417, %v1409
    %v2138 = vpack.c.b16 %v1418, %v1410
    %v2139 = vpack.c.b16 %v1419, %v1411
    %v2140 = vpack.c.b16 %v1420, %v1412
    %v2141 = vpack.c.b16 %v1421, %v1413
    %v2142 = vpack.c.b16 %v1422, %v1414
    %v2143 = vpack.c.b16 %v1431, %v1423
    %v2144 = vpack.c.b16 %v1432, %v1424
    %v2145 = vpack.c.b16 %v1433, %v1425
    %v2146 = vpack.c.b16 %v1434, %v1426
    %v2147 = vpack.c.b16 %v1435, %v1427
    %v2148 = vpack.c.b16 %v1436, %v1428
    %v2149 = vpack.c.b16 %v1437, %v1429
    %v2150 = vpack.c.b16 %v1438, %v1430
    %v2151 = vpack.c.b16 %v1447, %v1439
    %v2152 = vpack.c.b16 %v1448, %v1440
    %v2153 = vpack.c.b16 %v1449, %v1441
    %v2154 = vpack.c.b16 %v1450, %v1442
    %v2155 = vpack.c.b16 %v1451, %v1443
    %v2156 = vpack.c.b16 %v1452, %v1444
    %v2157 = vpack.c.b16 %v1453, %v1445
    %v2158 = vpack.c.b16 %v1454, %v1446
    %v2159 = vpack.c.b16 %v1463, %v1455
    %v2160 = vpack.c.b16 %v1464, %v1456
    %v2161 = vpack.c.b16 %v1465, %v1457
    %v2162 = vpack.c.b16 %v1466, %v1458
    %v2163 = vpack.c.b16 %v1467, %v1459
    %v2164 = vpack.c.b16 %v1468, %v1460
    %v2165 = vpack.c.b16 %v1469, %v1461
    %v2166 = vpack.c.b16 %v1470, %v1462
    %v2167 = vpack.c.b16 %v1479, %v1471
    %v2168 = vpack.c.b16 %v1480, %v1472
    %v2169 = vpack.c.b16 %v1481, %v1473
    %v2170 = vpack.c.b16 %v1482, %v1474
    %v2171 = vpack.c.b16 %v1483, %v1475
    %v2172 = vpack.c.b16 %v1484, %v1476
    %v2173 = vpack.c.b16 %v1485, %v1477
    %v2174 = vpack.c.b16 %v1486, %v1478
    %v2175 = vpack.c.b16 %v1495, %v1487
    %v2176 = vpack.c.b16 %v1496, %v1488
    %v2177 = vpack.c.b16 %v1497, %v1489
    %v2178 = vpack.c.b16 %v1498, %v1490
    %v2179 = vpack.c.b16 %v1499, %v1491
    %v2180 = vpack.c.b16 %v1500, %v1492
    %v2181 = vpack.c.b16 %v1501, %v1493
    %v2182 = vpack.c.b16 %v1502, %v1494
    %v2183 = vpack.c.b16 %v1511, %v1503
    %v2184 = vpack.c.b16 %v1512, %v1504
    %v2185 = vpack.c.b16 %v1513, %v1505
    %v2186 = vpack.c.b16 %v1514, %v1506
    %v2187 = vpack.c.b16 %v1515, %v1507
    %v2188 = vpack.c.b16 %v1516, %v1508
    %v2189 = vpack.c.b16 %v1517, %v1509
    %v2190 = vpack.c.b16 %v1518, %v1510
    %v2191 = vpack.c.b16 %v1527, %v1519
    %v2192 = vpack.c.b16 %v1528, %v1520
    %v2193 = vpack.c.b16 %v1529, %v1521
    %v2194 = vpack.c.b16 %v1530, %v1522
    %v2195 = vpack.c.b16 %v1531, %v1523
    %v2196 = vpack.c.b16 %v1532, %v1524
    %v2197 = vpack.c.b16 %v1533, %v1525
    %v2198 = vpack.c.b16 %v1534, %v1526
    %v2199 = vpack.c.b16 %v1543, %v1535
    %v2200 = vpack.c.b16 %v1544, %v1536
    %v2201 = vpack.c.b16 %v1545, %v1537
    %v2202 = vpack.c.b16 %v1546, %v1538
    %v2203 = vpack.c.b16 %v1547, %v1539
    %v2204 = vpack.c.b16 %v1548, %v1540
    %v2205 = vpack.c.b16 %v1549, %v1541
    %v2206 = vpack.c.b16 %v1550, %v1542
    %v2207 = vpack.c.b16 %v1559, %v1551
    %v2208 = vpack.c.b16 %v1560, %v1552
    %v2209 = vpack.c.b16 %v1561, %v1553
    %v2210 = vpack.c.b16 %v1562, %v1554
    %v2211 = vpack.c.b16 %v1563, %v1555
    %v2212 = vpack.c.b16 %v1564, %v1556
    %v2213 = vpack.c.b16 %v1565, %v1557
    %v2214 = vpack.c.b16 %v1566, %v1558
    %v2215 = vpack.c.b16 %v1575, %v1567
    %v2216 = vpack.c.b16 %v1576, %v1568
    %v2217 = vpack.c.b16 %v1577, %v1569
    %v2218 = vpack.c.b16 %v1578, %v1570
    %v2219 = vpack.c.b16 %v1579, %v1571
    %v2220 = vpack.c.b16 %v1580, %v1572
    %v2221 = vpack.c.b16 %v1581, %v1573
    %v2222 = vpack.c.b16 %v1582, %v1574
    %v2223 = vpack.c.b16 %v1591, %v1583
    %v2224 = vpack.c.b16 %v1592, %v1584
    %v2225 = vpack.c.b16 %v1593, %v1585
    %v2226 = vpack.c.b16 %v1594, %v1586
    %v2227 = vpack.c.b16 %v1595, %v1587
    %v2228 = vpack.c.b16 %v1596, %v1588
    %v2229 = vpack.c.b16 %v1597, %v1589
    %v2230 = vpack.c.b16 %v1598, %v1590
    %v2231 = vpack.c.b16 %v1607, %v1599
    %v2232 = vpack.c.b16 %v1608, %v1600
    %v2233 = vpack.c.b16 %v1609, %v1601
    %v2234 = vpack.c.b16 %v1610, %v1602
    %v2235 = vpack.c.b16 %v1611, %v1603
    %v2236 = vpack.c.b16 %v1612, %v1604
    %v2237 = vpack.c.b16 %v1613, %v1605
    %v2238 = vpack.c.b16 %v1614, %v1606
    %v2239 = vpack.c.b16 %v1623, %v1615
    %v2240 = vpack.c.b16 %v1624, %v1616
    %v2241 = vpack.c.b16 %v1625, %v1617
    %v2242 = vpack.c.b16 %v1626, %v1618
    %v2243 = vpack.c.b16 %v1627, %v1619
    %v2244 = vpack.c.b16 %v1628, %v1620
    %v2245 = vpack.c.b16 %v1629, %v1621
    %v2246 = vpack.c.b16 %v1630, %v1622
    %v2247 = vpack.c.b16 %v1639, %v1631
    %v2248 = vpack.c.b16 %v1640, %v1632
    %v2249 = vpack.c.b16 %v1641, %v1633
    %v2250 = vpack.c.b16 %v1642, %v1634
    %v2251 = vpack.c.b16 %v1643, %v1635
    %v2252 = vpack.c.b16 %v1644, %v1636
    %v2253 = vpack.c.b16 %v1645, %v1637
    %v2254 = vpack.c.b16 %v1646, %v1638
    %v2255 = vpack.c.b16 %v1655, %v1647
    %v2256 = vpack.c.b16 %v1656, %v1648
    %v2257 = vpack.c.b16 %v1657, %v1649
    %v2258 = vpack.c.b16 %v1658, %v1650
    %v2259 = vpack.c.b16 %v1659, %v1651
    %v2260 = vpack.c.b16 %v1660, %v1652
    %v2261 = vpack.c.b16 %v1661, %v1653
    %v2262 = vpack.c.b16 %v1662, %v1654
    %v2263 = vpack.c.b16 %v1671, %v1663
    %v2264 = vpack.c.b16 %v1672, %v1664
    %v2265 = vpack.c.b16 %v1673, %v1665
    %v2266 = vpack.c.b16 %v1674, %v1666
    %v2267 = vpack.c.b16 %v1675, %v1667
    %v2268 = vpack.c.b16 %v1676, %v1668
    %v2269 = vpack.c.b16 %v1677, %v1669
    %v2270 = vpack.c.b16 %v1678, %v1670
    %v2271 = vpack.c.b16 %v1687, %v1679
    %v2272 = vpack.c.b16 %v1688, %v1680
    %v2273 = vpack.c.b16 %v1689, %v1681
    %v2274 = vpack.c.b16 %v1690, %v1682
    %v2275 = vpack.c.b16 %v1691, %v1683
    %v2276 = vpack.c.b16 %v1692, %v1684
    %v2277 = vpack.c.b16 %v1693, %v1685
    %v2278 = vpack.c.b16 %v1694, %v1686
    %v2279 = vpack.c.b16 %v1703, %v1695
    %v2280 = vpack.c.b16 %v1704, %v1696
    %v2281 = vpack.c.b16 %v1705, %v1697
    %v2282 = vpack.c.b16 %v1706, %v1698
    %v2283 = vpack.c.b16 %v1707, %v1699
    %v2284 = vpack.c.b16 %v1708, %v1700
    %v2285 = vpack.c.b16 %v1709, %v1701
    %v2286 = vpack.c.b16 %v1710, %v1702
    %v2287 = vpack.c.b16 %v1719, %v1711
    %v2288 = vpack.c.b16 %v1720, %v1712
    %v2289 = vpack.c.b16 %v1721, %v1713
    %v2290 = vpack.c.b16 %v1722, %v1714
    %v2291 = vpack.c.b16 %v1723, %v1715
    %v2292 = vpack.c.b16 %v1724, %v1716
    %v2293 = vpack.c.b16 %v1725, %v1717
    %v2294 = vpack.c.b16 %v1726, %v1718
    %v2295 = vpack.c.b16 %v1735, %v1727
    %v2296 = vpack.c.b16 %v1736, %v1728
    %v2297 = vpack.c.b16 %v1737, %v1729
    %v2298 = vpack.c.b16 %v1738, %v1730
    %v2299 = vpack.c.b16 %v1739, %v1731
    %v2300 = vpack.c.b16 %v1740, %v1732
    %v2301 = vpack.c.b16 %v1741, %v1733
    %v2302 = vpack.c.b16 %v1742, %v1734
    %v2303 = vpack.c.b16 %v1751, %v1743
    %v2304 = vpack.c.b16 %v1752, %v1744
    %v2305 = vpack.c.b16 %v1753, %v1745
    %v2306 = vpack.c.b16 %v1754, %v1746
    %v2307 = vpack.c.b16 %v1755, %v1747
    %v2308 = vpack.c.b16 %v1756, %v1748
    %v2309 = vpack.c.b16 %v1757, %v1749
    %v2310 = vpack.c.b16 %v1758, %v1750
    %v2311 = vpack.c.b16 %v1767, %v1759
    %v2312 = vpack.c.b16 %v1768, %v1760
    %v2313 = vpack.c.b16 %v1769, %v1761
    %v2314 = vpack.c.b16 %v1770, %v1762
    %v2315 = vpack.c.b16 %v1771, %v1763
    %v2316 = vpack.c.b16 %v1772, %v1764
    %v2317 = vpack.c.b16 %v1773, %v1765
    %v2318 = vpack.c.b16 %v1774, %v1766
    %v2319 = vpack.c.b16 %v1783, %v1775
    %v2320 = vpack.c.b16 %v1784, %v1776
    %v2321 = vpack.c.b16 %v1785, %v1777
    %v2322 = vpack.c.b16 %v1786, %v1778
    %v2323 = vpack.c.b16 %v1787, %v1779
    %v2324 = vpack.c.b16 %v1788, %v1780
    %v2325 = vpack.c.b16 %v1789, %v1781
    %v2326 = vpack.c.b16 %v1790, %v1782
    %v2327 = vpack.c.b16 %v1799, %v1791
    %v2328 = vpack.c.b16 %v1800, %v1792
    %v2329 = vpack.c.b16 %v1801, %v1793
    %v2330 = vpack.c.b16 %v1802, %v1794
    %v2331 = vpack.c.b16 %v1803, %v1795
    %v2332 = vpack.c.b16 %v1804, %v1796
    %v2333 = vpack.c.b16 %v1805, %v1797
    %v2334 = vpack.c.b16 %v1806, %v1798
    %v2335 = vpack.c.b16 %v1815, %v1807
    %v2336 = vpack.c.b16 %v1816, %v1808
    %v2337 = vpack.c.b16 %v1817, %v1809
    %v2338 = vpack.c.b16 %v1818, %v1810
    %v2339 = vpack.c.b16 %v1819, %v1811
    %v2340 = vpack.c.b16 %v1820, %v1812
    %v2341 = vpack.c.b16 %v1821, %v1813
    %v2342 = vpack.c.b16 %v1822, %v1814
    %v2343 = vpack.c.b16 %v1831, %v1823
    %v2344 = vpack.c.b16 %v1832, %v1824
    %v2345 = vpack.c.b16 %v1833, %v1825
    %v2346 = vpack.c.b16 %v1834, %v1826
    %v2347 = vpack.c.b16 %v1835, %v1827
    %v2348 = vpack.c.b16 %v1836, %v1828
    %v2349 = vpack.c.b16 %v1837, %v1829
    %v2350 = vpack.c.b16 %v1838, %v1830
    %v2351 = vpack.c.b16 %v1847, %v1839
    %v2352 = vpack.c.b16 %v1848, %v1840
    %v2353 = vpack.c.b16 %v1849, %v1841
    %v2354 = vpack.c.b16 %v1850, %v1842
    %v2355 = vpack.c.b16 %v1851, %v1843
    %v2356 = vpack.c.b16 %v1852, %v1844
    %v2357 = vpack.c.b16 %v1853, %v1845
    %v2358 = vpack.c.b16 %v1854, %v1846
    %v2359 = vpack.c.b16 %v1863, %v1855
    %v2360 = vpack.c.b16 %v1864, %v1856
    %v2361 = vpack.c.b16 %v1865, %v1857
    %v2362 = vpack.c.b16 %v1866, %v1858
    %v2363 = vpack.c.b16 %v1867, %v1859
    %v2364 = vpack.c.b16 %v1868, %v1860
    %v2365 = vpack.c.b16 %v1869, %v1861
    %v2366 = vpack.c.b16 %v1870, %v1862
    %v2367 = vpack.c.b16 %v1879, %v1871
    %v2368 = vpack.c.b16 %v1880, %v1872
    %v2369 = vpack.c.b16 %v1881, %v1873
    %v2370 = vpack.c.b16 %v1882, %v1874
    %v2371 = vpack.c.b16 %v1883, %v1875
    %v2372 = vpack.c.b16 %v1884, %v1876
    %v2373 = vpack.c.b16 %v1885, %v1877
    %v2374 = vpack.c.b16 %v1886, %v1878
    %v2375 = vpack.c.b16 %v1895, %v1887
    %v2376 = vpack.c.b16 %v1896, %v1888
    %v2377 = vpack.c.b16 %v1897, %v1889
    %v2378 = vpack.c.b16 %v1898, %v1890
    %v2379 = vpack.c.b16 %v1899, %v1891
    %v2380 = vpack.c.b16 %v1900, %v1892
    %v2381 = vpack.c.b16 %v1901, %v1893
    %v2382 = vpack.c.b16 %v1902, %v1894
    %v2383 = vpack.c.b16 %v1911, %v1903
    %v2384 = vpack.c.b16 %v1912, %v1904
    %v2385 = vpack.c.b16 %v1913, %v1905
    %v2386 = vpack.c.b16 %v1914, %v1906
    %v2387 = vpack.c.b16 %v1915, %v1907
    %v2388 = vpack.c.b16 %v1916, %v1908
    %v2389 = vpack.c.b16 %v1917, %v1909
    %v2390 = vpack.c.b16 %v1918, %v1910
    %v2391 = vpack.c.b16 %v1927, %v1919
    %v2392 = vpack.c.b16 %v1928, %v1920
    %v2393 = vpack.c.b16 %v1929, %v1921
    %v2394 = vpack.c.b16 %v1930, %v1922
    %v2395 = vpack.c.b16 %v1931, %v1923
    %v2396 = vpack.c.b16 %v1932, %v1924
    %v2397 = vpack.c.b16 %v1933, %v1925
    %v2398 = vpack.c.b16 %v1934, %v1926
    %v2399 = vpack.c.b16 %v1943, %v1935
    %v2400 = vpack.c.b16 %v1944, %v1936
    %v2401 = vpack.c.b16 %v1945, %v1937
    %v2402 = vpack.c.b16 %v1946, %v1938
    %v2403 = vpack.c.b16 %v1947, %v1939
    %v2404 = vpack.c.b16 %v1948, %v1940
    %v2405 = vpack.c.b16 %v1949, %v1941
    %v2406 = vpack.c.b16 %v1950, %v1942
    %v2407 = vpack.c.b16 %v1959, %v1951
    %v2408 = vpack.c.b16 %v1960, %v1952
    %v2409 = vpack.c.b16 %v1961, %v1953
    %v2410 = vpack.c.b16 %v1962, %v1954
    %v2411 = vpack.c.b16 %v1963, %v1955
    %v2412 = vpack.c.b16 %v1964, %v1956
    %v2413 = vpack.c.b16 %v1965, %v1957
    %v2414 = vpack.c.b16 %v1966, %v1958
    %2863 = vmatprep.subr.bf16.mxu0 %v2024
    %2864 = vmatpush1.bf16.msra.mxu0 %v2023
    %2865 = vmatprep.subr.bf16.mxu0 %v2016
    %2866 = vmatpush1.bf16.msra.mxu0 %v2015
    %2867 = vmatprep.subr.bf16.mxu0 %v2008
    %2868 = vmatpush1.bf16.msra.mxu0 %v2007
    %2869 = vmatprep.subr.bf16.mxu0 %v2000
    %2870 = vmatpush1.bf16.msra.mxu0 %v1999
    %2871 = vmatprep.subr.bf16.mxu0 %v1992
    %2872 = vmatpush1.bf16.msra.mxu0 %v1991
    %2873 = vmatprep.subr.bf16.mxu0 %v1984
    %2874 = vmatpush1.bf16.msra.mxu0 %v1983
    %2875 = vmatprep.subr.bf16.mxu0 %v1976
    %2876 = vmatpush1.bf16.msra.mxu0 %v1975
    %2877 = vmatprep.subr.bf16.mxu0 %v1968
    %2878 = vmatpush1.bf16.msra.mxu0 %v1967
    %2879 = vmatprep.subr.bf16.mxu0 %v2088
    %2880 = vmatpush2.bf16.msra.mxu0 %v2087
    %2881 = vmatprep.subr.bf16.mxu0 %v2080
    %2882 = vmatpush2.bf16.msra.mxu0 %v2079
    %2883 = vmatprep.subr.bf16.mxu0 %v2072
    %2884 = vmatpush2.bf16.msra.mxu0 %v2071
    %2885 = vmatprep.subr.bf16.mxu0 %v2064
    %2886 = vmatpush2.bf16.msra.mxu0 %v2063
    %2887 = vmatprep.subr.bf16.mxu0 %v2056
    %2888 = vmatpush2.bf16.msra.mxu0 %v2055
    %2889 = vmatprep.subr.bf16.mxu0 %v2048
    %2890 = vmatpush2.bf16.msra.mxu0 %v2047
    %2891 = vmatprep.subr.bf16.mxu0 %v2040
    %2892 = vmatpush2.bf16.msra.mxu0 %v2039
    %2893 = vmatprep.subr.bf16.mxu0 %v2032
    %2894 = vmatpush2.bf16.msra.mxu0 %v2031
    %2895 = vmatprep.mubr.bf16.mxu0 %v610
    %2896 = vmatmul.mubr.bf16.gmra.mxu0 %v609
    %v2897 = vpop.f32.mrf.mxu0
    %v2898 = vadd.f32 %v561, %v2897
    %v2899 = vpop.f32.mrf.mxu0
    %v2900 = vadd.f32 %v565, %v2899
    %v2901 = vpop.f32.mrf.mxu0
    %v2902 = vpop.f32.mrf.mxu0
    %2903 = vdwg.mxu0
    %2904 = vmatprep.subr.bf16.mxu0 %v2152
    %2905 = vmatpush1.bf16.msra.mxu0 %v2151
    %2906 = vmatprep.subr.bf16.mxu0 %v2144
    %2907 = vmatpush1.bf16.msra.mxu0 %v2143
    %2908 = vmatprep.subr.bf16.mxu0 %v2136
    %2909 = vmatpush1.bf16.msra.mxu0 %v2135
    %2910 = vmatprep.subr.bf16.mxu0 %v2128
    %2911 = vmatpush1.bf16.msra.mxu0 %v2127
    %2912 = vmatprep.subr.bf16.mxu0 %v2120
    %2913 = vmatpush1.bf16.msra.mxu0 %v2119
    %2914 = vmatprep.subr.bf16.mxu0 %v2112
    %2915 = vmatpush1.bf16.msra.mxu0 %v2111
    %2916 = vmatprep.subr.bf16.mxu0 %v2104
    %2917 = vmatpush1.bf16.msra.mxu0 %v2103
    %2918 = vmatprep.subr.bf16.mxu0 %v2096
    %2919 = vmatpush1.bf16.msra.mxu0 %v2095
    %2920 = vmatprep.subr.bf16.mxu0 %v2216
    %2921 = vmatpush2.bf16.msra.mxu0 %v2215
    %2922 = vmatprep.subr.bf16.mxu0 %v2208
    %2923 = vmatpush2.bf16.msra.mxu0 %v2207
    %2924 = vmatprep.subr.bf16.mxu0 %v2200
    %2925 = vmatpush2.bf16.msra.mxu0 %v2199
    %2926 = vmatprep.subr.bf16.mxu0 %v2192
    %2927 = vmatpush2.bf16.msra.mxu0 %v2191
    %2928 = vmatprep.subr.bf16.mxu0 %v2184
    %2929 = vmatpush2.bf16.msra.mxu0 %v2183
    %2930 = vmatprep.subr.bf16.mxu0 %v2176
    %2931 = vmatpush2.bf16.msra.mxu0 %v2175
    %2932 = vmatprep.subr.bf16.mxu0 %v2168
    %2933 = vmatpush2.bf16.msra.mxu0 %v2167
    %2934 = vmatprep.subr.bf16.mxu0 %v2160
    %2935 = vmatpush2.bf16.msra.mxu0 %v2159
    %2936 = vmatprep.mubr.bf16.mxu0 %v612
    %2937 = vmatmul.mubr.bf16.gmra.mxu0 %v611
    %v2938 = vpop.f32.mrf.mxu0
    %v2939 = vadd.f32 %v2898, %v2938
    %v2940 = vpop.f32.mrf.mxu0
    %v2941 = vadd.f32 %v2900, %v2940
    %v2942 = vpop.f32.mrf.mxu0
    %v2943 = vpop.f32.mrf.mxu0
    %2944 = vdwg.mxu0
    %2945 = vmatprep.subr.bf16.mxu0 %v2280
    %2946 = vmatpush1.bf16.msra.mxu0 %v2279
    %2947 = vmatprep.subr.bf16.mxu0 %v2272
    %2948 = vmatpush1.bf16.msra.mxu0 %v2271
    %2949 = vmatprep.subr.bf16.mxu0 %v2264
    %2950 = vmatpush1.bf16.msra.mxu0 %v2263
    %2951 = vmatprep.subr.bf16.mxu0 %v2256
    %2952 = vmatpush1.bf16.msra.mxu0 %v2255
    %2953 = vmatprep.subr.bf16.mxu0 %v2248
    %2954 = vmatpush1.bf16.msra.mxu0 %v2247
    %2955 = vmatprep.subr.bf16.mxu0 %v2240
    %2956 = vmatpush1.bf16.msra.mxu0 %v2239
    %2957 = vmatprep.subr.bf16.mxu0 %v2232
    %2958 = vmatpush1.bf16.msra.mxu0 %v2231
    %2959 = vmatprep.subr.bf16.mxu0 %v2224
    %2960 = vmatpush1.bf16.msra.mxu0 %v2223
    %2961 = vmatprep.subr.bf16.mxu0 %v2344
    %2962 = vmatpush2.bf16.msra.mxu0 %v2343
    %2963 = vmatprep.subr.bf16.mxu0 %v2336
    %2964 = vmatpush2.bf16.msra.mxu0 %v2335
    %2965 = vmatprep.subr.bf16.mxu0 %v2328
    %2966 = vmatpush2.bf16.msra.mxu0 %v2327
    %2967 = vmatprep.subr.bf16.mxu0 %v2320
    %2968 = vmatpush2.bf16.msra.mxu0 %v2319
    %2969 = vmatprep.subr.bf16.mxu0 %v2312
    %2970 = vmatpush2.bf16.msra.mxu0 %v2311
    %2971 = vmatprep.subr.bf16.mxu0 %v2304
    %2972 = vmatpush2.bf16.msra.mxu0 %v2303
    %2973 = vmatprep.subr.bf16.mxu0 %v2296
    %2974 = vmatpush2.bf16.msra.mxu0 %v2295
    %2975 = vmatprep.subr.bf16.mxu0 %v2288
    %2976 = vmatpush2.bf16.msra.mxu0 %v2287
    %2977 = vmatprep.mubr.bf16.mxu0 %v614
    %2978 = vmatmul.mubr.bf16.gmra.mxu0 %v613
    %v2979 = vpop.f32.mrf.mxu0
    %v2980 = vadd.f32 %v2939, %v2979
    %v2981 = vpop.f32.mrf.mxu0
    %v2982 = vadd.f32 %v2941, %v2981
    %v2983 = vpop.f32.mrf.mxu0
    %v2984 = vpop.f32.mrf.mxu0
    %2985 = vdwg.mxu0
    %2986 = vmatprep.subr.bf16.mxu0 %v2408
    %2987 = vmatpush1.bf16.msra.mxu0 %v2407
    %2988 = vmatprep.subr.bf16.mxu0 %v2400
    %2989 = vmatpush1.bf16.msra.mxu0 %v2399
    %2990 = vmatprep.subr.bf16.mxu0 %v2392
    %2991 = vmatpush1.bf16.msra.mxu0 %v2391
    %2992 = vmatprep.subr.bf16.mxu0 %v2384
    %2993 = vmatpush1.bf16.msra.mxu0 %v2383
    %2994 = vmatprep.subr.bf16.mxu0 %v2376
    %2995 = vmatpush1.bf16.msra.mxu0 %v2375
    %2996 = vmatprep.subr.bf16.mxu0 %v2368
    %2997 = vmatpush1.bf16.msra.mxu0 %v2367
    %2998 = vmatprep.subr.bf16.mxu0 %v2360
    %2999 = vmatpush1.bf16.msra.mxu0 %v2359
    %3000 = vmatprep.subr.bf16.mxu0 %v2352
    %3001 = vmatpush1.bf16.msra.mxu0 %v2351
    %3002 = vmatprep.subr.bf16.mxu0 0
    %3003 = vmatpush2.bf16.msra.mxu0 0
    %3004 = vmatprep.subr.bf16.mxu0 0
    %3005 = vmatpush2.bf16.msra.mxu0 0
    %3006 = vmatprep.subr.bf16.mxu0 0
    %3007 = vmatpush2.bf16.msra.mxu0 0
    %3008 = vmatprep.subr.bf16.mxu0 0
    %3009 = vmatpush2.bf16.msra.mxu0 0
    %3010 = vmatprep.subr.bf16.mxu0 0
    %3011 = vmatpush2.bf16.msra.mxu0 0
    %3012 = vmatprep.subr.bf16.mxu0 0
    %3013 = vmatpush2.bf16.msra.mxu0 0
    %3014 = vmatprep.subr.bf16.mxu0 0
    %3015 = vmatpush2.bf16.msra.mxu0 0
    %3016 = vmatprep.subr.bf16.mxu0 0
    %3017 = vmatpush2.bf16.msra.mxu0 0
    %3018 = vmatprep.mubr.bf16.mxu0 0
    %3019 = vmatmul.mubr.bf16.gmra.mxu0 %v615
    %v3020 = vpop.f32.mrf.mxu0
    %v3021 = vadd.f32 %v2980, %v3020
    %v3022 = vpop.f32.mrf.mxu0
    %v3023 = vadd.f32 %v2982, %v3022
    %v3024 = vpop.f32.mrf.mxu0
    %v3025 = vpop.f32.mrf.mxu0
    %3026 = vdwg.mxu0
    %3027 = vmatprep.subr.bf16.mxu0 %v2026
    %3028 = vmatpush1.bf16.msra.mxu0 %v2025
    %3029 = vmatprep.subr.bf16.mxu0 %v2018
    %3030 = vmatpush1.bf16.msra.mxu0 %v2017
    %3031 = vmatprep.subr.bf16.mxu0 %v2010
    %3032 = vmatpush1.bf16.msra.mxu0 %v2009
    %3033 = vmatprep.subr.bf16.mxu0 %v2002
    %3034 = vmatpush1.bf16.msra.mxu0 %v2001
    %3035 = vmatprep.subr.bf16.mxu0 %v1994
    %3036 = vmatpush1.bf16.msra.mxu0 %v1993
    %3037 = vmatprep.subr.bf16.mxu0 %v1986
    %3038 = vmatpush1.bf16.msra.mxu0 %v1985
    %3039 = vmatprep.subr.bf16.mxu0 %v1978
    %3040 = vmatpush1.bf16.msra.mxu0 %v1977
    %3041 = vmatprep.subr.bf16.mxu0 %v1970
    %3042 = vmatpush1.bf16.msra.mxu0 %v1969
    %3043 = vmatprep.subr.bf16.mxu0 %v2090
    %3044 = vmatpush2.bf16.msra.mxu0 %v2089
    %3045 = vmatprep.subr.bf16.mxu0 %v2082
    %3046 = vmatpush2.bf16.msra.mxu0 %v2081
    %3047 = vmatprep.subr.bf16.mxu0 %v2074
    %3048 = vmatpush2.bf16.msra.mxu0 %v2073
    %3049 = vmatprep.subr.bf16.mxu0 %v2066
    %3050 = vmatpush2.bf16.msra.mxu0 %v2065
    %3051 = vmatprep.subr.bf16.mxu0 %v2058
    %3052 = vmatpush2.bf16.msra.mxu0 %v2057
    %3053 = vmatprep.subr.bf16.mxu0 %v2050
    %3054 = vmatpush2.bf16.msra.mxu0 %v2049
    %3055 = vmatprep.subr.bf16.mxu0 %v2042
    %3056 = vmatpush2.bf16.msra.mxu0 %v2041
    %3057 = vmatprep.subr.bf16.mxu0 %v2034
    %3058 = vmatpush2.bf16.msra.mxu0 %v2033
    %3059 = vmatprep.mubr.bf16.mxu0 %v610
    %3060 = vmatmul.mubr.bf16.gmra.mxu0 %v609
    %v3061 = vpop.f32.mrf.mxu0
    %v3062 = vadd.f32 %v569, %v3061
    %v3063 = vpop.f32.mrf.mxu0
    %v3064 = vadd.f32 %v573, %v3063
    %v3065 = vpop.f32.mrf.mxu0
    %v3066 = vpop.f32.mrf.mxu0
    %3067 = vdwg.mxu0
    %3068 = vmatprep.subr.bf16.mxu0 %v2154
    %3069 = vmatpush1.bf16.msra.mxu0 %v2153
    %3070 = vmatprep.subr.bf16.mxu0 %v2146
    %3071 = vmatpush1.bf16.msra.mxu0 %v2145
    %3072 = vmatprep.subr.bf16.mxu0 %v2138
    %3073 = vmatpush1.bf16.msra.mxu0 %v2137
    %3074 = vmatprep.subr.bf16.mxu0 %v2130
    %3075 = vmatpush1.bf16.msra.mxu0 %v2129
    %3076 = vmatprep.subr.bf16.mxu0 %v2122
    %3077 = vmatpush1.bf16.msra.mxu0 %v2121
    %3078 = vmatprep.subr.bf16.mxu0 %v2114
    %3079 = vmatpush1.bf16.msra.mxu0 %v2113
    %3080 = vmatprep.subr.bf16.mxu0 %v2106
    %3081 = vmatpush1.bf16.msra.mxu0 %v2105
    %3082 = vmatprep.subr.bf16.mxu0 %v2098
    %3083 = vmatpush1.bf16.msra.mxu0 %v2097
    %3084 = vmatprep.subr.bf16.mxu0 %v2218
    %3085 = vmatpush2.bf16.msra.mxu0 %v2217
    %3086 = vmatprep.subr.bf16.mxu0 %v2210
    %3087 = vmatpush2.bf16.msra.mxu0 %v2209
    %3088 = vmatprep.subr.bf16.mxu0 %v2202
    %3089 = vmatpush2.bf16.msra.mxu0 %v2201
    %3090 = vmatprep.subr.bf16.mxu0 %v2194
    %3091 = vmatpush2.bf16.msra.mxu0 %v2193
    %3092 = vmatprep.subr.bf16.mxu0 %v2186
    %3093 = vmatpush2.bf16.msra.mxu0 %v2185
    %3094 = vmatprep.subr.bf16.mxu0 %v2178
    %3095 = vmatpush2.bf16.msra.mxu0 %v2177
    %3096 = vmatprep.subr.bf16.mxu0 %v2170
    %3097 = vmatpush2.bf16.msra.mxu0 %v2169
    %3098 = vmatprep.subr.bf16.mxu0 %v2162
    %3099 = vmatpush2.bf16.msra.mxu0 %v2161
    %3100 = vmatprep.mubr.bf16.mxu0 %v612
    %3101 = vmatmul.mubr.bf16.gmra.mxu0 %v611
    %v3102 = vpop.f32.mrf.mxu0
    %v3103 = vadd.f32 %v3062, %v3102
    %v3104 = vpop.f32.mrf.mxu0
    %v3105 = vadd.f32 %v3064, %v3104
    %v3106 = vpop.f32.mrf.mxu0
    %v3107 = vpop.f32.mrf.mxu0
    %3108 = vdwg.mxu0
    %3109 = vmatprep.subr.bf16.mxu0 %v2282
    %3110 = vmatpush1.bf16.msra.mxu0 %v2281
    %3111 = vmatprep.subr.bf16.mxu0 %v2274
    %3112 = vmatpush1.bf16.msra.mxu0 %v2273
    %3113 = vmatprep.subr.bf16.mxu0 %v2266
    %3114 = vmatpush1.bf16.msra.mxu0 %v2265
    %3115 = vmatprep.subr.bf16.mxu0 %v2258
    %3116 = vmatpush1.bf16.msra.mxu0 %v2257
    %3117 = vmatprep.subr.bf16.mxu0 %v2250
    %3118 = vmatpush1.bf16.msra.mxu0 %v2249
    %3119 = vmatprep.subr.bf16.mxu0 %v2242
    %3120 = vmatpush1.bf16.msra.mxu0 %v2241
    %3121 = vmatprep.subr.bf16.mxu0 %v2234
    %3122 = vmatpush1.bf16.msra.mxu0 %v2233
    %3123 = vmatprep.subr.bf16.mxu0 %v2226
    %3124 = vmatpush1.bf16.msra.mxu0 %v2225
    %3125 = vmatprep.subr.bf16.mxu0 %v2346
    %3126 = vmatpush2.bf16.msra.mxu0 %v2345
    %3127 = vmatprep.subr.bf16.mxu0 %v2338
    %3128 = vmatpush2.bf16.msra.mxu0 %v2337
    %3129 = vmatprep.subr.bf16.mxu0 %v2330
    %3130 = vmatpush2.bf16.msra.mxu0 %v2329
    %3131 = vmatprep.subr.bf16.mxu0 %v2322
    %3132 = vmatpush2.bf16.msra.mxu0 %v2321
    %3133 = vmatprep.subr.bf16.mxu0 %v2314
    %3134 = vmatpush2.bf16.msra.mxu0 %v2313
    %3135 = vmatprep.subr.bf16.mxu0 %v2306
    %3136 = vmatpush2.bf16.msra.mxu0 %v2305
    %3137 = vmatprep.subr.bf16.mxu0 %v2298
    %3138 = vmatpush2.bf16.msra.mxu0 %v2297
    %3139 = vmatprep.subr.bf16.mxu0 %v2290
    %3140 = vmatpush2.bf16.msra.mxu0 %v2289
    %3141 = vmatprep.mubr.bf16.mxu0 %v614
    %3142 = vmatmul.mubr.bf16.gmra.mxu0 %v613
    %v3143 = vpop.f32.mrf.mxu0
    %v3144 = vadd.f32 %v3103, %v3143
    %v3145 = vpop.f32.mrf.mxu0
    %v3146 = vadd.f32 %v3105, %v3145
    %v3147 = vpop.f32.mrf.mxu0
    %v3148 = vpop.f32.mrf.mxu0
    %3149 = vdwg.mxu0
    %3150 = vmatprep.subr.bf16.mxu0 %v2410
    %3151 = vmatpush1.bf16.msra.mxu0 %v2409
    %3152 = vmatprep.subr.bf16.mxu0 %v2402
    %3153 = vmatpush1.bf16.msra.mxu0 %v2401
    %3154 = vmatprep.subr.bf16.mxu0 %v2394
    %3155 = vmatpush1.bf16.msra.mxu0 %v2393
    %3156 = vmatprep.subr.bf16.mxu0 %v2386
    %3157 = vmatpush1.bf16.msra.mxu0 %v2385
    %3158 = vmatprep.subr.bf16.mxu0 %v2378
    %3159 = vmatpush1.bf16.msra.mxu0 %v2377
    %3160 = vmatprep.subr.bf16.mxu0 %v2370
    %3161 = vmatpush1.bf16.msra.mxu0 %v2369
    %3162 = vmatprep.subr.bf16.mxu0 %v2362
    %3163 = vmatpush1.bf16.msra.mxu0 %v2361
    %3164 = vmatprep.subr.bf16.mxu0 %v2354
    %3165 = vmatpush1.bf16.msra.mxu0 %v2353
    %3166 = vmatprep.subr.bf16.mxu0 0
    %3167 = vmatpush2.bf16.msra.mxu0 0
    %3168 = vmatprep.subr.bf16.mxu0 0
    %3169 = vmatpush2.bf16.msra.mxu0 0
    %3170 = vmatprep.subr.bf16.mxu0 0
    %3171 = vmatpush2.bf16.msra.mxu0 0
    %3172 = vmatprep.subr.bf16.mxu0 0
    %3173 = vmatpush2.bf16.msra.mxu0 0
    %3174 = vmatprep.subr.bf16.mxu0 0
    %3175 = vmatpush2.bf16.msra.mxu0 0
    %3176 = vmatprep.subr.bf16.mxu0 0
    %3177 = vmatpush2.bf16.msra.mxu0 0
    %3178 = vmatprep.subr.bf16.mxu0 0
    %3179 = vmatpush2.bf16.msra.mxu0 0
    %3180 = vmatprep.subr.bf16.mxu0 0
    %3181 = vmatpush2.bf16.msra.mxu0 0
    %3182 = vmatprep.mubr.bf16.mxu0 0
    %3183 = vmatmul.mubr.bf16.gmra.mxu0 %v615
    %v3184 = vpop.f32.mrf.mxu0
    %v3185 = vadd.f32 %v3144, %v3184
    %v3186 = vpop.f32.mrf.mxu0
    %v3187 = vadd.f32 %v3146, %v3186
    %v3188 = vpop.f32.mrf.mxu0
    %v3189 = vpop.f32.mrf.mxu0
    %3190 = vdwg.mxu0
    %3191 = vmatprep.subr.bf16.mxu0 %v2028
    %3192 = vmatpush1.bf16.msra.mxu0 %v2027
    %3193 = vmatprep.subr.bf16.mxu0 %v2020
    %3194 = vmatpush1.bf16.msra.mxu0 %v2019
    %3195 = vmatprep.subr.bf16.mxu0 %v2012
    %3196 = vmatpush1.bf16.msra.mxu0 %v2011
    %3197 = vmatprep.subr.bf16.mxu0 %v2004
    %3198 = vmatpush1.bf16.msra.mxu0 %v2003
    %3199 = vmatprep.subr.bf16.mxu0 %v1996
    %3200 = vmatpush1.bf16.msra.mxu0 %v1995
    %3201 = vmatprep.subr.bf16.mxu0 %v1988
    %3202 = vmatpush1.bf16.msra.mxu0 %v1987
    %3203 = vmatprep.subr.bf16.mxu0 %v1980
    %3204 = vmatpush1.bf16.msra.mxu0 %v1979
    %3205 = vmatprep.subr.bf16.mxu0 %v1972
    %3206 = vmatpush1.bf16.msra.mxu0 %v1971
    %3207 = vmatprep.subr.bf16.mxu0 %v2092
    %3208 = vmatpush2.bf16.msra.mxu0 %v2091
    %3209 = vmatprep.subr.bf16.mxu0 %v2084
    %3210 = vmatpush2.bf16.msra.mxu0 %v2083
    %3211 = vmatprep.subr.bf16.mxu0 %v2076
    %3212 = vmatpush2.bf16.msra.mxu0 %v2075
    %3213 = vmatprep.subr.bf16.mxu0 %v2068
    %3214 = vmatpush2.bf16.msra.mxu0 %v2067
    %3215 = vmatprep.subr.bf16.mxu0 %v2060
    %3216 = vmatpush2.bf16.msra.mxu0 %v2059
    %3217 = vmatprep.subr.bf16.mxu0 %v2052
    %3218 = vmatpush2.bf16.msra.mxu0 %v2051
    %3219 = vmatprep.subr.bf16.mxu0 %v2044
    %3220 = vmatpush2.bf16.msra.mxu0 %v2043
    %3221 = vmatprep.subr.bf16.mxu0 %v2036
    %3222 = vmatpush2.bf16.msra.mxu0 %v2035
    %3223 = vmatprep.mubr.bf16.mxu0 %v610
    %3224 = vmatmul.mubr.bf16.gmra.mxu0 %v609
    %v3225 = vpop.f32.mrf.mxu0
    %v3226 = vadd.f32 %v577, %v3225
    %v3227 = vpop.f32.mrf.mxu0
    %v3228 = vadd.f32 %v581, %v3227
    %v3229 = vpop.f32.mrf.mxu0
    %v3230 = vpop.f32.mrf.mxu0
    %3231 = vdwg.mxu0
    %3232 = vmatprep.subr.bf16.mxu0 %v2156
    %3233 = vmatpush1.bf16.msra.mxu0 %v2155
    %3234 = vmatprep.subr.bf16.mxu0 %v2148
    %3235 = vmatpush1.bf16.msra.mxu0 %v2147
    %3236 = vmatprep.subr.bf16.mxu0 %v2140
    %3237 = vmatpush1.bf16.msra.mxu0 %v2139
    %3238 = vmatprep.subr.bf16.mxu0 %v2132
    %3239 = vmatpush1.bf16.msra.mxu0 %v2131
    %3240 = vmatprep.subr.bf16.mxu0 %v2124
    %3241 = vmatpush1.bf16.msra.mxu0 %v2123
    %3242 = vmatprep.subr.bf16.mxu0 %v2116
    %3243 = vmatpush1.bf16.msra.mxu0 %v2115
    %3244 = vmatprep.subr.bf16.mxu0 %v2108
    %3245 = vmatpush1.bf16.msra.mxu0 %v2107
    %3246 = vmatprep.subr.bf16.mxu0 %v2100
    %3247 = vmatpush1.bf16.msra.mxu0 %v2099
    %3248 = vmatprep.subr.bf16.mxu0 %v2220
    %3249 = vmatpush2.bf16.msra.mxu0 %v2219
    %3250 = vmatprep.subr.bf16.mxu0 %v2212
    %3251 = vmatpush2.bf16.msra.mxu0 %v2211
    %3252 = vmatprep.subr.bf16.mxu0 %v2204
    %3253 = vmatpush2.bf16.msra.mxu0 %v2203
    %3254 = vmatprep.subr.bf16.mxu0 %v2196
    %3255 = vmatpush2.bf16.msra.mxu0 %v2195
    %3256 = vmatprep.subr.bf16.mxu0 %v2188
    %3257 = vmatpush2.bf16.msra.mxu0 %v2187
    %3258 = vmatprep.subr.bf16.mxu0 %v2180
    %3259 = vmatpush2.bf16.msra.mxu0 %v2179
    %3260 = vmatprep.subr.bf16.mxu0 %v2172
    %3261 = vmatpush2.bf16.msra.mxu0 %v2171
    %3262 = vmatprep.subr.bf16.mxu0 %v2164
    %3263 = vmatpush2.bf16.msra.mxu0 %v2163
    %3264 = vmatprep.mubr.bf16.mxu0 %v612
    %3265 = vmatmul.mubr.bf16.gmra.mxu0 %v611
    %v3266 = vpop.f32.mrf.mxu0
    %v3267 = vadd.f32 %v3226, %v3266
    %v3268 = vpop.f32.mrf.mxu0
    %v3269 = vadd.f32 %v3228, %v3268
    %v3270 = vpop.f32.mrf.mxu0
    %v3271 = vpop.f32.mrf.mxu0
    %3272 = vdwg.mxu0
    %3273 = vmatprep.subr.bf16.mxu0 %v2284
    %3274 = vmatpush1.bf16.msra.mxu0 %v2283
    %3275 = vmatprep.subr.bf16.mxu0 %v2276
    %3276 = vmatpush1.bf16.msra.mxu0 %v2275
    %3277 = vmatprep.subr.bf16.mxu0 %v2268
    %3278 = vmatpush1.bf16.msra.mxu0 %v2267
    %3279 = vmatprep.subr.bf16.mxu0 %v2260
    %3280 = vmatpush1.bf16.msra.mxu0 %v2259
    %3281 = vmatprep.subr.bf16.mxu0 %v2252
    %3282 = vmatpush1.bf16.msra.mxu0 %v2251
    %3283 = vmatprep.subr.bf16.mxu0 %v2244
    %3284 = vmatpush1.bf16.msra.mxu0 %v2243
    %3285 = vmatprep.subr.bf16.mxu0 %v2236
    %3286 = vmatpush1.bf16.msra.mxu0 %v2235
    %3287 = vmatprep.subr.bf16.mxu0 %v2228
    %3288 = vmatpush1.bf16.msra.mxu0 %v2227
    %3289 = vmatprep.subr.bf16.mxu0 %v2348
    %3290 = vmatpush2.bf16.msra.mxu0 %v2347
    %3291 = vmatprep.subr.bf16.mxu0 %v2340
    %3292 = vmatpush2.bf16.msra.mxu0 %v2339
    %3293 = vmatprep.subr.bf16.mxu0 %v2332
    %3294 = vmatpush2.bf16.msra.mxu0 %v2331
    %3295 = vmatprep.subr.bf16.mxu0 %v2324
    %3296 = vmatpush2.bf16.msra.mxu0 %v2323
    %3297 = vmatprep.subr.bf16.mxu0 %v2316
    %3298 = vmatpush2.bf16.msra.mxu0 %v2315
    %3299 = vmatprep.subr.bf16.mxu0 %v2308
    %3300 = vmatpush2.bf16.msra.mxu0 %v2307
    %3301 = vmatprep.subr.bf16.mxu0 %v2300
    %3302 = vmatpush2.bf16.msra.mxu0 %v2299
    %3303 = vmatprep.subr.bf16.mxu0 %v2292
    %3304 = vmatpush2.bf16.msra.mxu0 %v2291
    %3305 = vmatprep.mubr.bf16.mxu0 %v614
    %3306 = vmatmul.mubr.bf16.gmra.mxu0 %v613
    %v3307 = vpop.f32.mrf.mxu0
    %v3308 = vadd.f32 %v3267, %v3307
    %v3309 = vpop.f32.mrf.mxu0
    %v3310 = vadd.f32 %v3269, %v3309
    %v3311 = vpop.f32.mrf.mxu0
    %v3312 = vpop.f32.mrf.mxu0
    %3313 = vdwg.mxu0
    %3314 = vmatprep.subr.bf16.mxu0 %v2412
    %3315 = vmatpush1.bf16.msra.mxu0 %v2411
    %3316 = vmatprep.subr.bf16.mxu0 %v2404
    %3317 = vmatpush1.bf16.msra.mxu0 %v2403
    %3318 = vmatprep.subr.bf16.mxu0 %v2396
    %3319 = vmatpush1.bf16.msra.mxu0 %v2395
    %3320 = vmatprep.subr.bf16.mxu0 %v2388
    %3321 = vmatpush1.bf16.msra.mxu0 %v2387
    %3322 = vmatprep.subr.bf16.mxu0 %v2380
    %3323 = vmatpush1.bf16.msra.mxu0 %v2379
    %3324 = vmatprep.subr.bf16.mxu0 %v2372
    %3325 = vmatpush1.bf16.msra.mxu0 %v2371
    %3326 = vmatprep.subr.bf16.mxu0 %v2364
    %3327 = vmatpush1.bf16.msra.mxu0 %v2363
    %3328 = vmatprep.subr.bf16.mxu0 %v2356
    %3329 = vmatpush1.bf16.msra.mxu0 %v2355
    %3330 = vmatprep.subr.bf16.mxu0 0
    %3331 = vmatpush2.bf16.msra.mxu0 0
    %3332 = vmatprep.subr.bf16.mxu0 0
    %3333 = vmatpush2.bf16.msra.mxu0 0
    %3334 = vmatprep.subr.bf16.mxu0 0
    %3335 = vmatpush2.bf16.msra.mxu0 0
    %3336 = vmatprep.subr.bf16.mxu0 0
    %3337 = vmatpush2.bf16.msra.mxu0 0
    %3338 = vmatprep.subr.bf16.mxu0 0
    %3339 = vmatpush2.bf16.msra.mxu0 0
    %3340 = vmatprep.subr.bf16.mxu0 0
    %3341 = vmatpush2.bf16.msra.mxu0 0
    %3342 = vmatprep.subr.bf16.mxu0 0
    %3343 = vmatpush2.bf16.msra.mxu0 0
    %3344 = vmatprep.subr.bf16.mxu0 0
    %3345 = vmatpush2.bf16.msra.mxu0 0
    %3346 = vmatprep.mubr.bf16.mxu0 0
    %3347 = vmatmul.mubr.bf16.gmra.mxu0 %v615
    %v3348 = vpop.f32.mrf.mxu0
    %v3349 = vadd.f32 %v3308, %v3348
    %v3350 = vpop.f32.mrf.mxu0
    %v3351 = vadd.f32 %v3310, %v3350
    %v3352 = vpop.f32.mrf.mxu0
    %v3353 = vpop.f32.mrf.mxu0
    %3354 = vdwg.mxu0
    %3355 = vmatprep.subr.bf16.mxu0 %v2030
    %3356 = vmatpush1.bf16.msra.mxu0 %v2029
    %3357 = vmatprep.subr.bf16.mxu0 %v2022
    %3358 = vmatpush1.bf16.msra.mxu0 %v2021
    %3359 = vmatprep.subr.bf16.mxu0 %v2014
    %3360 = vmatpush1.bf16.msra.mxu0 %v2013
    %3361 = vmatprep.subr.bf16.mxu0 %v2006
    %3362 = vmatpush1.bf16.msra.mxu0 %v2005
    %3363 = vmatprep.subr.bf16.mxu0 %v1998
    %3364 = vmatpush1.bf16.msra.mxu0 %v1997
    %3365 = vmatprep.subr.bf16.mxu0 %v1990
    %3366 = vmatpush1.bf16.msra.mxu0 %v1989
    %3367 = vmatprep.subr.bf16.mxu0 %v1982
    %3368 = vmatpush1.bf16.msra.mxu0 %v1981
    %3369 = vmatprep.subr.bf16.mxu0 %v1974
    %3370 = vmatpush1.bf16.msra.mxu0 %v1973
    %3371 = vmatprep.subr.bf16.mxu0 %v2094
    %3372 = vmatpush2.bf16.msra.mxu0 %v2093
    %3373 = vmatprep.subr.bf16.mxu0 %v2086
    %3374 = vmatpush2.bf16.msra.mxu0 %v2085
    %3375 = vmatprep.subr.bf16.mxu0 %v2078
    %3376 = vmatpush2.bf16.msra.mxu0 %v2077
    %3377 = vmatprep.subr.bf16.mxu0 %v2070
    %3378 = vmatpush2.bf16.msra.mxu0 %v2069
    %3379 = vmatprep.subr.bf16.mxu0 %v2062
    %3380 = vmatpush2.bf16.msra.mxu0 %v2061
    %3381 = vmatprep.subr.bf16.mxu0 %v2054
    %3382 = vmatpush2.bf16.msra.mxu0 %v2053
    %3383 = vmatprep.subr.bf16.mxu0 %v2046
    %3384 = vmatpush2.bf16.msra.mxu0 %v2045
    %3385 = vmatprep.subr.bf16.mxu0 %v2038
    %3386 = vmatpush2.bf16.msra.mxu0 %v2037
    %3387 = vmatprep.mubr.bf16.mxu0 %v610
    %3388 = vmatmul.mubr.bf16.gmra.mxu0 %v609
    %v3389 = vpop.f32.mrf.mxu0
    %v3390 = vadd.f32 %v585, %v3389
    %v3391 = vpop.f32.mrf.mxu0
    %v3392 = vadd.f32 %v589, %v3391
    %v3393 = vpop.f32.mrf.mxu0
    %v3394 = vpop.f32.mrf.mxu0
    %3395 = vdwg.mxu0
    %3396 = vmatprep.subr.bf16.mxu0 %v2158
    %3397 = vmatpush1.bf16.msra.mxu0 %v2157
    %3398 = vmatprep.subr.bf16.mxu0 %v2150
    %3399 = vmatpush1.bf16.msra.mxu0 %v2149
    %3400 = vmatprep.subr.bf16.mxu0 %v2142
    %3401 = vmatpush1.bf16.msra.mxu0 %v2141
    %3402 = vmatprep.subr.bf16.mxu0 %v2134
    %3403 = vmatpush1.bf16.msra.mxu0 %v2133
    %3404 = vmatprep.subr.bf16.mxu0 %v2126
    %3405 = vmatpush1.bf16.msra.mxu0 %v2125
    %3406 = vmatprep.subr.bf16.mxu0 %v2118
    %3407 = vmatpush1.bf16.msra.mxu0 %v2117
    %3408 = vmatprep.subr.bf16.mxu0 %v2110
    %3409 = vmatpush1.bf16.msra.mxu0 %v2109
    %3410 = vmatprep.subr.bf16.mxu0 %v2102
    %3411 = vmatpush1.bf16.msra.mxu0 %v2101
    %3412 = vmatprep.subr.bf16.mxu0 %v2222
    %3413 = vmatpush2.bf16.msra.mxu0 %v2221
    %3414 = vmatprep.subr.bf16.mxu0 %v2214
    %3415 = vmatpush2.bf16.msra.mxu0 %v2213
    %3416 = vmatprep.subr.bf16.mxu0 %v2206
    %3417 = vmatpush2.bf16.msra.mxu0 %v2205
    %3418 = vmatprep.subr.bf16.mxu0 %v2198
    %3419 = vmatpush2.bf16.msra.mxu0 %v2197
    %3420 = vmatprep.subr.bf16.mxu0 %v2190
    %3421 = vmatpush2.bf16.msra.mxu0 %v2189
    %3422 = vmatprep.subr.bf16.mxu0 %v2182
    %3423 = vmatpush2.bf16.msra.mxu0 %v2181
    %3424 = vmatprep.subr.bf16.mxu0 %v2174
    %3425 = vmatpush2.bf16.msra.mxu0 %v2173
    %3426 = vmatprep.subr.bf16.mxu0 %v2166
    %3427 = vmatpush2.bf16.msra.mxu0 %v2165
    %3428 = vmatprep.mubr.bf16.mxu0 %v612
    %3429 = vmatmul.mubr.bf16.gmra.mxu0 %v611
    %v3430 = vpop.f32.mrf.mxu0
    %v3431 = vadd.f32 %v3390, %v3430
    %v3432 = vpop.f32.mrf.mxu0
    %v3433 = vadd.f32 %v3392, %v3432
    %v3434 = vpop.f32.mrf.mxu0
    %v3435 = vpop.f32.mrf.mxu0
    %3436 = vdwg.mxu0
    %3437 = vmatprep.subr.bf16.mxu0 %v2286
    %3438 = vmatpush1.bf16.msra.mxu0 %v2285
    %3439 = vmatprep.subr.bf16.mxu0 %v2278
    %3440 = vmatpush1.bf16.msra.mxu0 %v2277
    %3441 = vmatprep.subr.bf16.mxu0 %v2270
    %3442 = vmatpush1.bf16.msra.mxu0 %v2269
    %3443 = vmatprep.subr.bf16.mxu0 %v2262
    %3444 = vmatpush1.bf16.msra.mxu0 %v2261
    %3445 = vmatprep.subr.bf16.mxu0 %v2254
    %3446 = vmatpush1.bf16.msra.mxu0 %v2253
    %3447 = vmatprep.subr.bf16.mxu0 %v2246
    %3448 = vmatpush1.bf16.msra.mxu0 %v2245
    %3449 = vmatprep.subr.bf16.mxu0 %v2238
    %3450 = vmatpush1.bf16.msra.mxu0 %v2237
    %3451 = vmatprep.subr.bf16.mxu0 %v2230
    %3452 = vmatpush1.bf16.msra.mxu0 %v2229
    %3453 = vmatprep.subr.bf16.mxu0 %v2350
    %3454 = vmatpush2.bf16.msra.mxu0 %v2349
    %3455 = vmatprep.subr.bf16.mxu0 %v2342
    %3456 = vmatpush2.bf16.msra.mxu0 %v2341
    %3457 = vmatprep.subr.bf16.mxu0 %v2334
    %3458 = vmatpush2.bf16.msra.mxu0 %v2333
    %3459 = vmatprep.subr.bf16.mxu0 %v2326
    %3460 = vmatpush2.bf16.msra.mxu0 %v2325
    %3461 = vmatprep.subr.bf16.mxu0 %v2318
    %3462 = vmatpush2.bf16.msra.mxu0 %v2317
    %3463 = vmatprep.subr.bf16.mxu0 %v2310
    %3464 = vmatpush2.bf16.msra.mxu0 %v2309
    %3465 = vmatprep.subr.bf16.mxu0 %v2302
    %3466 = vmatpush2.bf16.msra.mxu0 %v2301
    %3467 = vmatprep.subr.bf16.mxu0 %v2294
    %3468 = vmatpush2.bf16.msra.mxu0 %v2293
    %3469 = vmatprep.mubr.bf16.mxu0 %v614
    %3470 = vmatmul.mubr.bf16.gmra.mxu0 %v613
    %v3471 = vpop.f32.mrf.mxu0
    %v3472 = vadd.f32 %v3431, %v3471
    %v3473 = vpop.f32.mrf.mxu0
    %v3474 = vadd.f32 %v3433, %v3473
    %v3475 = vpop.f32.mrf.mxu0
    %v3476 = vpop.f32.mrf.mxu0
    %3477 = vdwg.mxu0
    %3478 = vmatprep.subr.bf16.mxu0 %v2414
    %3479 = vmatpush1.bf16.msra.mxu0 %v2413
    %3480 = vmatprep.subr.bf16.mxu0 %v2406
    %3481 = vmatpush1.bf16.msra.mxu0 %v2405
    %3482 = vmatprep.subr.bf16.mxu0 %v2398
    %3483 = vmatpush1.bf16.msra.mxu0 %v2397
    %3484 = vmatprep.subr.bf16.mxu0 %v2390
    %3485 = vmatpush1.bf16.msra.mxu0 %v2389
    %3486 = vmatprep.subr.bf16.mxu0 %v2382
    %3487 = vmatpush1.bf16.msra.mxu0 %v2381
    %3488 = vmatprep.subr.bf16.mxu0 %v2374
    %3489 = vmatpush1.bf16.msra.mxu0 %v2373
    %3490 = vmatprep.subr.bf16.mxu0 %v2366
    %3491 = vmatpush1.bf16.msra.mxu0 %v2365
    %3492 = vmatprep.subr.bf16.mxu0 %v2358
    %3493 = vmatpush1.bf16.msra.mxu0 %v2357
    %3494 = vmatprep.subr.bf16.mxu0 0
    %3495 = vmatpush2.bf16.msra.mxu0 0
    %3496 = vmatprep.subr.bf16.mxu0 0
    %3497 = vmatpush2.bf16.msra.mxu0 0
    %3498 = vmatprep.subr.bf16.mxu0 0
    %3499 = vmatpush2.bf16.msra.mxu0 0
    %3500 = vmatprep.subr.bf16.mxu0 0
    %3501 = vmatpush2.bf16.msra.mxu0 0
    %3502 = vmatprep.subr.bf16.mxu0 0
    %3503 = vmatpush2.bf16.msra.mxu0 0
    %3504 = vmatprep.subr.bf16.mxu0 0
    %3505 = vmatpush2.bf16.msra.mxu0 0
    %3506 = vmatprep.subr.bf16.mxu0 0
    %3507 = vmatpush2.bf16.msra.mxu0 0
    %3508 = vmatprep.subr.bf16.mxu0 0
    %3509 = vmatpush2.bf16.msra.mxu0 0
    %3510 = vmatprep.mubr.bf16.mxu0 0
    %3511 = vmatmul.mubr.bf16.gmra.mxu0 %v615
    %v3512 = vpop.f32.mrf.mxu0
    %v3513 = vadd.f32 %v3472, %v3512
    %v3514 = vpop.f32.mrf.mxu0
    %v3515 = vadd.f32 %v3474, %v3514
    %v3516 = vpop.f32.mrf.mxu0
    %v3517 = vpop.f32.mrf.mxu0
    %3518 = vdwg.mxu0
    %v3519 = vtanh.pop %v3021
    %v3520 = vtanh.pop %v3023
    %v3521 = vtanh.pop %v3185
    %v3522 = vtanh.pop %v3187
    %v3523 = vtanh.pop %v3349
    %v3524 = vtanh.pop %v3351
    %v3525 = vtanh.pop %v3513
    %v3526 = vtanh.pop %v3515
    %v3527 = vpack.c.bf16 %v3519, %v3519
    %v3528 = vpack.c.bf16 %v3520, %v3520
    %v3529 = vpack.c.bf16 %v3521, %v3521
    %v3530 = vpack.c.bf16 %v3522, %v3522
    %v3531 = vpack.c.bf16 %v3523, %v3523
    %v3532 = vpack.c.bf16 %v3524, %v3524
    %v3533 = vpack.c.bf16 %v3525, %v3525
    %v3534 = vpack.c.bf16 %v3526, %v3526
    %v3535 = vld [vmem:[#allocation7] sm:$0xff]
    %v3536 = vld [vmem:[#allocation7 + $0x8] sm:$0xff]
    %v3537 = vld [vmem:[#allocation7 + $0x10] sm:$0xff]
    %v3538 = vld [vmem:[#allocation7 + $0x18] sm:$0xff]
    %v3539 = vld [vmem:[#allocation7 + $0x20] sm:$0xff]
    %v3540 = vld [vmem:[#allocation7 + $0x28] sm:$0xff]
    %v3541 = vld [vmem:[#allocation7 + $0x30] sm:$0xff]
    %v3542 = vld [vmem:[#allocation7 + $0x38] sm:$0xff]
    %v3543 = vld [vmem:[#allocation7 + $0x40] sm:$0xff]
    %v3544 = vld [vmem:[#allocation7 + $0x48] sm:$0xff]
    %v3545 = vld [vmem:[#allocation7 + $0x50] sm:$0xff]
    %v3546 = vld [vmem:[#allocation7 + $0x58] sm:$0xff]
    %v3547 = vld [vmem:[#allocation7 + $0x60] sm:$0xff]
    %v3548 = vld [vmem:[#allocation7 + $0x68] sm:$0xff]
    %v3549 = vld [vmem:[#allocation7 + $0x70] sm:$0xff]
    %v3550 = vld [vmem:[#allocation7 + $0x78] sm:$0xff]
    %v3551 = vld [vmem:[#allocation7 + $0x80] sm:$0xff]
    %v3552 = vld [vmem:[#allocation7 + $0x88] sm:$0xff]
    %v3553 = vld [vmem:[#allocation7 + $0x90] sm:$0xff]
    %v3554 = vld [vmem:[#allocation7 + $0x98] sm:$0xff]
    %v3555 = vld [vmem:[#allocation7 + $0xa0] sm:$0xff]
    %v3556 = vld [vmem:[#allocation7 + $0xa8] sm:$0xff]
    %v3557 = vld [vmem:[#allocation7 + $0xb0] sm:$0xff]
    %v3558 = vld [vmem:[#allocation7 + $0xb8] sm:$0xff]
    %v3559 = vld [vmem:[#allocation7 + $0xc0] sm:$0xff]
    %v3560 = vld [vmem:[#allocation7 + $0xc8] sm:$0xff]
    %v3561 = vld [vmem:[#allocation7 + $0xd0] sm:$0xff]
    %v3562 = vld [vmem:[#allocation7 + $0xd8] sm:$0xff]
    %v3563 = vld [vmem:[#allocation7 + $0xe0] sm:$0xff]
    %v3564 = vld [vmem:[#allocation7 + $0xe8] sm:$0xff]
    %v3565 = vld [vmem:[#allocation7 + $0xf0] sm:$0xff]
    %v3566 = vld [vmem:[#allocation7 + $0xf8] sm:$0xff]
    %v3567 = vld [vmem:[#allocation7 + $0x100] sm:$0xff]
    %v3568 = vld [vmem:[#allocation7 + $0x108] sm:$0xff]
    %v3569 = vld [vmem:[#allocation7 + $0x110] sm:$0xff]
    %v3570 = vld [vmem:[#allocation7 + $0x118] sm:$0xff]
    %v3571 = vld [vmem:[#allocation7 + $0x120] sm:$0xff]
    %v3572 = vld [vmem:[#allocation7 + $0x128] sm:$0xff]
    %v3573 = vld [vmem:[#allocation7 + $0x130] sm:$0xff]
    %v3574 = vld [vmem:[#allocation7 + $0x138] sm:$0xff]
    %v3575 = vld [vmem:[#allocation7 + $0x140] sm:$0xff]
    %v3576 = vld [vmem:[#allocation7 + $0x148] sm:$0xff]
    %v3577 = vld [vmem:[#allocation7 + $0x150] sm:$0xff]
    %v3578 = vld [vmem:[#allocation7 + $0x158] sm:$0xff]
    %v3579 = vld [vmem:[#allocation7 + $0x160] sm:$0xff]
    %v3580 = vld [vmem:[#allocation7 + $0x168] sm:$0xff]
    %v3581 = vld [vmem:[#allocation7 + $0x170] sm:$0xff]
    %v3582 = vld [vmem:[#allocation7 + $0x178] sm:$0xff]
    %v3583 = vld [vmem:[#allocation7 + $0x180] sm:$0xff]
    %v3584 = vld [vmem:[#allocation7 + $0x188] sm:$0xff]
    %v3585 = vld [vmem:[#allocation7 + $0x190] sm:$0xff]
    %v3586 = vld [vmem:[#allocation7 + $0x198] sm:$0xff]
    %v3587 = vld [vmem:[#allocation7 + $0x1a0] sm:$0xff]
    %v3588 = vld [vmem:[#allocation7 + $0x1a8] sm:$0xff]
    %v3589 = vld [vmem:[#allocation7 + $0x1b0] sm:$0xff]
    %v3590 = vld [vmem:[#allocation7 + $0x1b8] sm:$0xff]
    %v3591 = vld [vmem:[#allocation7 + $0x1c0] sm:$0xff]
    %v3592 = vld [vmem:[#allocation7 + $0x1c8] sm:$0xff]
    %v3593 = vld [vmem:[#allocation7 + $0x1d0] sm:$0xff]
    %v3594 = vld [vmem:[#allocation7 + $0x1d8] sm:$0xff]
    %v3595 = vld [vmem:[#allocation7 + $0x1e0] sm:$0xff]
    %v3596 = vld [vmem:[#allocation7 + $0x1e8] sm:$0xff]
    %v3597 = vld [vmem:[#allocation7 + $0x1f0] sm:$0xff]
    %v3598 = vld [vmem:[#allocation7 + $0x1f8] sm:$0xff]
    %v3599 = vld [vmem:[#allocation7 + $0x200] sm:$0xff]
    %v3600 = vld [vmem:[#allocation7 + $0x208] sm:$0xff]
    %v3601 = vld [vmem:[#allocation7 + $0x210] sm:$0xff]
    %v3602 = vld [vmem:[#allocation7 + $0x218] sm:$0xff]
    %v3603 = vld [vmem:[#allocation7 + $0x220] sm:$0xff]
    %v3604 = vld [vmem:[#allocation7 + $0x228] sm:$0xff]
    %v3605 = vld [vmem:[#allocation7 + $0x230] sm:$0xff]
    %v3606 = vld [vmem:[#allocation7 + $0x238] sm:$0xff]
    %v3607 = vld [vmem:[#allocation7 + $0x240] sm:$0xff]
    %v3608 = vld [vmem:[#allocation7 + $0x248] sm:$0xff]
    %v3609 = vld [vmem:[#allocation7 + $0x250] sm:$0xff]
    %v3610 = vld [vmem:[#allocation7 + $0x258] sm:$0xff]
    %v3611 = vld [vmem:[#allocation7 + $0x260] sm:$0xff]
    %v3612 = vld [vmem:[#allocation7 + $0x268] sm:$0xff]
    %v3613 = vld [vmem:[#allocation7 + $0x270] sm:$0xff]
    %v3614 = vld [vmem:[#allocation7 + $0x278] sm:$0xff]
    %v3615 = vld [vmem:[#allocation7 + $0x280] sm:$0xff]
    %v3616 = vld [vmem:[#allocation7 + $0x288] sm:$0xff]
    %v3617 = vld [vmem:[#allocation7 + $0x290] sm:$0xff]
    %v3618 = vld [vmem:[#allocation7 + $0x298] sm:$0xff]
    %v3619 = vld [vmem:[#allocation7 + $0x2a0] sm:$0xff]
    %v3620 = vld [vmem:[#allocation7 + $0x2a8] sm:$0xff]
    %v3621 = vld [vmem:[#allocation7 + $0x2b0] sm:$0xff]
    %v3622 = vld [vmem:[#allocation7 + $0x2b8] sm:$0xff]
    %v3623 = vld [vmem:[#allocation7 + $0x2c0] sm:$0xff]
    %v3624 = vld [vmem:[#allocation7 + $0x2c8] sm:$0xff]
    %v3625 = vld [vmem:[#allocation7 + $0x2d0] sm:$0xff]
    %v3626 = vld [vmem:[#allocation7 + $0x2d8] sm:$0xff]
    %v3627 = vld [vmem:[#allocation7 + $0x2e0] sm:$0xff]
    %v3628 = vld [vmem:[#allocation7 + $0x2e8] sm:$0xff]
    %v3629 = vld [vmem:[#allocation7 + $0x2f0] sm:$0xff]
    %v3630 = vld [vmem:[#allocation7 + $0x2f8] sm:$0xff]
    %v3631 = vld [vmem:[#allocation7 + $0x300] sm:$0xff]
    %v3632 = vld [vmem:[#allocation7 + $0x308] sm:$0xff]
    %v3633 = vld [vmem:[#allocation7 + $0x310] sm:$0xff]
    %v3634 = vld [vmem:[#allocation7 + $0x318] sm:$0xff]
    %v3635 = vld [vmem:[#allocation7 + $0x320] sm:$0xff]
    %v3636 = vld [vmem:[#allocation7 + $0x328] sm:$0xff]
    %v3637 = vld [vmem:[#allocation7 + $0x330] sm:$0xff]
    %v3638 = vld [vmem:[#allocation7 + $0x338] sm:$0xff]
    %v3639 = vld [vmem:[#allocation7 + $0x340] sm:$0xff]
    %v3640 = vld [vmem:[#allocation7 + $0x348] sm:$0xff]
    %v3641 = vld [vmem:[#allocation7 + $0x350] sm:$0xff]
    %v3642 = vld [vmem:[#allocation7 + $0x358] sm:$0xff]
    %v3643 = vld [vmem:[#allocation7 + $0x360] sm:$0xff]
    %v3644 = vld [vmem:[#allocation7 + $0x368] sm:$0xff]
    %v3645 = vld [vmem:[#allocation7 + $0x370] sm:$0xff]
    %v3646 = vld [vmem:[#allocation7 + $0x378] sm:$0xff]
    %v3647 = vld [vmem:[#allocation7 + $0x380] sm:$0xff]
    %v3648 = vld [vmem:[#allocation7 + $0x388] sm:$0xff]
    %v3649 = vld [vmem:[#allocation7 + $0x390] sm:$0xff]
    %v3650 = vld [vmem:[#allocation7 + $0x398] sm:$0xff]
    %v3651 = vld [vmem:[#allocation7 + $0x3a0] sm:$0xff]
    %v3652 = vld [vmem:[#allocation7 + $0x3a8] sm:$0xff]
    %v3653 = vld [vmem:[#allocation7 + $0x3b0] sm:$0xff]
    %v3654 = vld [vmem:[#allocation7 + $0x3b8] sm:$0xff]
    %v3655 = vld [vmem:[#allocation7 + $0x3c0] sm:$0xff]
    %v3656 = vld [vmem:[#allocation7 + $0x3c8] sm:$0xff]
    %v3657 = vld [vmem:[#allocation7 + $0x3d0] sm:$0xff]
    %v3658 = vld [vmem:[#allocation7 + $0x3d8] sm:$0xff]
    %v3659 = vld [vmem:[#allocation7 + $0x3e0] sm:$0xff]
    %v3660 = vld [vmem:[#allocation7 + $0x3e8] sm:$0xff]
    %v3661 = vld [vmem:[#allocation7 + $0x3f0] sm:$0xff]
    %v3662 = vld [vmem:[#allocation7 + $0x3f8] sm:$0xff]
    %v3663 = vld [vmem:[#allocation8] sm:$0x3]
    %v3665 = vlaneseq
    %v3666 = vshrl.u32 %v3665, 7
    %v3667 = vsub.s32 0, %v3666
    %v3668 = vrot.slane %v3663, %v3667
    %v3669 = vlaneseq
    %v3670 = vshrl.u32 %v3669, 7
    %v3671 = vsub.s32 1, %v3670
    %v3672 = vrot.slane %v3663, %v3671
    %v3803 = vunpack.c.l.b16 %v3535
    %v3804 = vunpack.c.h.b16 %v3535
    %v3805 = vunpack.c.l.b16 %v3536
    %v3806 = vunpack.c.h.b16 %v3536
    %v3807 = vunpack.c.l.b16 %v3537
    %v3808 = vunpack.c.h.b16 %v3537
    %v3809 = vunpack.c.l.b16 %v3538
    %v3810 = vunpack.c.h.b16 %v3538
    %v3811 = vunpack.c.l.b16 %v3539
    %v3812 = vunpack.c.h.b16 %v3539
    %v3813 = vunpack.c.l.b16 %v3540
    %v3814 = vunpack.c.h.b16 %v3540
    %v3815 = vunpack.c.l.b16 %v3541
    %v3816 = vunpack.c.h.b16 %v3541
    %v3817 = vunpack.c.l.b16 %v3542
    %v3818 = vunpack.c.h.b16 %v3542
    %v3819 = vunpack.c.l.b16 %v3543
    %v3820 = vunpack.c.h.b16 %v3543
    %v3821 = vunpack.c.l.b16 %v3544
    %v3822 = vunpack.c.h.b16 %v3544
    %v3823 = vunpack.c.l.b16 %v3545
    %v3824 = vunpack.c.h.b16 %v3545
    %v3825 = vunpack.c.l.b16 %v3546
    %v3826 = vunpack.c.h.b16 %v3546
    %v3827 = vunpack.c.l.b16 %v3547
    %v3828 = vunpack.c.h.b16 %v3547
    %v3829 = vunpack.c.l.b16 %v3548
    %v3830 = vunpack.c.h.b16 %v3548
    %v3831 = vunpack.c.l.b16 %v3549
    %v3832 = vunpack.c.h.b16 %v3549
    %v3833 = vunpack.c.l.b16 %v3550
    %v3834 = vunpack.c.h.b16 %v3550
    %v3835 = vunpack.c.l.b16 %v3551
    %v3836 = vunpack.c.h.b16 %v3551
    %v3837 = vunpack.c.l.b16 %v3552
    %v3838 = vunpack.c.h.b16 %v3552
    %v3839 = vunpack.c.l.b16 %v3553
    %v3840 = vunpack.c.h.b16 %v3553
    %v3841 = vunpack.c.l.b16 %v3554
    %v3842 = vunpack.c.h.b16 %v3554
    %v3843 = vunpack.c.l.b16 %v3555
    %v3844 = vunpack.c.h.b16 %v3555
    %v3845 = vunpack.c.l.b16 %v3556
    %v3846 = vunpack.c.h.b16 %v3556
    %v3847 = vunpack.c.l.b16 %v3557
    %v3848 = vunpack.c.h.b16 %v3557
    %v3849 = vunpack.c.l.b16 %v3558
    %v3850 = vunpack.c.h.b16 %v3558
    %v3851 = vunpack.c.l.b16 %v3559
    %v3852 = vunpack.c.h.b16 %v3559
    %v3853 = vunpack.c.l.b16 %v3560
    %v3854 = vunpack.c.h.b16 %v3560
    %v3855 = vunpack.c.l.b16 %v3561
    %v3856 = vunpack.c.h.b16 %v3561
    %v3857 = vunpack.c.l.b16 %v3562
    %v3858 = vunpack.c.h.b16 %v3562
    %v3859 = vunpack.c.l.b16 %v3563
    %v3860 = vunpack.c.h.b16 %v3563
    %v3861 = vunpack.c.l.b16 %v3564
    %v3862 = vunpack.c.h.b16 %v3564
    %v3863 = vunpack.c.l.b16 %v3565
    %v3864 = vunpack.c.h.b16 %v3565
    %v3865 = vunpack.c.l.b16 %v3566
    %v3866 = vunpack.c.h.b16 %v3566
    %v3867 = vunpack.c.l.b16 %v3567
    %v3868 = vunpack.c.h.b16 %v3567
    %v3869 = vunpack.c.l.b16 %v3568
    %v3870 = vunpack.c.h.b16 %v3568
    %v3871 = vunpack.c.l.b16 %v3569
    %v3872 = vunpack.c.h.b16 %v3569
    %v3873 = vunpack.c.l.b16 %v3570
    %v3874 = vunpack.c.h.b16 %v3570
    %v3875 = vunpack.c.l.b16 %v3571
    %v3876 = vunpack.c.h.b16 %v3571
    %v3877 = vunpack.c.l.b16 %v3572
    %v3878 = vunpack.c.h.b16 %v3572
    %v3879 = vunpack.c.l.b16 %v3573
    %v3880 = vunpack.c.h.b16 %v3573
    %v3881 = vunpack.c.l.b16 %v3574
    %v3882 = vunpack.c.h.b16 %v3574
    %v3883 = vunpack.c.l.b16 %v3575
    %v3884 = vunpack.c.h.b16 %v3575
    %v3885 = vunpack.c.l.b16 %v3576
    %v3886 = vunpack.c.h.b16 %v3576
    %v3887 = vunpack.c.l.b16 %v3577
    %v3888 = vunpack.c.h.b16 %v3577
    %v3889 = vunpack.c.l.b16 %v3578
    %v3890 = vunpack.c.h.b16 %v3578
    %v3891 = vunpack.c.l.b16 %v3579
    %v3892 = vunpack.c.h.b16 %v3579
    %v3893 = vunpack.c.l.b16 %v3580
    %v3894 = vunpack.c.h.b16 %v3580
    %v3895 = vunpack.c.l.b16 %v3581
    %v3896 = vunpack.c.h.b16 %v3581
    %v3897 = vunpack.c.l.b16 %v3582
    %v3898 = vunpack.c.h.b16 %v3582
    %v3899 = vunpack.c.l.b16 %v3583
    %v3900 = vunpack.c.h.b16 %v3583
    %v3901 = vunpack.c.l.b16 %v3584
    %v3902 = vunpack.c.h.b16 %v3584
    %v3903 = vunpack.c.l.b16 %v3585
    %v3904 = vunpack.c.h.b16 %v3585
    %v3905 = vunpack.c.l.b16 %v3586
    %v3906 = vunpack.c.h.b16 %v3586
    %v3907 = vunpack.c.l.b16 %v3587
    %v3908 = vunpack.c.h.b16 %v3587
    %v3909 = vunpack.c.l.b16 %v3588
    %v3910 = vunpack.c.h.b16 %v3588
    %v3911 = vunpack.c.l.b16 %v3589
    %v3912 = vunpack.c.h.b16 %v3589
    %v3913 = vunpack.c.l.b16 %v3590
    %v3914 = vunpack.c.h.b16 %v3590
    %v3915 = vunpack.c.l.b16 %v3591
    %v3916 = vunpack.c.h.b16 %v3591
    %v3917 = vunpack.c.l.b16 %v3592
    %v3918 = vunpack.c.h.b16 %v3592
    %v3919 = vunpack.c.l.b16 %v3593
    %v3920 = vunpack.c.h.b16 %v3593
    %v3921 = vunpack.c.l.b16 %v3594
    %v3922 = vunpack.c.h.b16 %v3594
    %v3923 = vunpack.c.l.b16 %v3595
    %v3924 = vunpack.c.h.b16 %v3595
    %v3925 = vunpack.c.l.b16 %v3596
    %v3926 = vunpack.c.h.b16 %v3596
    %v3927 = vunpack.c.l.b16 %v3597
    %v3928 = vunpack.c.h.b16 %v3597
    %v3929 = vunpack.c.l.b16 %v3598
    %v3930 = vunpack.c.h.b16 %v3598
    %v3931 = vunpack.c.l.b16 %v3599
    %v3932 = vunpack.c.h.b16 %v3599
    %v3933 = vunpack.c.l.b16 %v3600
    %v3934 = vunpack.c.h.b16 %v3600
    %v3935 = vunpack.c.l.b16 %v3601
    %v3936 = vunpack.c.h.b16 %v3601
    %v3937 = vunpack.c.l.b16 %v3602
    %v3938 = vunpack.c.h.b16 %v3602
    %v3939 = vunpack.c.l.b16 %v3603
    %v3940 = vunpack.c.h.b16 %v3603
    %v3941 = vunpack.c.l.b16 %v3604
    %v3942 = vunpack.c.h.b16 %v3604
    %v3943 = vunpack.c.l.b16 %v3605
    %v3944 = vunpack.c.h.b16 %v3605
    %v3945 = vunpack.c.l.b16 %v3606
    %v3946 = vunpack.c.h.b16 %v3606
    %v3947 = vunpack.c.l.b16 %v3607
    %v3948 = vunpack.c.h.b16 %v3607
    %v3949 = vunpack.c.l.b16 %v3608
    %v3950 = vunpack.c.h.b16 %v3608
    %v3951 = vunpack.c.l.b16 %v3609
    %v3952 = vunpack.c.h.b16 %v3609
    %v3953 = vunpack.c.l.b16 %v3610
    %v3954 = vunpack.c.h.b16 %v3610
    %v3955 = vunpack.c.l.b16 %v3611
    %v3956 = vunpack.c.h.b16 %v3611
    %v3957 = vunpack.c.l.b16 %v3612
    %v3958 = vunpack.c.h.b16 %v3612
    %v3959 = vunpack.c.l.b16 %v3613
    %v3960 = vunpack.c.h.b16 %v3613
    %v3961 = vunpack.c.l.b16 %v3614
    %v3962 = vunpack.c.h.b16 %v3614
    %v3963 = vunpack.c.l.b16 %v3615
    %v3964 = vunpack.c.h.b16 %v3615
    %v3965 = vunpack.c.l.b16 %v3616
    %v3966 = vunpack.c.h.b16 %v3616
    %v3967 = vunpack.c.l.b16 %v3617
    %v3968 = vunpack.c.h.b16 %v3617
    %v3969 = vunpack.c.l.b16 %v3618
    %v3970 = vunpack.c.h.b16 %v3618
    %v3971 = vunpack.c.l.b16 %v3619
    %v3972 = vunpack.c.h.b16 %v3619
    %v3973 = vunpack.c.l.b16 %v3620
    %v3974 = vunpack.c.h.b16 %v3620
    %v3975 = vunpack.c.l.b16 %v3621
    %v3976 = vunpack.c.h.b16 %v3621
    %v3977 = vunpack.c.l.b16 %v3622
    %v3978 = vunpack.c.h.b16 %v3622
    %v3979 = vunpack.c.l.b16 %v3623
    %v3980 = vunpack.c.h.b16 %v3623
    %v3981 = vunpack.c.l.b16 %v3624
    %v3982 = vunpack.c.h.b16 %v3624
    %v3983 = vunpack.c.l.b16 %v3625
    %v3984 = vunpack.c.h.b16 %v3625
    %v3985 = vunpack.c.l.b16 %v3626
    %v3986 = vunpack.c.h.b16 %v3626
    %v3987 = vunpack.c.l.b16 %v3627
    %v3988 = vunpack.c.h.b16 %v3627
    %v3989 = vunpack.c.l.b16 %v3628
    %v3990 = vunpack.c.h.b16 %v3628
    %v3991 = vunpack.c.l.b16 %v3629
    %v3992 = vunpack.c.h.b16 %v3629
    %v3993 = vunpack.c.l.b16 %v3630
    %v3994 = vunpack.c.h.b16 %v3630
    %v3995 = vunpack.c.l.b16 %v3631
    %v3996 = vunpack.c.h.b16 %v3631
    %v3997 = vunpack.c.l.b16 %v3632
    %v3998 = vunpack.c.h.b16 %v3632
    %v3999 = vunpack.c.l.b16 %v3633
    %v4000 = vunpack.c.h.b16 %v3633
    %v4001 = vunpack.c.l.b16 %v3634
    %v4002 = vunpack.c.h.b16 %v3634
    %v4003 = vunpack.c.l.b16 %v3635
    %v4004 = vunpack.c.h.b16 %v3635
    %v4005 = vunpack.c.l.b16 %v3636
    %v4006 = vunpack.c.h.b16 %v3636
    %v4007 = vunpack.c.l.b16 %v3637
    %v4008 = vunpack.c.h.b16 %v3637
    %v4009 = vunpack.c.l.b16 %v3638
    %v4010 = vunpack.c.h.b16 %v3638
    %v4011 = vunpack.c.l.b16 %v3639
    %v4012 = vunpack.c.h.b16 %v3639
    %v4013 = vunpack.c.l.b16 %v3640
    %v4014 = vunpack.c.h.b16 %v3640
    %v4015 = vunpack.c.l.b16 %v3641
    %v4016 = vunpack.c.h.b16 %v3641
    %v4017 = vunpack.c.l.b16 %v3642
    %v4018 = vunpack.c.h.b16 %v3642
    %v4019 = vunpack.c.l.b16 %v3643
    %v4020 = vunpack.c.h.b16 %v3643
    %v4021 = vunpack.c.l.b16 %v3644
    %v4022 = vunpack.c.h.b16 %v3644
    %v4023 = vunpack.c.l.b16 %v3645
    %v4024 = vunpack.c.h.b16 %v3645
    %v4025 = vunpack.c.l.b16 %v3646
    %v4026 = vunpack.c.h.b16 %v3646
    %v4027 = vunpack.c.l.b16 %v3647
    %v4028 = vunpack.c.h.b16 %v3647
    %v4029 = vunpack.c.l.b16 %v3648
    %v4030 = vunpack.c.h.b16 %v3648
    %v4031 = vunpack.c.l.b16 %v3649
    %v4032 = vunpack.c.h.b16 %v3649
    %v4033 = vunpack.c.l.b16 %v3650
    %v4034 = vunpack.c.h.b16 %v3650
    %v4035 = vunpack.c.l.b16 %v3651
    %v4036 = vunpack.c.h.b16 %v3651
    %v4037 = vunpack.c.l.b16 %v3652
    %v4038 = vunpack.c.h.b16 %v3652
    %v4039 = vunpack.c.l.b16 %v3653
    %v4040 = vunpack.c.h.b16 %v3653
    %v4041 = vunpack.c.l.b16 %v3654
    %v4042 = vunpack.c.h.b16 %v3654
    %v4043 = vunpack.c.l.b16 %v3655
    %v4044 = vunpack.c.h.b16 %v3655
    %v4045 = vunpack.c.l.b16 %v3656
    %v4046 = vunpack.c.h.b16 %v3656
    %v4047 = vunpack.c.l.b16 %v3657
    %v4048 = vunpack.c.h.b16 %v3657
    %v4049 = vunpack.c.l.b16 %v3658
    %v4050 = vunpack.c.h.b16 %v3658
    %v4051 = vunpack.c.l.b16 %v3659
    %v4052 = vunpack.c.h.b16 %v3659
    %v4053 = vunpack.c.l.b16 %v3660
    %v4054 = vunpack.c.h.b16 %v3660
    %v4055 = vunpack.c.l.b16 %v3661
    %v4056 = vunpack.c.h.b16 %v3661
    %v4057 = vunpack.c.l.b16 %v3662
    %v4058 = vunpack.c.h.b16 %v3662
    %v4059 = vpack.c.b16 %v3805, %v3803
    %v4060 = vpack.c.b16 %v3806, %v3804
    %v4061 = vpack.c.b16 %v3809, %v3807
    %v4062 = vpack.c.b16 %v3810, %v3808
    %v4063 = vpack.c.b16 %v3813, %v3811
    %v4064 = vpack.c.b16 %v3814, %v3812
    %v4065 = vpack.c.b16 %v3817, %v3815
    %v4066 = vpack.c.b16 %v3818, %v3816
    %v4067 = vpack.c.b16 %v3821, %v3819
    %v4068 = vpack.c.b16 %v3822, %v3820
    %v4069 = vpack.c.b16 %v3825, %v3823
    %v4070 = vpack.c.b16 %v3826, %v3824
    %v4071 = vpack.c.b16 %v3829, %v3827
    %v4072 = vpack.c.b16 %v3830, %v3828
    %v4073 = vpack.c.b16 %v3833, %v3831
    %v4074 = vpack.c.b16 %v3834, %v3832
    %v4075 = vpack.c.b16 %v3837, %v3835
    %v4076 = vpack.c.b16 %v3838, %v3836
    %v4077 = vpack.c.b16 %v3841, %v3839
    %v4078 = vpack.c.b16 %v3842, %v3840
    %v4079 = vpack.c.b16 %v3845, %v3843
    %v4080 = vpack.c.b16 %v3846, %v3844
    %v4081 = vpack.c.b16 %v3849, %v3847
    %v4082 = vpack.c.b16 %v3850, %v3848
    %v4083 = vpack.c.b16 %v3853, %v3851
    %v4084 = vpack.c.b16 %v3854, %v3852
    %v4085 = vpack.c.b16 %v3857, %v3855
    %v4086 = vpack.c.b16 %v3858, %v3856
    %v4087 = vpack.c.b16 %v3861, %v3859
    %v4088 = vpack.c.b16 %v3862, %v3860
    %v4089 = vpack.c.b16 %v3865, %v3863
    %v4090 = vpack.c.b16 %v3866, %v3864
    %v4091 = vpack.c.b16 %v3869, %v3867
    %v4092 = vpack.c.b16 %v3870, %v3868
    %v4093 = vpack.c.b16 %v3873, %v3871
    %v4094 = vpack.c.b16 %v3874, %v3872
    %v4095 = vpack.c.b16 %v3877, %v3875
    %v4096 = vpack.c.b16 %v3878, %v3876
    %v4097 = vpack.c.b16 %v3881, %v3879
    %v4098 = vpack.c.b16 %v3882, %v3880
    %v4099 = vpack.c.b16 %v3885, %v3883
    %v4100 = vpack.c.b16 %v3886, %v3884
    %v4101 = vpack.c.b16 %v3889, %v3887
    %v4102 = vpack.c.b16 %v3890, %v3888
    %v4103 = vpack.c.b16 %v3893, %v3891
    %v4104 = vpack.c.b16 %v3894, %v3892
    %v4105 = vpack.c.b16 %v3897, %v3895
    %v4106 = vpack.c.b16 %v3898, %v3896
    %v4107 = vpack.c.b16 %v3901, %v3899
    %v4108 = vpack.c.b16 %v3902, %v3900
    %v4109 = vpack.c.b16 %v3905, %v3903
    %v4110 = vpack.c.b16 %v3906, %v3904
    %v4111 = vpack.c.b16 %v3909, %v3907
    %v4112 = vpack.c.b16 %v3910, %v3908
    %v4113 = vpack.c.b16 %v3913, %v3911
    %v4114 = vpack.c.b16 %v3914, %v3912
    %v4115 = vpack.c.b16 %v3917, %v3915
    %v4116 = vpack.c.b16 %v3918, %v3916
    %v4117 = vpack.c.b16 %v3921, %v3919
    %v4118 = vpack.c.b16 %v3922, %v3920
    %v4119 = vpack.c.b16 %v3925, %v3923
    %v4120 = vpack.c.b16 %v3926, %v3924
    %v4121 = vpack.c.b16 %v3929, %v3927
    %v4122 = vpack.c.b16 %v3930, %v3928
    %v4123 = vpack.c.b16 %v3933, %v3931
    %v4124 = vpack.c.b16 %v3934, %v3932
    %v4125 = vpack.c.b16 %v3937, %v3935
    %v4126 = vpack.c.b16 %v3938, %v3936
    %v4127 = vpack.c.b16 %v3941, %v3939
    %v4128 = vpack.c.b16 %v3942, %v3940
    %v4129 = vpack.c.b16 %v3945, %v3943
    %v4130 = vpack.c.b16 %v3946, %v3944
    %v4131 = vpack.c.b16 %v3949, %v3947
    %v4132 = vpack.c.b16 %v3950, %v3948
    %v4133 = vpack.c.b16 %v3953, %v3951
    %v4134 = vpack.c.b16 %v3954, %v3952
    %v4135 = vpack.c.b16 %v3957, %v3955
    %v4136 = vpack.c.b16 %v3958, %v3956
    %v4137 = vpack.c.b16 %v3961, %v3959
    %v4138 = vpack.c.b16 %v3962, %v3960
    %v4139 = vpack.c.b16 %v3965, %v3963
    %v4140 = vpack.c.b16 %v3966, %v3964
    %v4141 = vpack.c.b16 %v3969, %v3967
    %v4142 = vpack.c.b16 %v3970, %v3968
    %v4143 = vpack.c.b16 %v3973, %v3971
    %v4144 = vpack.c.b16 %v3974, %v3972
    %v4145 = vpack.c.b16 %v3977, %v3975
    %v4146 = vpack.c.b16 %v3978, %v3976
    %v4147 = vpack.c.b16 %v3981, %v3979
    %v4148 = vpack.c.b16 %v3982, %v3980
    %v4149 = vpack.c.b16 %v3985, %v3983
    %v4150 = vpack.c.b16 %v3986, %v3984
    %v4151 = vpack.c.b16 %v3989, %v3987
    %v4152 = vpack.c.b16 %v3990, %v3988
    %v4153 = vpack.c.b16 %v3993, %v3991
    %v4154 = vpack.c.b16 %v3994, %v3992
    %v4155 = vpack.c.b16 %v3997, %v3995
    %v4156 = vpack.c.b16 %v3998, %v3996
    %v4157 = vpack.c.b16 %v4001, %v3999
    %v4158 = vpack.c.b16 %v4002, %v4000
    %v4159 = vpack.c.b16 %v4005, %v4003
    %v4160 = vpack.c.b16 %v4006, %v4004
    %v4161 = vpack.c.b16 %v4009, %v4007
    %v4162 = vpack.c.b16 %v4010, %v4008
    %v4163 = vpack.c.b16 %v4013, %v4011
    %v4164 = vpack.c.b16 %v4014, %v4012
    %v4165 = vpack.c.b16 %v4017, %v4015
    %v4166 = vpack.c.b16 %v4018, %v4016
    %v4167 = vpack.c.b16 %v4021, %v4019
    %v4168 = vpack.c.b16 %v4022, %v4020
    %v4169 = vpack.c.b16 %v4025, %v4023
    %v4170 = vpack.c.b16 %v4026, %v4024
    %v4171 = vpack.c.b16 %v4029, %v4027
    %v4172 = vpack.c.b16 %v4030, %v4028
    %v4173 = vpack.c.b16 %v4033, %v4031
    %v4174 = vpack.c.b16 %v4034, %v4032
    %v4175 = vpack.c.b16 %v4037, %v4035
    %v4176 = vpack.c.b16 %v4038, %v4036
    %v4177 = vpack.c.b16 %v4041, %v4039
    %v4178 = vpack.c.b16 %v4042, %v4040
    %v4179 = vpack.c.b16 %v4045, %v4043
    %v4180 = vpack.c.b16 %v4046, %v4044
    %v4181 = vpack.c.b16 %v4049, %v4047
    %v4182 = vpack.c.b16 %v4050, %v4048
    %v4183 = vpack.c.b16 %v4053, %v4051
    %v4184 = vpack.c.b16 %v4054, %v4052
    %v4185 = vpack.c.b16 %v4057, %v4055
    %v4186 = vpack.c.b16 %v4058, %v4056
    %4315 = vmatprep.subr.bf16.mxu0 %v4074
    %4316 = vmatpush1.bf16.msra.mxu0 %v4073
    %4317 = vmatprep.subr.bf16.mxu0 %v4072
    %4318 = vmatpush1.bf16.msra.mxu0 %v4071
    %4319 = vmatprep.subr.bf16.mxu0 %v4070
    %4320 = vmatpush1.bf16.msra.mxu0 %v4069
    %4321 = vmatprep.subr.bf16.mxu0 %v4068
    %4322 = vmatpush1.bf16.msra.mxu0 %v4067
    %4323 = vmatprep.subr.bf16.mxu0 %v4066
    %4324 = vmatpush1.bf16.msra.mxu0 %v4065
    %4325 = vmatprep.subr.bf16.mxu0 %v4064
    %4326 = vmatpush1.bf16.msra.mxu0 %v4063
    %4327 = vmatprep.subr.bf16.mxu0 %v4062
    %4328 = vmatpush1.bf16.msra.mxu0 %v4061
    %4329 = vmatprep.subr.bf16.mxu0 %v4060
    %4330 = vmatpush1.bf16.msra.mxu0 %v4059
    %4331 = vmatprep.subr.bf16.mxu0 %v4090
    %4332 = vmatpush2.bf16.msra.mxu0 %v4089
    %4333 = vmatprep.subr.bf16.mxu0 %v4088
    %4334 = vmatpush2.bf16.msra.mxu0 %v4087
    %4335 = vmatprep.subr.bf16.mxu0 %v4086
    %4336 = vmatpush2.bf16.msra.mxu0 %v4085
    %4337 = vmatprep.subr.bf16.mxu0 %v4084
    %4338 = vmatpush2.bf16.msra.mxu0 %v4083
    %4339 = vmatprep.subr.bf16.mxu0 %v4082
    %4340 = vmatpush2.bf16.msra.mxu0 %v4081
    %4341 = vmatprep.subr.bf16.mxu0 %v4080
    %4342 = vmatpush2.bf16.msra.mxu0 %v4079
    %4343 = vmatprep.subr.bf16.mxu0 %v4078
    %4344 = vmatpush2.bf16.msra.mxu0 %v4077
    %4345 = vmatprep.subr.bf16.mxu0 %v4076
    %4346 = vmatpush2.bf16.msra.mxu0 %v4075
    %4347 = vmatprep.mubr.bf16.mxu0 %v3528
    %4348 = vmatmul.mubr.bf16.gmra.mxu0 %v3527
    %v4349 = vpop.f32.mrf.mxu0
    %v4350 = vadd.f32 %v3668, %v4349
    %v4351 = vpop.f32.mrf.mxu0
    %v4352 = vadd.f32 %v3672, %v4351
    %v4353 = vpop.f32.mrf.mxu0
    %v4354 = vpop.f32.mrf.mxu0
    %4355 = vdwg.mxu0
    %4356 = vmatprep.subr.bf16.mxu0 %v4106
    %4357 = vmatpush1.bf16.msra.mxu0 %v4105
    %4358 = vmatprep.subr.bf16.mxu0 %v4104
    %4359 = vmatpush1.bf16.msra.mxu0 %v4103
    %4360 = vmatprep.subr.bf16.mxu0 %v4102
    %4361 = vmatpush1.bf16.msra.mxu0 %v4101
    %4362 = vmatprep.subr.bf16.mxu0 %v4100
    %4363 = vmatpush1.bf16.msra.mxu0 %v4099
    %4364 = vmatprep.subr.bf16.mxu0 %v4098
    %4365 = vmatpush1.bf16.msra.mxu0 %v4097
    %4366 = vmatprep.subr.bf16.mxu0 %v4096
    %4367 = vmatpush1.bf16.msra.mxu0 %v4095
    %4368 = vmatprep.subr.bf16.mxu0 %v4094
    %4369 = vmatpush1.bf16.msra.mxu0 %v4093
    %4370 = vmatprep.subr.bf16.mxu0 %v4092
    %4371 = vmatpush1.bf16.msra.mxu0 %v4091
    %4372 = vmatprep.subr.bf16.mxu0 %v4122
    %4373 = vmatpush2.bf16.msra.mxu0 %v4121
    %4374 = vmatprep.subr.bf16.mxu0 %v4120
    %4375 = vmatpush2.bf16.msra.mxu0 %v4119
    %4376 = vmatprep.subr.bf16.mxu0 %v4118
    %4377 = vmatpush2.bf16.msra.mxu0 %v4117
    %4378 = vmatprep.subr.bf16.mxu0 %v4116
    %4379 = vmatpush2.bf16.msra.mxu0 %v4115
    %4380 = vmatprep.subr.bf16.mxu0 %v4114
    %4381 = vmatpush2.bf16.msra.mxu0 %v4113
    %4382 = vmatprep.subr.bf16.mxu0 %v4112
    %4383 = vmatpush2.bf16.msra.mxu0 %v4111
    %4384 = vmatprep.subr.bf16.mxu0 %v4110
    %4385 = vmatpush2.bf16.msra.mxu0 %v4109
    %4386 = vmatprep.subr.bf16.mxu0 %v4108
    %4387 = vmatpush2.bf16.msra.mxu0 %v4107
    %4388 = vmatprep.mubr.bf16.mxu0 %v3530
    %4389 = vmatmul.mubr.bf16.gmra.mxu0 %v3529
    %v4390 = vpop.f32.mrf.mxu0
    %v4391 = vadd.f32 %v4350, %v4390
    %v4392 = vpop.f32.mrf.mxu0
    %v4393 = vadd.f32 %v4352, %v4392
    %v4394 = vpop.f32.mrf.mxu0
    %v4395 = vpop.f32.mrf.mxu0
    %4396 = vdwg.mxu0
    %4397 = vmatprep.subr.bf16.mxu0 %v4138
    %4398 = vmatpush1.bf16.msra.mxu0 %v4137
    %4399 = vmatprep.subr.bf16.mxu0 %v4136
    %4400 = vmatpush1.bf16.msra.mxu0 %v4135
    %4401 = vmatprep.subr.bf16.mxu0 %v4134
    %4402 = vmatpush1.bf16.msra.mxu0 %v4133
    %4403 = vmatprep.subr.bf16.mxu0 %v4132
    %4404 = vmatpush1.bf16.msra.mxu0 %v4131
    %4405 = vmatprep.subr.bf16.mxu0 %v4130
    %4406 = vmatpush1.bf16.msra.mxu0 %v4129
    %4407 = vmatprep.subr.bf16.mxu0 %v4128
    %4408 = vmatpush1.bf16.msra.mxu0 %v4127
    %4409 = vmatprep.subr.bf16.mxu0 %v4126
    %4410 = vmatpush1.bf16.msra.mxu0 %v4125
    %4411 = vmatprep.subr.bf16.mxu0 %v4124
    %4412 = vmatpush1.bf16.msra.mxu0 %v4123
    %4413 = vmatprep.subr.bf16.mxu0 %v4154
    %4414 = vmatpush2.bf16.msra.mxu0 %v4153
    %4415 = vmatprep.subr.bf16.mxu0 %v4152
    %4416 = vmatpush2.bf16.msra.mxu0 %v4151
    %4417 = vmatprep.subr.bf16.mxu0 %v4150
    %4418 = vmatpush2.bf16.msra.mxu0 %v4149
    %4419 = vmatprep.subr.bf16.mxu0 %v4148
    %4420 = vmatpush2.bf16.msra.mxu0 %v4147
    %4421 = vmatprep.subr.bf16.mxu0 %v4146
    %4422 = vmatpush2.bf16.msra.mxu0 %v4145
    %4423 = vmatprep.subr.bf16.mxu0 %v4144
    %4424 = vmatpush2.bf16.msra.mxu0 %v4143
    %4425 = vmatprep.subr.bf16.mxu0 %v4142
    %4426 = vmatpush2.bf16.msra.mxu0 %v4141
    %4427 = vmatprep.subr.bf16.mxu0 %v4140
    %4428 = vmatpush2.bf16.msra.mxu0 %v4139
    %4429 = vmatprep.mubr.bf16.mxu0 %v3532
    %4430 = vmatmul.mubr.bf16.gmra.mxu0 %v3531
    %v4431 = vpop.f32.mrf.mxu0
    %v4432 = vadd.f32 %v4391, %v4431
    %v4433 = vpop.f32.mrf.mxu0
    %v4434 = vadd.f32 %v4393, %v4433
    %v4435 = vpop.f32.mrf.mxu0
    %v4436 = vpop.f32.mrf.mxu0
    %4437 = vdwg.mxu0
    %4438 = vmatprep.subr.bf16.mxu0 %v4170
    %4439 = vmatpush1.bf16.msra.mxu0 %v4169
    %4440 = vmatprep.subr.bf16.mxu0 %v4168
    %4441 = vmatpush1.bf16.msra.mxu0 %v4167
    %4442 = vmatprep.subr.bf16.mxu0 %v4166
    %4443 = vmatpush1.bf16.msra.mxu0 %v4165
    %4444 = vmatprep.subr.bf16.mxu0 %v4164
    %4445 = vmatpush1.bf16.msra.mxu0 %v4163
    %4446 = vmatprep.subr.bf16.mxu0 %v4162
    %4447 = vmatpush1.bf16.msra.mxu0 %v4161
    %4448 = vmatprep.subr.bf16.mxu0 %v4160
    %4449 = vmatpush1.bf16.msra.mxu0 %v4159
    %4450 = vmatprep.subr.bf16.mxu0 %v4158
    %4451 = vmatpush1.bf16.msra.mxu0 %v4157
    %4452 = vmatprep.subr.bf16.mxu0 %v4156
    %4453 = vmatpush1.bf16.msra.mxu0 %v4155
    %4454 = vmatprep.subr.bf16.mxu0 %v4186
    %4455 = vmatpush2.bf16.msra.mxu0 %v4185
    %4456 = vmatprep.subr.bf16.mxu0 %v4184
    %4457 = vmatpush2.bf16.msra.mxu0 %v4183
    %4458 = vmatprep.subr.bf16.mxu0 %v4182
    %4459 = vmatpush2.bf16.msra.mxu0 %v4181
    %4460 = vmatprep.subr.bf16.mxu0 %v4180
    %4461 = vmatpush2.bf16.msra.mxu0 %v4179
    %4462 = vmatprep.subr.bf16.mxu0 %v4178
    %4463 = vmatpush2.bf16.msra.mxu0 %v4177
    %4464 = vmatprep.subr.bf16.mxu0 %v4176
    %4465 = vmatpush2.bf16.msra.mxu0 %v4175
    %4466 = vmatprep.subr.bf16.mxu0 %v4174
    %4467 = vmatpush2.bf16.msra.mxu0 %v4173
    %4468 = vmatprep.subr.bf16.mxu0 %v4172
    %4469 = vmatpush2.bf16.msra.mxu0 %v4171
    %4470 = vmatprep.mubr.bf16.mxu0 %v3534
    %4471 = vmatmul.mubr.bf16.gmra.mxu0 %v3533
    %v4472 = vpop.f32.mrf.mxu0
    %v4473 = vadd.f32 %v4432, %v4472
    %v4474 = vpop.f32.mrf.mxu0
    %v4475 = vadd.f32 %v4434, %v4474
    %v4476 = vpop.f32.mrf.mxu0
    %v4477 = vpop.f32.mrf.mxu0
    %4478 = vdwg.mxu0
    %v4479 = vtanh.pop %v4473
    %v4480 = vtanh.pop %v4475
    %v4481 = vpack.c.bf16 %v4479, %v4479
    %v4482 = vpack.c.bf16 %v4480, %v4480
    %v4483 = vld [vmem:[#allocation10] sm:$0xf]
    %v4484 = vld [vmem:[#allocation10 + $0x4] sm:$0xf]
    %v4485 = vld [vmem:[#allocation10 + $0x8] sm:$0xf]
    %v4486 = vld [vmem:[#allocation10 + $0xc] sm:$0xf]
    %v4487 = vld [vmem:[#allocation10 + $0x10] sm:$0xf]
    %v4488 = vld [vmem:[#allocation10 + $0x14] sm:$0xf]
    %v4489 = vld [vmem:[#allocation10 + $0x18] sm:$0xf]
    %v4490 = vld [vmem:[#allocation10 + $0x1c] sm:$0xf]
    %v4491 = vld [vmem:[#allocation10 + $0x20] sm:$0xf]
    %v4492 = vld [vmem:[#allocation10 + $0x24] sm:$0xf]
    %v4493 = vld [vmem:[#allocation10 + $0x28] sm:$0xf]
    %v4494 = vld [vmem:[#allocation10 + $0x2c] sm:$0xf]
    %v4495 = vld [vmem:[#allocation10 + $0x30] sm:$0xf]
    %v4496 = vld [vmem:[#allocation10 + $0x34] sm:$0xf]
    %v4497 = vld [vmem:[#allocation10 + $0x38] sm:$0xf]
    %v4498 = vld [vmem:[#allocation10 + $0x3c] sm:$0xf]
    %v4499 = vld [vmem:[#allocation10 + $0x40] sm:$0xf]
    %v4500 = vld [vmem:[#allocation10 + $0x44] sm:$0xf]
    %v4501 = vld [vmem:[#allocation10 + $0x48] sm:$0xf]
    %v4502 = vld [vmem:[#allocation10 + $0x4c] sm:$0xf]
    %v4503 = vld [vmem:[#allocation10 + $0x50] sm:$0xf]
    %v4504 = vld [vmem:[#allocation10 + $0x54] sm:$0xf]
    %v4505 = vld [vmem:[#allocation10 + $0x58] sm:$0xf]
    %v4506 = vld [vmem:[#allocation10 + $0x5c] sm:$0xf]
    %v4507 = vld [vmem:[#allocation10 + $0x60] sm:$0xf]
    %v4508 = vld [vmem:[#allocation10 + $0x64] sm:$0xf]
    %v4509 = vld [vmem:[#allocation10 + $0x68] sm:$0xf]
    %v4510 = vld [vmem:[#allocation10 + $0x6c] sm:$0xf]
    %v4511 = vld [vmem:[#allocation10 + $0x70] sm:$0xf]
    %v4512 = vld [vmem:[#allocation10 + $0x74] sm:$0xf]
    %v4513 = vld [vmem:[#allocation10 + $0x78] sm:$0xf]
    %v4514 = vld [vmem:[#allocation10 + $0x7c] sm:$0xf]
    %v4515 = vld [vmem:[#allocation11] sm:$0x1]
    %v4517 = vlaneseq
    %v4518 = vshrl.u32 %v4517, 7
    %v4519 = vsub.s32 0, %v4518
    %v4520 = vrot.slane %v4515, %v4519
    %v4554 = vunpack.c.l.b16 %v4483
    %v4555 = vunpack.c.l.b16 %v4484
    %v4556 = vunpack.c.l.b16 %v4485
    %v4557 = vunpack.c.l.b16 %v4486
    %v4558 = vunpack.c.l.b16 %v4487
    %v4559 = vunpack.c.l.b16 %v4488
    %v4560 = vunpack.c.l.b16 %v4489
    %v4561 = vunpack.c.l.b16 %v4490
    %v4562 = vunpack.c.l.b16 %v4491
    %v4563 = vunpack.c.l.b16 %v4492
    %v4564 = vunpack.c.l.b16 %v4493
    %v4565 = vunpack.c.l.b16 %v4494
    %v4566 = vunpack.c.l.b16 %v4495
    %v4567 = vunpack.c.l.b16 %v4496
    %v4568 = vunpack.c.l.b16 %v4497
    %v4569 = vunpack.c.l.b16 %v4498
    %v4570 = vunpack.c.l.b16 %v4499
    %v4571 = vunpack.c.l.b16 %v4500
    %v4572 = vunpack.c.l.b16 %v4501
    %v4573 = vunpack.c.l.b16 %v4502
    %v4574 = vunpack.c.l.b16 %v4503
    %v4575 = vunpack.c.l.b16 %v4504
    %v4576 = vunpack.c.l.b16 %v4505
    %v4577 = vunpack.c.l.b16 %v4506
    %v4578 = vunpack.c.l.b16 %v4507
    %v4579 = vunpack.c.l.b16 %v4508
    %v4580 = vunpack.c.l.b16 %v4509
    %v4581 = vunpack.c.l.b16 %v4510
    %v4582 = vunpack.c.l.b16 %v4511
    %v4583 = vunpack.c.l.b16 %v4512
    %v4584 = vunpack.c.l.b16 %v4513
    %v4585 = vunpack.c.l.b16 %v4514
    %v4586 = vpack.c.b16 %v4555, %v4554
    %v4587 = vpack.c.b16 %v4557, %v4556
    %v4588 = vpack.c.b16 %v4559, %v4558
    %v4589 = vpack.c.b16 %v4561, %v4560
    %v4590 = vpack.c.b16 %v4563, %v4562
    %v4591 = vpack.c.b16 %v4565, %v4564
    %v4592 = vpack.c.b16 %v4567, %v4566
    %v4593 = vpack.c.b16 %v4569, %v4568
    %v4594 = vpack.c.b16 %v4571, %v4570
    %v4595 = vpack.c.b16 %v4573, %v4572
    %v4596 = vpack.c.b16 %v4575, %v4574
    %v4597 = vpack.c.b16 %v4577, %v4576
    %v4598 = vpack.c.b16 %v4579, %v4578
    %v4599 = vpack.c.b16 %v4581, %v4580
    %v4600 = vpack.c.b16 %v4583, %v4582
    %v4601 = vpack.c.b16 %v4585, %v4584
    %4618 = vmatprep.subr.bf16.mxu0 0
    %4619 = vmatpush1.bf16.msra.mxu0 %v4593
    %4620 = vmatprep.subr.bf16.mxu0 0
    %4621 = vmatpush1.bf16.msra.mxu0 %v4592
    %4622 = vmatprep.subr.bf16.mxu0 0
    %4623 = vmatpush1.bf16.msra.mxu0 %v4591
    %4624 = vmatprep.subr.bf16.mxu0 0
    %4625 = vmatpush1.bf16.msra.mxu0 %v4590
    %4626 = vmatprep.subr.bf16.mxu0 0
    %4627 = vmatpush1.bf16.msra.mxu0 %v4589
    %4628 = vmatprep.subr.bf16.mxu0 0
    %4629 = vmatpush1.bf16.msra.mxu0 %v4588
    %4630 = vmatprep.subr.bf16.mxu0 0
    %4631 = vmatpush1.bf16.msra.mxu0 %v4587
    %4632 = vmatprep.subr.bf16.mxu0 0
    %4633 = vmatpush1.bf16.msra.mxu0 %v4586
    %4634 = vmatprep.subr.bf16.mxu0 0
    %4635 = vmatpush2.bf16.msra.mxu0 %v4601
    %4636 = vmatprep.subr.bf16.mxu0 0
    %4637 = vmatpush2.bf16.msra.mxu0 %v4600
    %4638 = vmatprep.subr.bf16.mxu0 0
    %4639 = vmatpush2.bf16.msra.mxu0 %v4599
    %4640 = vmatprep.subr.bf16.mxu0 0
    %4641 = vmatpush2.bf16.msra.mxu0 %v4598
    %4642 = vmatprep.subr.bf16.mxu0 0
    %4643 = vmatpush2.bf16.msra.mxu0 %v4597
    %4644 = vmatprep.subr.bf16.mxu0 0
    %4645 = vmatpush2.bf16.msra.mxu0 %v4596
    %4646 = vmatprep.subr.bf16.mxu0 0
    %4647 = vmatpush2.bf16.msra.mxu0 %v4595
    %4648 = vmatprep.subr.bf16.mxu0 0
    %4649 = vmatpush2.bf16.msra.mxu0 %v4594
    %4650 = vmatprep.mubr.bf16.mxu0 %v4482
    %4651 = vmatmul.mubr.bf16.gmra.mxu0 %v4481
    %v4652 = vpop.f32.mrf.mxu0
    %v4653 = vadd.f32 %v4520, %v4652
    %v4654 = vpop.f32.mrf.mxu0
    %v4655 = vpop.f32.mrf.mxu0
    %v4656 = vpop.f32.mrf.mxu0
    %4657 = vdwg.mxu0
    %v4658 = vtanh.pop %v4653
    %4659 = vst [vmem:[#allocation13] sm:$0xff] %v4658
    // Predicated region
    $region54: #{model_3_3_forward.1} parent=1 // pred_check
      _
    $region55: #{model_3_3_forward.1} parent=1 // pred_check_branch
      %4661 = sbr.rel (0) target = $region57
    $region56: #{model_3_3_forward.1} parent=1 // pred_region
      %s4663 = ssub.s32 128, 128
      %4664 = vsyncadd [#allocation4], %s4663
      %s4666 = sshll.u32 [#allocation13], 4
      %s4667 = int_to_ptr.vmem [resolvable:$true] %s4666
      %4669 = dma.vmem_to_hbm [thread:$0]  %s4667, 128, %s7, [#allocation4]
    $region57: #{model_3_3_forward.1} parent=1 // pred_fallthru
      _
    // Predicated region
    $region58: #{model_3_3_forward.1} parent=1 // pred_check
      _
    $region59: #{model_3_3_forward.1} parent=1 // pred_check_branch
      %4671 = sbr.rel (0) target = $region61
    $region60: #{model_3_3_forward.1} parent=1 // pred_region
      %4672 = dma.done [#allocation4], 128
    $region61: #{model_3_3_forward.1} parent=1 // pred_fallthru
      _
    %4673 = vsyncpa [#allocation3], 1
    %4674 = vsyncpa [#allocation6], 1
    %4675 = vsyncpa [#allocation9], 1
    %4676 = vsyncpa [#allocation12], 1
    %4677 = vsyncpa [#allocation4], 1

</llo_original>
